<compile_context>
chip_gen: v7x
topology: tpu7x:2x2x1
jax: 0.10.0
libtpu: 0.0.40
codegen_flags: <defaults>
</compile_context>

<pallas_src>
import math
from functools import partial

import jax
import jax.numpy as jnp
from jax.experimental import pallas as pl
from jax.experimental.pallas import tpu as pltpu


# ----------------------------- glue (plain JAX) -----------------------------

def conv_transpose_2x2(x, w, b):
    """Exact ConvTranspose2d(kernel=2, stride=2, padding=0).
    x: (B, C, H, W), w: (C, O, 2, 2) [torch layout], b: (O,) -> (B, O, 2H, 2W)."""
    B, C, H, W = x.shape
    O = w.shape[1]
    y = jnp.einsum('bchw,cokl->bohkwl', x, w)
    y = y.reshape(B, O, 2 * H, 2 * W) + b[None, :, None, None]
    return y


def _pick_tile(total, target):
    """Largest multiple of 128 that divides `total` and is <= target, else the
    full dim (always a legal Pallas block size)."""
    if total <= target:
        return total
    t = (target // 128) * 128
    while t >= 128:
        if total % t == 0:
            return t
        t -= 128
    return total


def _bf16_exp_ok():
    """bf16 EUP exp is a win on v6e/v7x; keep f32 exp on v5e/older (f32 EUP).
    Defaults to the always-safe f32 path if the device kind can't be read."""
    try:
        kind = jax.devices()[0].device_kind.lower()
    except Exception:
        return False
    return not any(tag in kind for tag in ('v2', 'v3', 'v4', 'v5'))


# ----------------------------- Pallas kernels -------------------------------

def attention_kernel(q_ref, k_ref, v1_ref, bv_ref, o_ref,
                     m_sc, l_sc, acc_sc, *, cv, exp_dtype):
    """Flash-style attention over one (batch, q-tile); grid axis 2 runs over
    key/value pixel tiles (online softmax).

    q_ref : (1, ck, Tq)   bf16, pre-scaled by 1/sqrt(ck), lane-dense
    k_ref : (1, ck, Tn)   bf16, hoisted key projection
    v1_ref: (1, cv+1, Tn) bf16, hoisted value projection + trailing ones row
    bv_ref: (1, cv)       f32 value bias (epilogue only)
    o_ref : (1, Tq, cv)   f32 normalized attention output (lane-sparse store is
                          forced by torch's .view(batch, cv, hq, wq) semantics)
    """
    j = pl.program_id(2)

    @pl.when(j == 0)
    def _init():
        m_sc[...] = jnp.full(m_sc.shape, -jnp.inf, dtype=m_sc.dtype)
        l_sc[...] = jnp.zeros(l_sc.shape, dtype=l_sc.dtype)
        acc_sc[...] = jnp.zeros(acc_sc.shape, dtype=acc_sc.dtype)

    q = q_ref[0]            # (ck, Tq)   bf16
    keys = k_ref[0]         # (ck, Tn)   bf16
    vals1 = v1_ref[0]       # (cv+1, Tn) bf16, last row = ones

    # Scores: contract ck (dim 0 of both operands) on the MXU -> (Tq, Tn) f32.
    s = jax.lax.dot_general(q, keys, (((0,), (0,)), ((), ())),
                            preferred_element_type=jnp.float32)

    # Online-softmax update (unnormalized accumulator, normalize in epilogue).
    m_prev = m_sc[...]                                                  # (Tq, 1)
    m_new = jnp.maximum(m_prev, jnp.max(s, axis=-1, keepdims=True))
    alpha = jnp.exp(m_prev - m_new)                                     # (Tq, 1) f32
    # bf16 exp on v6e/v7x (EUP bf16); f32 on v5e.  p is bf16 either way for MXU.
    p = jnp.exp((s - m_new).astype(exp_dtype)).astype(jnp.bfloat16)     # (Tq, Tn)

    # Single MXU matmul produces both p@V (cols :cv) and the softmax row sum
    # (last col, thanks to the appended ones row) -> no XLU lane reduction.
    pv1 = jax.lax.dot_general(p, vals1, (((1,), (1,)), ((), ())),
                              preferred_element_type=jnp.float32)        # (Tq, cv+1)
    l_sc[...] = alpha * l_sc[...] + pv1[:, cv:cv + 1]
    acc_sc[...] = alpha * acc_sc[...] + pv1[:, :cv]
    m_sc[...] = m_new

    # TODO(synk): nn.Dropout on the attention weights is identity in eval mode;
    # training-mode dropout is not implemented.

    @pl.when(j == pl.num_programs(2) - 1)
    def _finalize():
        inv_l = pl.reciprocal(l_sc[...], approx=True)                    # EUP slot
        # + bv: value bias contributes exactly bv[c] per row (normalized rows
        # of the attention sum to 1).
        o_ref[0] = (acc_sc[...] * inv_l + bv_ref[...]).astype(o_ref.dtype)


def out_conv_kernel(v_ref, res_ref, wc_ref, o_ref):
    """Final 1x1 conv over the torch-.view'd channels + residual add.
    (bc was folded into the residual-deconv bias in the wrapper.)"""
    o_ref[0] = (jnp.dot(wc_ref[...], v_ref[0], preferred_element_type=jnp.float32)
                + res_ref[0]).astype(o_ref.dtype)


# ------------------------------- wrapper -------------------------------------

def upsampling_agg_block(x, p, ck, cv, *, q_tile=1024, n_tile=1024, p_tile=2048):
    B, C, H, W = x.shape
    N = H * W
    Hq, Wq = 2 * H, 2 * W
    Nq = Hq * Wq
    out_ch = p['wc'].shape[0]

    scale = 1.0 / math.sqrt(ck)
    exp_dtype = jnp.bfloat16 if _bf16_exp_ok() else jnp.float32

    # queries: ConvTranspose2d(in, ck, 2, 2); 1/sqrt(ck) baked into the (linear)
    # deconv weights/bias so it never touches the (Tq, Tn) score surface.
    queries = conv_transpose_2x2(x, p['wq'] * scale, p['bq'] * scale)    # (B, ck, Hq, Wq)
    q = queries.reshape(B, ck, Nq).astype(jnp.bfloat16)                  # lane-dense

    # residual: ConvTranspose2d(in, out_ch, 2, 2); final 1x1-conv bias folded in.
    residual = conv_transpose_2x2(x, p['wr'], p['br'] + p['bc'])         # (B, out_ch, Hq, Wq)
    res_flat = residual.reshape(B, out_ch, Nq)

    # Hoisted K/V 1x1 projections: done ONCE per batch (XLA), not per q-tile.
    # Key bias dropped (per-row constant score shift, softmax invariant).
    x_flat = x.reshape(B, C, N)
    keys = jnp.einsum('oc,bcn->bon', p['wk'].reshape(ck, C), x_flat).astype(jnp.bfloat16)
    vals = jnp.einsum('oc,bcn->bon', p['wv'].reshape(cv, C), x_flat)
    # Append a ones row so the pv matmul also yields the softmax row sum.
    vals1 = jnp.concatenate([vals, jnp.ones((B, 1, N), vals.dtype)],
                            axis=1).astype(jnp.bfloat16)                 # (B, cv+1, N)
    bv = p['bv'].reshape(1, cv)
    wc = p['wc'].reshape(out_ch, cv)

    Tq = _pick_tile(Nq, q_tile)
    Tn = _pick_tile(N, n_tile)

    # ---- kernel 1: flash-style attention (online softmax) ----
    attn_out = pl.pallas_call(
        partial(attention_kernel, cv=cv, exp_dtype=exp_dtype),
        out_shape=jax.ShapeDtypeStruct((B, Nq, cv), jnp.float32),
        grid_spec=pltpu.PrefetchScalarGridSpec(
            num_scalar_prefetch=0,
            grid=(B, Nq // Tq, N // Tn),
            in_specs=[
                pl.BlockSpec((1, ck, Tq), lambda b, i, j: (b, 0, i)),      # q tile
                pl.BlockSpec((1, ck, Tn), lambda b, i, j: (b, 0, j)),      # key tile
                pl.BlockSpec((1, cv + 1, Tn), lambda b, i, j: (b, 0, j)),  # value|ones tile
                pl.BlockSpec((1, cv), lambda b, i, j: (0, 0)),             # value bias
            ],
            out_specs=pl.BlockSpec((1, Tq, cv), lambda b, i, j: (b, i, 0)),
            scratch_shapes=[
                pltpu.VMEM((Tq, 1), jnp.float32),    # running max
                pltpu.VMEM((Tq, 1), jnp.float32),    # running sum
                pltpu.VMEM((Tq, cv), jnp.float32),   # unnormalized accumulator
            ],
        ),
        compiler_params=pltpu.CompilerParams(
            # B and q-tile axes parallel (megacore); key/value axis is the reduction.
            dimension_semantics=("parallel", "parallel", "arbitrary"),
            vmem_limit_bytes=48 * 1024 * 1024,   # fits v5e/v6e (128 MiB), headroom on v7x (64 MiB)
        ),
    )(q, keys, vals1, bv)

    # torch: output.view(batch, cv, hq, wq) — raw row-major reinterpretation of
    # (B, Nq, cv), NOT a transpose.  On TPU this reshape IS a relayout copy
    # (minor dims change), but the tensor is only B*Nq*cv*4 bytes — one extra
    # read+write of a tiny array, negligible vs. the (Nq x N) attention work.
    viewed = attn_out.reshape(B, cv, Nq)

    # ---- kernel 2: final 1x1 conv + residual add (mem-bound glue, big tiles) ----
    Tp = _pick_tile(Nq, p_tile)
    final = pl.pallas_call(
        out_conv_kernel,
        out_shape=jax.ShapeDtypeStruct((B, out_ch, Nq), jnp.float32),
        grid=(B, Nq // Tp),
        in_specs=[
            pl.BlockSpec((1, cv, Tp), lambda b, t: (b, 0, t)),
            pl.BlockSpec((1, out_ch, Tp), lambda b, t: (b, 0, t)),
            pl.BlockSpec((out_ch, cv), lambda b, t: (0, 0)),
        ],
        out_specs=pl.BlockSpec((1, out_ch, Tp), lambda b, t: (b, 0, t)),
        compiler_params=pltpu.CompilerParams(
            dimension_semantics=("parallel", "parallel"),
            vmem_limit_bytes=48 * 1024 * 1024,
        ),
    )(viewed, res_flat, wc)

    return final.reshape(B, out_ch, Hq, Wq)


# --------------------------- pure-JAX reference -------------------------------

def reference(x, p, ck, cv):
    B, C, H, W = x.shape
    q = conv_transpose_2x2(x, p['wq'], p['bq'])
    _, cq, hq, wq = q.shape
    q = q.reshape(B, cq, -1).transpose(0, 2, 1)
    xf = x.reshape(B, C, -1)
    keys = jnp.einsum('oc,bcn->bon', p['wk'].reshape(ck, C), xf) + p['bk'][None, :, None]
    vals = jnp.einsum('oc,bcn->bon', p['wv'].reshape(cv, C), xf) + p['bv'][None, :, None]
    att = jnp.einsum('bqc,bcn->bqn', q, keys) / ck ** 0.5
    att = jax.nn.softmax(att, -1)
    out = jnp.einsum('bqn,bcn->bqc', att, vals)            # (B, Nq, cv)
    out = out.reshape(B, cv, hq, wq)                       # torch .view semantics
    out_ch = p['wc'].shape[0]
    out = jnp.einsum('oc,bchw->bohw', p['wc'].reshape(out_ch, cv), out) \
          + p['bc'][None, :, None, None]
    res = conv_transpose_2x2(x, p['wr'], p['br'])
    return out + res


# ---------------------------------- main --------------------------------------

if __name__ == "__main__":
    B, C, H, W = 2, 4, 16, 16
    ck, cv, out_ch = 8, 8, 4

    key = jax.random.PRNGKey(0)
    ks = jax.random.split(key, 11)
    s = 0.1
    params = {
        # GlobalAggregationBlock
        'wq': s * jax.random.normal(ks[0], (C, ck, 2, 2), jnp.float32),       # ConvTranspose2d(in, ck, 2, 2)
        'bq': s * jax.random.normal(ks[1], (ck,), jnp.float32),
        'wk': s * jax.random.normal(ks[2], (ck, C, 1, 1), jnp.float32),       # Conv2d(in, ck, 1)
        'bk': s * jax.random.normal(ks[3], (ck,), jnp.float32),
        'wv': s * jax.random.normal(ks[4], (cv, C, 1, 1), jnp.float32),       # Conv2d(in, cv, 1)
        'bv': s * jax.random.normal(ks[5], (cv,), jnp.float32),
        'wc': s * jax.random.normal(ks[6], (out_ch, cv, 1, 1), jnp.float32),  # Conv2d(cv, out, 1)
        'bc': s * jax.random.normal(ks[7], (out_ch,), jnp.float32),
        # residual_deconv
        'wr': s * jax.random.normal(ks[8], (C, out_ch, 2, 2), jnp.float32),   # ConvTranspose2d(in, out, 2, 2)
        'br': s * jax.random.normal(ks[9], (out_ch,), jnp.float32),
    }

    x = jax.random.normal(ks[10], (B, C, H, W), jnp.float32)

    # Small tiles here (256 queries / 128 keys) so the online-softmax reduction
    # path (multiple key tiles per query tile) is exercised at this small size.
    fn = jax.jit(partial(upsampling_agg_block, ck=ck, cv=cv, q_tile=256, n_tile=128))
    y = fn(x, params)
    y = jax.block_until_ready(y)

    y_ref = reference(x, params, ck, cv)
    assert y.shape == (B, out_ch, 2 * H, 2 * W), y.shape
    assert jnp.all(jnp.isfinite(y)), "non-finite output"
    assert jnp.allclose(y, y_ref, rtol=1e-2, atol=1e-2), \
        f"mismatch: max abs err {jnp.max(jnp.abs(y - y_ref))}"

    print("KERNEL_OK")
</pallas_src>

<mosaic_0001>
module attributes {stable_mosaic.version = 11 : i64} {
  func.func @attention_kernel(%arg0: i32, %arg1: i32, %arg2: i32, %arg3: memref<1x8x256xbf16, #tpu.memory_space<vmem>>, %arg4: memref<1x8x128xbf16, #tpu.memory_space<vmem>>, %arg5: memref<1x9x128xbf16, #tpu.memory_space<vmem>>, %arg6: memref<1x8xf32, #tpu.memory_space<vmem>>, %arg7: memref<1x256x8xf32, #tpu.memory_space<vmem>>, %arg8: memref<256x1xf32, #tpu.memory_space<vmem>>, %arg9: memref<256x1xf32, #tpu.memory_space<vmem>>, %arg10: memref<256x8xf32, #tpu.memory_space<vmem>>) attributes {dimension_semantics = [#tpu.dimension_semantics<parallel>, #tpu.dimension_semantics<parallel>, #tpu.dimension_semantics<arbitrary>], iteration_bounds = array<i64: 2, 4, 2>, scalar_prefetch = 0 : i64, scratch_operands = 3 : i64, tpu.core_type = #tpu.core_type<tc>, window_params = [{transform_indices = @transform_0, window_bounds = array<i64: 1, 8, 256>}, {transform_indices = @transform_1, window_bounds = array<i64: 1, 8, 128>}, {transform_indices = @transform_2, window_bounds = array<i64: 1, 9, 128>}, {pipeline_mode = #tpu.pipeline_mode<synchronous>, transform_indices = @transform_3, window_bounds = array<i64: 1, 8>}, {transform_indices = @transform_4, window_bounds = array<i64: 1, 256, 8>}]} {
    %c0_i32 = arith.constant 0 : i32
    %0 = arith.cmpi eq, %arg2, %c0_i32 : i32
    %1 = arith.extui %0 : i1 to i32
    %c0_i32_0 = arith.constant 0 : i32
    %2 = arith.cmpi ne, %1, %c0_i32_0 : i32
    scf.if %2 {
      %cst_24 = arith.constant 0xFF800000 : f32
      %36 = vector.broadcast %cst_24 : f32 to vector<256x1xf32>
      %c0_25 = arith.constant 0 : index
      %c0_26 = arith.constant 0 : index
      %37 = vector.load %arg8[%c0_25, %c0_26] : memref<256x1xf32, #tpu.memory_space<vmem>>, vector<256x1xf32>
      tpu.vector_store %arg8[%c0_25, %c0_26], %36 {strides = array<i32>} : memref<256x1xf32, #tpu.memory_space<vmem>>, vector<256x1xf32>,
      %cst_27 = arith.constant 0.000000e+00 : f32
      %38 = vector.broadcast %cst_27 : f32 to vector<256x1xf32>
      %c0_28 = arith.constant 0 : index
      %c0_29 = arith.constant 0 : index
      %39 = vector.load %arg9[%c0_28, %c0_29] : memref<256x1xf32, #tpu.memory_space<vmem>>, vector<256x1xf32>
      tpu.vector_store %arg9[%c0_28, %c0_29], %38 {strides = array<i32>} : memref<256x1xf32, #tpu.memory_space<vmem>>, vector<256x1xf32>,
      %cst_30 = arith.constant 0.000000e+00 : f32
      %40 = vector.broadcast %cst_30 : f32 to vector<256x8xf32>
      %c0_31 = arith.constant 0 : index
      %c0_32 = arith.constant 0 : index
      %41 = vector.load %arg10[%c0_31, %c0_32] : memref<256x8xf32, #tpu.memory_space<vmem>>, vector<256x8xf32>
      tpu.vector_store %arg10[%c0_31, %c0_32], %40 {strides = array<i32>} : memref<256x8xf32, #tpu.memory_space<vmem>>, vector<256x8xf32>,
    } else {
    }
    %c0 = arith.constant 0 : index
    %c0_1 = arith.constant 0 : index
    %c0_2 = arith.constant 0 : index
    %3 = vector.load %arg3[%c0, %c0_1, %c0_2] : memref<1x8x256xbf16, #tpu.memory_space<vmem>>, vector<1x8x256xbf16>
    %4 = vector.shape_cast %3 : vector<1x8x256xbf16> to vector<8x256xbf16>
    %c0_3 = arith.constant 0 : index
    %c0_4 = arith.constant 0 : index
    %c0_5 = arith.constant 0 : index
    %5 = vector.load %arg4[%c0_3, %c0_4, %c0_5] : memref<1x8x128xbf16, #tpu.memory_space<vmem>>, vector<1x8x128xbf16>
    %6 = vector.shape_cast %5 : vector<1x8x128xbf16> to vector<8x128xbf16>
    %c0_6 = arith.constant 0 : index
    %c0_7 = arith.constant 0 : index
    %c0_8 = arith.constant 0 : index
    %7 = vector.load %arg5[%c0_6, %c0_7, %c0_8] : memref<1x9x128xbf16, #tpu.memory_space<vmem>>, vector<1x9x128xbf16>
    %8 = vector.shape_cast %7 : vector<1x9x128xbf16> to vector<9x128xbf16>
    %cst = arith.constant dense<0.000000e+00> : vector<256x128xf32>
    %9 = tpu.matmul %4, %6, %cst {dimension_numbers = #tpu.dot_dimension_numbers<[0], [0], [1], [1], [0, 1, 1, 1], [], []>} : vector<8x256xbf16>, vector<8x128xbf16>, vector<256x128xf32> -> vector<256x128xf32>
    %c0_9 = arith.constant 0 : index
    %c0_10 = arith.constant 0 : index
    %10 = vector.load %arg8[%c0_9, %c0_10] : memref<256x1xf32, #tpu.memory_space<vmem>>, vector<256x1xf32>
    %cst_11 = arith.constant dense<0xFF800000> : vector<256xf32>
    %11 = vector.multi_reduction <maximumf>, %9, %cst_11 [1] : vector<256x128xf32> to vector<256xf32>
    %12 = vector.shape_cast %11 : vector<256xf32> to vector<256x1xf32>
    %13 = arith.maximumf %10, %12 : vector<256x1xf32>
    %14 = arith.subf %10, %13 : vector<256x1xf32>
    %15 = math.exp %14 : vector<256x1xf32>
    %16 = vector.broadcast %13 : vector<256x1xf32> to vector<256x128xf32>
    %17 = arith.subf %9, %16 : vector<256x128xf32>
    %18 = arith.truncf %17 : vector<256x128xf32> to vector<256x128xbf16>
    %19 = math.exp %18 : vector<256x128xbf16>
    %cst_12 = arith.constant dense<0.000000e+00> : vector<256x9xf32>
    %20 = tpu.matmul %19, %8, %cst_12 {dimension_numbers = #tpu.dot_dimension_numbers<[1], [1], [0], [0], [0, 0, 1, 0], [], []>} : vector<256x128xbf16>, vector<9x128xbf16>, vector<256x9xf32> -> vector<256x9xf32>
    %c0_13 = arith.constant 0 : index
    %c0_14 = arith.constant 0 : index
    %21 = vector.load %arg9[%c0_13, %c0_14] : memref<256x1xf32, #tpu.memory_space<vmem>>, vector<256x1xf32>
    %22 = arith.mulf %15, %21 : vector<256x1xf32>
    %23 = vector.extract_strided_slice %20 {offsets = [0, 8], sizes = [256, 1], strides = [1, 1]} : vector<256x9xf32> to vector<256x1xf32>
    %24 = arith.addf %22, %23 : vector<256x1xf32>
    %c0_15 = arith.constant 0 : index
    %c0_16 = arith.constant 0 : index
    %25 = vector.load %arg9[%c0_15, %c0_16] : memref<256x1xf32, #tpu.memory_space<vmem>>, vector<256x1xf32>
    tpu.vector_store %arg9[%c0_15, %c0_16], %24 {strides = array<i32>} : memref<256x1xf32, #tpu.memory_space<vmem>>, vector<256x1xf32>,
    %c0_17 = arith.constant 0 : index
    %c0_18 = arith.constant 0 : index
    %26 = vector.load %arg10[%c0_17, %c0_18] : memref<256x8xf32, #tpu.memory_space<vmem>>, vector<256x8xf32>
    %27 = vector.broadcast %15 : vector<256x1xf32> to vector<256x8xf32>
    %28 = arith.mulf %27, %26 : vector<256x8xf32>
    %29 = vector.extract_strided_slice %20 {offsets = [0, 0], sizes = [256, 8], strides = [1, 1]} : vector<256x9xf32> to vector<256x8xf32>
    %30 = arith.addf %28, %29 : vector<256x8xf32>
    %c0_19 = arith.constant 0 : index
    %c0_20 = arith.constant 0 : index
    %31 = vector.load %arg10[%c0_19, %c0_20] : memref<256x8xf32, #tpu.memory_space<vmem>>, vector<256x8xf32>
    tpu.vector_store %arg10[%c0_19, %c0_20], %30 {strides = array<i32>} : memref<256x8xf32, #tpu.memory_space<vmem>>, vector<256x8xf32>,
    %c0_21 = arith.constant 0 : index
    %c0_22 = arith.constant 0 : index
    %32 = vector.load %arg8[%c0_21, %c0_22] : memref<256x1xf32, #tpu.memory_space<vmem>>, vector<256x1xf32>
    tpu.vector_store %arg8[%c0_21, %c0_22], %13 {strides = array<i32>} : memref<256x1xf32, #tpu.memory_space<vmem>>, vector<256x1xf32>,
    %c1_i32 = arith.constant 1 : i32
    %33 = arith.cmpi eq, %arg2, %c1_i32 : i32
    %34 = arith.extui %33 : i1 to i32
    %c0_i32_23 = arith.constant 0 : i32
    %35 = arith.cmpi ne, %34, %c0_i32_23 : i32
    scf.if %35 {
      %c0_24 = arith.constant 0 : index
      %c0_25 = arith.constant 0 : index
      %36 = vector.load %arg9[%c0_24, %c0_25] : memref<256x1xf32, #tpu.memory_space<vmem>>, vector<256x1xf32>
      %37 = tpu.reciprocal %36 {approx = true} : vector<256x1xf32> -> vector<256x1xf32>
      %c0_26 = arith.constant 0 : index
      %c0_27 = arith.constant 0 : index
      %38 = vector.load %arg10[%c0_26, %c0_27] : memref<256x8xf32, #tpu.memory_space<vmem>>, vector<256x8xf32>
      %39 = vector.broadcast %37 : vector<256x1xf32> to vector<256x8xf32>
      %40 = arith.mulf %38, %39 : vector<256x8xf32>
      %c0_28 = arith.constant 0 : index
      %c0_29 = arith.constant 0 : index
      %41 = vector.load %arg6[%c0_28, %c0_29] : memref<1x8xf32, #tpu.memory_space<vmem>>, vector<1x8xf32>
      %42 = vector.broadcast %41 : vector<1x8xf32> to vector<256x8xf32>
      %43 = arith.addf %40, %42 : vector<256x8xf32>
      %c0_30 = arith.constant 0 : index
      %c0_31 = arith.constant 0 : index
      %c0_32 = arith.constant 0 : index
      %44 = vector.load %arg7[%c0_30, %c0_31, %c0_32] : memref<1x256x8xf32, #tpu.memory_space<vmem>>, vector<1x256x8xf32>
      %45 = vector.shape_cast %44 : vector<1x256x8xf32> to vector<256x8xf32>
      %46 = vector.shape_cast %43 : vector<256x8xf32> to vector<1x256x8xf32>
      tpu.vector_store %arg7[%c0_30, %c0_31, %c0_32], %46 {strides = array<i32>} : memref<1x256x8xf32, #tpu.memory_space<vmem>>, vector<1x256x8xf32>,
    } else {
    }
    return
  }
  func.func @transform_0(%arg0: i32, %arg1: i32, %arg2: i32) -> (i32, i32, i32) {
    %c0_i32 = arith.constant 0 : i32
    %c0_i32_0 = arith.constant 0 : i32
    return %arg0, %c0_i32, %arg1 : i32, i32, i32
  }
  func.func @transform_1(%arg0: i32, %arg1: i32, %arg2: i32) -> (i32, i32, i32) {
    %c0_i32 = arith.constant 0 : i32
    %c0_i32_0 = arith.constant 0 : i32
    return %arg0, %c0_i32, %arg2 : i32, i32, i32
  }
  func.func @transform_2(%arg0: i32, %arg1: i32, %arg2: i32) -> (i32, i32, i32) {
    %c0_i32 = arith.constant 0 : i32
    %c0_i32_0 = arith.constant 0 : i32
    return %arg0, %c0_i32, %arg2 : i32, i32, i32
  }
  func.func @transform_3(%arg0: i32, %arg1: i32, %arg2: i32) -> (i32, i32) {
    %c0_i32 = arith.constant 0 : i32
    %c0_i32_0 = arith.constant 0 : i32
    %c0_i32_1 = arith.constant 0 : i32
    return %c0_i32, %c0_i32_0 : i32, i32
  }
  func.func @transform_4(%arg0: i32, %arg1: i32, %arg2: i32) -> (i32, i32, i32) {
    %c0_i32 = arith.constant 0 : i32
    %c0_i32_0 = arith.constant 0 : i32
    return %arg0, %arg1, %c0_i32 : i32, i32, i32
  }
}

module attributes {stable_mosaic.version = 11 : i64} {
  func.func @out_conv_kernel(%arg0: i32, %arg1: i32, %arg2: memref<1x8x1024xf32, #tpu.memory_space<vmem>>, %arg3: memref<1x4x1024xf32, #tpu.memory_space<vmem>>, %arg4: memref<4x8xf32, #tpu.memory_space<vmem>>, %arg5: memref<1x4x1024xf32, #tpu.memory_space<vmem>>) attributes {dimension_semantics = [#tpu.dimension_semantics<parallel>, #tpu.dimension_semantics<parallel>], iteration_bounds = array<i64: 2, 1>, scalar_prefetch = 0 : i64, scratch_operands = 0 : i64, tpu.core_type = #tpu.core_type<tc>, window_params = [{transform_indices = @transform_0, window_bounds = array<i64: 1, 8, 1024>}, {transform_indices = @transform_1, window_bounds = array<i64: 1, 4, 1024>}, {pipeline_mode = #tpu.pipeline_mode<synchronous>, transform_indices = @transform_2, window_bounds = array<i64: 4, 8>}, {transform_indices = @transform_3, window_bounds = array<i64: 1, 4, 1024>}]} {
    %c0 = arith.constant 0 : index
    %c0_0 = arith.constant 0 : index
    %0 = vector.load %arg4[%c0, %c0_0] : memref<4x8xf32, #tpu.memory_space<vmem>>, vector<4x8xf32>
    %c0_1 = arith.constant 0 : index
    %c0_2 = arith.constant 0 : index
    %c0_3 = arith.constant 0 : index
    %1 = vector.load %arg2[%c0_1, %c0_2, %c0_3] : memref<1x8x1024xf32, #tpu.memory_space<vmem>>, vector<1x8x1024xf32>
    %2 = vector.shape_cast %1 : vector<1x8x1024xf32> to vector<8x1024xf32>
    %cst = arith.constant dense<0.000000e+00> : vector<4x1024xf32>
    %3 = tpu.matmul %0, %2, %cst {dimension_numbers = #tpu.dot_dimension_numbers<[1], [0], [0], [1], [0, 0, 1, 1], [], []>} : vector<4x8xf32>, vector<8x1024xf32>, vector<4x1024xf32> -> vector<4x1024xf32>
    %c0_4 = arith.constant 0 : index
    %c0_5 = arith.constant 0 : index
    %c0_6 = arith.constant 0 : index
    %4 = vector.load %arg3[%c0_4, %c0_5, %c0_6] : memref<1x4x1024xf32, #tpu.memory_space<vmem>>, vector<1x4x1024xf32>
    %5 = vector.shape_cast %4 : vector<1x4x1024xf32> to vector<4x1024xf32>
    %6 = arith.addf %3, %5 : vector<4x1024xf32>
    %c0_7 = arith.constant 0 : index
    %c0_8 = arith.constant 0 : index
    %c0_9 = arith.constant 0 : index
    %7 = vector.load %arg5[%c0_7, %c0_8, %c0_9] : memref<1x4x1024xf32, #tpu.memory_space<vmem>>, vector<1x4x1024xf32>
    %8 = vector.shape_cast %7 : vector<1x4x1024xf32> to vector<4x1024xf32>
    %9 = vector.shape_cast %6 : vector<4x1024xf32> to vector<1x4x1024xf32>
    tpu.vector_store %arg5[%c0_7, %c0_8, %c0_9], %9 {strides = array<i32>} : memref<1x4x1024xf32, #tpu.memory_space<vmem>>, vector<1x4x1024xf32>,
    return
  }
  func.func @transform_0(%arg0: i32, %arg1: i32) -> (i32, i32, i32) {
    %c0_i32 = arith.constant 0 : i32
    %c0_i32_0 = arith.constant 0 : i32
    return %arg0, %c0_i32, %arg1 : i32, i32, i32
  }
  func.func @transform_1(%arg0: i32, %arg1: i32) -> (i32, i32, i32) {
    %c0_i32 = arith.constant 0 : i32
    %c0_i32_0 = arith.constant 0 : i32
    return %arg0, %c0_i32, %arg1 : i32, i32, i32
  }
  func.func @transform_2(%arg0: i32, %arg1: i32) -> (i32, i32) {
    %c0_i32 = arith.constant 0 : i32
    %c0_i32_0 = arith.constant 0 : i32
    %c0_i32_1 = arith.constant 0 : i32
    return %c0_i32, %c0_i32_0 : i32, i32
  }
  func.func @transform_3(%arg0: i32, %arg1: i32) -> (i32, i32, i32) {
    %c0_i32 = arith.constant 0 : i32
    %c0_i32_0 = arith.constant 0 : i32
    return %arg0, %c0_i32, %arg1 : i32, i32, i32
  }
}

</mosaic_0001>

<llo_original>
// kernel: upsampling_agg_block.2
$region0: #{upsampling_agg_block.2}
  #allocation0 [shape = 'u32[]', space=smem, size = 0x4, offset = 0x4, fixed_abs, tag = 'smem constant byte address 0x4 - core index']
  #allocation1 [shape = 'u32[144,128]{1,0:T(1,128)}', space=vmem, size = 0x12000, scoped, tag = 'internal scratch']
  #allocation2 [shape = 'f32[256,1]{1,0:T(8,128)}', space=vmem, size = 0x20000, scoped, tag = 'scratch operand']
  #allocation3 [shape = 'f32[256,1]{1,0:T(8,128)}', space=vmem, size = 0x20000, scoped, tag = 'scratch operand']
  #allocation4 [shape = 'f32[256,8]{1,0:T(8,128)}', space=vmem, size = 0x20000, scoped, tag = 'scratch operand']
  %s0 = inlined_call_operand.vmem [shape: bf16[2,8,1024], index: 0, kind: input, shape index: {}]
  %s1 = inlined_call_operand.vmem [shape: bf16[2,8,256], index: 1, kind: input, shape index: {}]
  %s2 = inlined_call_operand.vmem [shape: bf16[2,9,256], index: 2, kind: input, shape index: {}]
  %s3 = inlined_call_operand.vmem [shape: f32[1,8], index: 3, kind: input, shape index: {}]
  %s4 = inlined_call_operand.vmem [shape: f32[2,1024,8], index: 4, kind: output, shape index: {}]
  %s5 = sld [smem:[#allocation0]]
  $region98: #{upsampling_agg_block.2} parent=0
    _
  %s7 = ssub.s32 1, %s5
  %s8 = scalar_select 0, %s7, %s5
  $region1: #{upsampling_agg_block.2} parent=0
    #allocation5 [shape = 'u8[8192]{0}', space=vmem, size = 0x2000, scoped, tag = 'input window, operand 2']
    loop: start=0, step=1, limit=18
    $region2: #{upsampling_agg_block.2} parent=1 // loop_pre_header
      _
    $region3: #{upsampling_agg_block.2} parent=1 // loop_header
      %s10 = sphi 0, %s14
      %p11 = scmp.ge.s32.totalorder %s10, 18
      %s17 = sphi 0, %s36
      %s18 = sphi 0, %s32
      %s19 = sphi 0, %s28
      %s20 = sphi 0, %s17
      %s21 = sphi 0, %s18
      %s22 = sphi 0, %s19
      %s23 = sphi 0, %s20
      %s24 = sphi 0, %s21
      %s25 = sphi 0, %s22
      %s41 = sphi 0, %s43
      %s44 = sphi 0, %s41
      %s45 = sphi 0, %s44
      %s61 = sphi 0, %s45
      %s69 = sphi 0, %s71
      %s72 = sphi 0, %s69
      %s73 = sphi 0, %s72
      %s89 = sphi 0, %s73
      %s97 = sphi 0, %s99
      %s100 = sphi 0, %s97
      %s101 = sphi 0, %s100
      %s117 = sphi 0, %s101
      %s121 = sphi 0, %s121
      %s123 = sphi 0, %s121
      %s124 = sphi 0, %s123
      %s138 = sphi 0, %s124
      %s146 = sphi 0, %s148
      %s149 = sphi 0, %s146
      %s150 = sphi 0, %s149
      %s166 = sphi 0, %s150
    $region4: #{upsampling_agg_block.2} parent=1 // loop_header_branch
      %13 = sbr.rel (%p11) target = $region8
    $region5: #{upsampling_agg_block.2} parent=1 // loop_body
      %s15 = ssub.s32 %s10, 1
      %s16 = ssub.s32 %s10, 2
      %s26 = sadd.s32 1, %s19
      %p27 = scmp.ge.s32.totalorder %s26, 2
      %s28 = scalar_select %p27, 0, %s26
      %s29 = sadd.s32 1, %s18
      %s30 = scalar_select %p27, %s29, %s18
      %p31 = scmp.ge.s32.totalorder %s30, 4
      %s32 = scalar_select %p31, 0, %s30
      %s33 = sadd.s32 1, %s17
      %s34 = scalar_select %p31, %s33, %s17
      %p35 = scmp.ge.s32.totalorder %s34, 2
      %s36 = scalar_select %p35, 0, %s34
      %s37 = ssub.s32 %s17, %s36
      %s38 = ssub.s32 %s18, %s32
      %s39 = sor.u32 %s37, %s38
      %p40 = scmp.eq.s32.totalorder %s39, 0
      %s42 = sadd.s32 %s41, 1
      %s43 = scalar_select %p40, %s41, %s42
      %p46 = pneg %p40
      %p47 = scmp.eq.s32.totalorder %s10, 15
      %p48 = por %p46, %p47
      %p49 = scmp.ne.s32.totalorder %s41, %s44
      %p50 = scmp.eq.s32.totalorder %s10, 0
      %p51 = por %p49, %p50
      %p52 = scmp.ne.s32.totalorder %s41, %s44
      %p53 = scmp.eq.s32.totalorder %s15, 15
      %p54 = por %p52, %p53
      %p55 = scmp.ne.s32.totalorder %s44, %s45
      %p56 = scmp.eq.s32.totalorder %s15, 0
      %p57 = por %p55, %p56
      %p58 = scmp.ne.s32.totalorder %s44, %s45
      %p59 = scmp.eq.s32.totalorder %s16, 15
      %p60 = por %p58, %p59
      %p62 = scmp.ne.s32.totalorder %s45, %s61
      %p63 = scmp.eq.s32.totalorder %s16, 0
      %p64 = por %p62, %p63
      %s65 = ssub.s32 %s17, %s36
      %s66 = ssub.s32 %s19, %s28
      %s67 = sor.u32 %s65, %s66
      %p68 = scmp.eq.s32.totalorder %s67, 0
      %s70 = sadd.s32 %s69, 1
      %s71 = scalar_select %p68, %s69, %s70
      %p74 = pneg %p68
      %p75 = scmp.eq.s32.totalorder %s10, 15
      %p76 = por %p74, %p75
      %p77 = scmp.ne.s32.totalorder %s69, %s72
      %p78 = scmp.eq.s32.totalorder %s10, 0
      %p79 = por %p77, %p78
      %p80 = scmp.ne.s32.totalorder %s69, %s72
      %p81 = scmp.eq.s32.totalorder %s15, 15
      %p82 = por %p80, %p81
      %p83 = scmp.ne.s32.totalorder %s72, %s73
      %p84 = scmp.eq.s32.totalorder %s15, 0
      %p85 = por %p83, %p84
      %p86 = scmp.ne.s32.totalorder %s72, %s73
      %p87 = scmp.eq.s32.totalorder %s16, 15
      %p88 = por %p86, %p87
      %p90 = scmp.ne.s32.totalorder %s73, %s89
      %p91 = scmp.eq.s32.totalorder %s16, 0
      %p92 = por %p90, %p91
      %s93 = ssub.s32 %s17, %s36
      %s94 = ssub.s32 %s19, %s28
      %s95 = sor.u32 %s93, %s94
      %p96 = scmp.eq.s32.totalorder %s95, 0
      %s98 = sadd.s32 %s97, 1
      %s99 = scalar_select %p96, %s97, %s98
      %p102 = pneg %p96
      %p103 = scmp.eq.s32.totalorder %s10, 15
      %p104 = por %p102, %p103
      %p105 = scmp.ne.s32.totalorder %s97, %s100
      %p106 = scmp.eq.s32.totalorder %s10, 0
      %p107 = por %p105, %p106
      %p108 = scmp.ne.s32.totalorder %s97, %s100
      %p109 = scmp.eq.s32.totalorder %s15, 15
      %p110 = por %p108, %p109
      %p111 = scmp.ne.s32.totalorder %s100, %s101
      %p112 = scmp.eq.s32.totalorder %s15, 0
      %p113 = por %p111, %p112
      %p114 = scmp.ne.s32.totalorder %s100, %s101
      %p115 = scmp.eq.s32.totalorder %s16, 15
      %p116 = por %p114, %p115
      %p118 = scmp.ne.s32.totalorder %s101, %s117
      %p119 = scmp.eq.s32.totalorder %s16, 0
      %p120 = por %p118, %p119
      %s122 = sadd.s32 %s121, 1
      %p125 = scmp.eq.s32.totalorder %s10, 15
      %p126 = scmp.ne.s32.totalorder %s121, %s123
      %p127 = scmp.eq.s32.totalorder %s10, 0
      %p128 = por %p126, %p127
      %p129 = scmp.ne.s32.totalorder %s121, %s123
      %p130 = scmp.eq.s32.totalorder %s15, 15
      %p131 = por %p129, %p130
      %p132 = scmp.ne.s32.totalorder %s123, %s124
      %p133 = scmp.eq.s32.totalorder %s15, 0
      %p134 = por %p132, %p133
      %p135 = scmp.ne.s32.totalorder %s123, %s124
      %p136 = scmp.eq.s32.totalorder %s16, 15
      %p137 = por %p135, %p136
      %p139 = scmp.ne.s32.totalorder %s124, %s138
      %p140 = scmp.eq.s32.totalorder %s16, 0
      %p141 = por %p139, %p140
      %s142 = ssub.s32 %s17, %s36
      %s143 = ssub.s32 %s18, %s32
      %s144 = sor.u32 %s142, %s143
      %p145 = scmp.eq.s32.totalorder %s144, 0
      %s147 = sadd.s32 %s146, 1
      %s148 = scalar_select %p145, %s146, %s147
      %p151 = pneg %p145
      %p152 = scmp.eq.s32.totalorder %s10, 15
      %p153 = por %p151, %p152
      %p154 = scmp.ne.s32.totalorder %s146, %s149
      %p155 = scmp.eq.s32.totalorder %s10, 0
      %p156 = por %p154, %p155
      %p157 = scmp.ne.s32.totalorder %s146, %s149
      %p158 = scmp.eq.s32.totalorder %s15, 15
      %p159 = por %p157, %p158
      %p160 = scmp.ne.s32.totalorder %s149, %s150
      %p161 = scmp.eq.s32.totalorder %s15, 0
      %p162 = por %p160, %p161
      %p163 = scmp.ne.s32.totalorder %s149, %s150
      %p164 = scmp.eq.s32.totalorder %s16, 15
      %p165 = por %p163, %p164
      %p167 = scmp.ne.s32.totalorder %s150, %s166
      %p168 = scmp.eq.s32.totalorder %s16, 0
      %p169 = por %p167, %p168
      %p170 = scmp.le.s32.totalorder 1, %s10
      %p171 = scmp.lt.s32.totalorder %s10, 17
      %p172 = pnand %p170, %p171
      %p173 = pneg %p172
      // Predicated region
      $region9: #{upsampling_agg_block.2} parent=5 // pred_check
        _
      $region10: #{upsampling_agg_block.2} parent=5 // pred_check_branch
        %175 = sbr.rel (%p172) target = $region12
      $region11: #{upsampling_agg_block.2} parent=5 // pred_region
        %s176 = ssub.s32 %s10, 1
        // Predicated region
        $region13: #{upsampling_agg_block.2} parent=11 // pred_check
          %p177 = pneg %p134
        $region14: #{upsampling_agg_block.2} parent=11 // pred_check_branch
          %179 = sbr.rel (%p177) target = $region16
        $region15: #{upsampling_agg_block.2} parent=11 // pred_region
          _
        $region16: #{upsampling_agg_block.2} parent=11 // pred_fallthru
          _
      $region12: #{upsampling_agg_block.2} parent=5 // pred_fallthru
        _
      %p180 = scmp.lt.s32.totalorder %s10, 16
      // Predicated region
      $region17: #{upsampling_agg_block.2} parent=5 // pred_check
        %p181 = pneg %p180
      $region18: #{upsampling_agg_block.2} parent=5 // pred_check_branch
        %183 = sbr.rel (%p181) target = $region20
      $region19: #{upsampling_agg_block.2} parent=5 // pred_region
        // Predicated region
        $region21: #{upsampling_agg_block.2} parent=19 // pred_check
          %p184 = pneg %p51
        $region22: #{upsampling_agg_block.2} parent=19 // pred_check_branch
          %186 = sbr.rel (%p184) target = $region24
        $region23: #{upsampling_agg_block.2} parent=19 // pred_region
          %s187 = smul.u32 2, %s18
          %p188 = scmp.lt.s32.totalorder %s17, 1
          %s189 = scalar_select %p188, %s17, 1
          %p190 = scmp.lt.s32.totalorder %s187, 7
          %s191 = scalar_select %p190, %s187, 7
          %s192 = smul.addr %s189, 8
          %s193 = sadd.s32 %s191, %s192
          %s194 = smul.addr %s193, 4
          %s195 = scalar_lea.vmem %s0, %s194
          %s196 = smul.u32 2, %s18
        $region24: #{upsampling_agg_block.2} parent=19 // pred_fallthru
          _
        // Predicated region
        $region25: #{upsampling_agg_block.2} parent=19 // pred_check
          %p197 = pneg %p79
        $region26: #{upsampling_agg_block.2} parent=19 // pred_check_branch
          %199 = sbr.rel (%p197) target = $region28
        $region27: #{upsampling_agg_block.2} parent=19 // pred_region
          %p200 = scmp.lt.s32.totalorder %s17, 1
          %s201 = scalar_select %p200, %s17, 1
          %p202 = scmp.lt.s32.totalorder %s19, 1
          %s203 = scalar_select %p202, %s19, 1
          %s204 = smul.addr %s201, 2
          %s205 = sadd.s32 %s203, %s204
          %s206 = smul.addr %s205, 4
          %s207 = scalar_lea.vmem %s1, %s206
        $region28: #{upsampling_agg_block.2} parent=19 // pred_fallthru
          _
        // Predicated region
        $region29: #{upsampling_agg_block.2} parent=19 // pred_check
          %p208 = pneg %p107
        $region30: #{upsampling_agg_block.2} parent=19 // pred_check_branch
          %210 = sbr.rel (%p208) target = $region32
        $region31: #{upsampling_agg_block.2} parent=19 // pred_region
          %s211 = sand.u32 %s97, 1
          %s212 = sand.u32 %s97, 1
          %s213 = smul.addr %s212, 8
          %s214 = scalar_lea.vmem [#allocation5], %s213
          %s215 = smul.addr %s17, 4
          %s216 = sadd.s32 %s19, %s215
          %s217 = smul.addr %s216, 4
          %s218 = scalar_lea.vmem %s2, %s217
          // Predicated region
          $region33: #{upsampling_agg_block.2} parent=31 // pred_check
            _
          $region34: #{upsampling_agg_block.2} parent=31 // pred_check_branch
            %220 = sbr.rel (0) target = $region36
          $region35: #{upsampling_agg_block.2} parent=31 // pred_region
            // Predicated region
            $region37: #{upsampling_agg_block.2} parent=35 // pred_check
              _
            $region38: #{upsampling_agg_block.2} parent=35 // pred_check_branch
              %222 = sbr.rel target = $region40
            $region39: #{upsampling_agg_block.2} parent=35 // pred_region
              // Predicated region
              $region52: #{upsampling_agg_block.2} parent=39 // pred_check
                _
              $region53: #{upsampling_agg_block.2} parent=39 // pred_check_branch
                %239 = sbr.rel (0) target = $region55
              $region54: #{upsampling_agg_block.2} parent=39 // pred_region
                loop: start=0, step=1, limit=1
                $region56: #{upsampling_agg_block.2} parent=54 // loop_pre_header
                  _
                $region57: #{upsampling_agg_block.2} parent=54 // loop_header
                  %s241 = sphi 0, %s245
                  %p242 = scmp.ge.s32.totalorder %s241, 1
                  %s246 = sphi %s218, %s218
                  %s247 = sphi %s214, %s214
                $region58: #{upsampling_agg_block.2} parent=54 // loop_header_branch
                  %244 = sbr.rel (%p242) target = $region62
                $region59: #{upsampling_agg_block.2} parent=54 // loop_body
                  _
                $region60: #{upsampling_agg_block.2} parent=54 // loop_footer
                  %s245 = sadd.s32 1, %s241
                $region61: #{upsampling_agg_block.2} parent=54 // loop_footer_branch
                  %240 = sbr.rel target = $region57
                $region62: #{upsampling_agg_block.2} parent=54 // loop_exit
                  _
                loop: start=0, step=1, limit=1
                $region63: #{upsampling_agg_block.2} parent=54 // loop_pre_header
                  _
                $region64: #{upsampling_agg_block.2} parent=54 // loop_header
                  %s250 = sphi 0, %s254
                  %p251 = scmp.ge.s32.totalorder %s250, 1
                  %s255 = sphi %s218, %s218
                  %s256 = sphi %s214, %s214
                $region65: #{upsampling_agg_block.2} parent=54 // loop_header_branch
                  %253 = sbr.rel (%p251) target = $region69
                $region66: #{upsampling_agg_block.2} parent=54 // loop_body
                  %v257 = vld [vmem:[%s255] sm:$0xf]
                  %258 = vst [vmem:[%s256] sm:$0xf] %v257
                  %v259 = vld [vmem:[%s255 + $0x8] sm:$0xf]
                  %260 = vst [vmem:[%s256 + $0x4] sm:$0xf] %v259
                $region67: #{upsampling_agg_block.2} parent=54 // loop_footer
                  %s254 = sadd.s32 1, %s250
                $region68: #{upsampling_agg_block.2} parent=54 // loop_footer_branch
                  %249 = sbr.rel target = $region64
                $region69: #{upsampling_agg_block.2} parent=54 // loop_exit
                  _
              $region55: #{upsampling_agg_block.2} parent=39 // pred_fallthru
                _
            $region40: #{upsampling_agg_block.2} parent=35 // pred_fallthru
              _
            // Predicated region
            $region41: #{upsampling_agg_block.2} parent=35 // pred_check
              _
            $region42: #{upsampling_agg_block.2} parent=35 // pred_check_branch
              %224 = sbr.rel (0) target = $region44
            $region43: #{upsampling_agg_block.2} parent=35 // pred_region
              loop: start=0, step=1, limit=1
              $region45: #{upsampling_agg_block.2} parent=43 // loop_pre_header
                _
              $region46: #{upsampling_agg_block.2} parent=43 // loop_header
                %s227 = sphi 0, %s231
                %p228 = scmp.ge.s32.totalorder %s227, 1
                %s232 = sphi %s218, %s218
                %s233 = sphi %s214, %s214
              $region47: #{upsampling_agg_block.2} parent=43 // loop_header_branch
                %230 = sbr.rel (%p228) target = $region51
              $region48: #{upsampling_agg_block.2} parent=43 // loop_body
                %v234 = vld [vmem:[%s232] sm:$0xf]
                %235 = vst [vmem:[%s233] sm:$0xf] %v234
                %v236 = vld [vmem:[%s232 + $0x8] sm:$0xf]
                %237 = vst [vmem:[%s233 + $0x4] sm:$0xf] %v236
              $region49: #{upsampling_agg_block.2} parent=43 // loop_footer
                %s231 = sadd.s32 1, %s227
              $region50: #{upsampling_agg_block.2} parent=43 // loop_footer_branch
                %226 = sbr.rel target = $region46
              $region51: #{upsampling_agg_block.2} parent=43 // loop_exit
                _
            $region44: #{upsampling_agg_block.2} parent=35 // pred_fallthru
              _
          $region36: #{upsampling_agg_block.2} parent=31 // pred_fallthru
            _
          %261 = vnop
        $region32: #{upsampling_agg_block.2} parent=19 // pred_fallthru
          _
      $region20: #{upsampling_agg_block.2} parent=5 // pred_fallthru
        _
      %p262 = scmp.le.s32.totalorder 1, %s10
      %p263 = scmp.lt.s32.totalorder %s10, 17
      %p264 = pnand %p262, %p263
      %p265 = pneg %p264
      // Predicated region
      $region70: #{upsampling_agg_block.2} parent=5 // pred_check
        _
      $region71: #{upsampling_agg_block.2} parent=5 // pred_check_branch
        %267 = sbr.rel (%p264) target = $region73
      $region72: #{upsampling_agg_block.2} parent=5 // pred_region
        %s268 = ssub.s32 %s10, 1
        %s269 = sand.u32 %s100, 1
        %s270 = sand.u32 %s100, 1
        %s271 = smul.addr %s270, 8
        %s272 = scalar_lea.vmem [#allocation5], %s271
        // Predicated region
        $region74: #{upsampling_agg_block.2} parent=72 // pred_check
          %p273 = pneg %p113
        $region75: #{upsampling_agg_block.2} parent=72 // pred_check_branch
          %275 = sbr.rel (%p273) target = $region77
        $region76: #{upsampling_agg_block.2} parent=72 // pred_region
          _
        $region77: #{upsampling_agg_block.2} parent=72 // pred_fallthru
          _
        %s276 = smul.u32 2, %s21
        %p277 = scmp.lt.s32.totalorder %s20, 1
        %s278 = scalar_select %p277, %s20, 1
        %p279 = scmp.lt.s32.totalorder %s276, 7
        %s280 = scalar_select %p279, %s276, 7
        %s281 = smul.addr %s278, 8
        %s282 = sadd.s32 %s280, %s281
        %s283 = smul.addr %s282, 4
        %s284 = scalar_lea.vmem %s0, %s283
        %p285 = pneg %p57
        %p286 = pneg %p54
        %p287 = scmp.lt.s32.totalorder %s20, 1
        %s288 = scalar_select %p287, %s20, 1
        %p289 = scmp.lt.s32.totalorder %s22, 1
        %s290 = scalar_select %p289, %s22, 1
        %s291 = smul.addr %s288, 2
        %s292 = sadd.s32 %s290, %s291
        %s293 = smul.addr %s292, 4
        %s294 = scalar_lea.vmem %s1, %s293
        %p295 = pneg %p85
        %p296 = pneg %p82
        %s297 = sand.u32 %s100, 1
        %s298 = sand.u32 %s100, 1
        %s299 = smul.addr %s298, 8
        %s300 = scalar_lea.vmem [#allocation5], %s299
        %p301 = pneg %p113
        %p302 = pneg %p110
        %p303 = pneg %p134
        %p304 = pneg %p131
        %p305 = pneg %p162
        %p306 = pneg %p159
        %s307 = smul.u32 32, %s21
        %p308 = scmp.lt.s32.totalorder %s20, 1
        %s309 = scalar_select %p308, %s20, 1
        %p310 = scmp.lt.s32.totalorder %s307, 127
        %s311 = scalar_select %p310, %s307, 127
        %s312 = smul.addr %s309, 128
        %s313 = sadd.s32 %s311, %s312
        %s314 = smul.addr %s313, 8
        %s315 = scalar_lea.vmem %s4, %s314
        %s316 = smul.u32 2, %s21
        %p317 = scmp.lt.s32.totalorder %s20, 1
        %s318 = scalar_select %p317, %s20, 1
        %p319 = scmp.lt.s32.totalorder %s316, 7
        %s320 = scalar_select %p319, %s316, 7
        %s321 = smul.addr %s318, 8
        %s322 = sadd.s32 %s320, %s321
        %s323 = smul.addr %s322, 4
        %s324 = scalar_lea.vmem %s0, %s323
        %s325 = smul.u32 2, %s21
        %p326 = scmp.lt.s32.totalorder %s20, 1
        %s327 = scalar_select %p326, %s20, 1
        %p328 = scmp.lt.s32.totalorder %s22, 1
        %s329 = scalar_select %p328, %s22, 1
        %s330 = smul.addr %s327, 2
        %s331 = sadd.s32 %s329, %s330
        %s332 = smul.addr %s331, 4
        %s333 = scalar_lea.vmem %s1, %s332
        %s334 = smul.u32 32, %s21
        %p335 = scmp.lt.s32.totalorder %s20, 1
        %s336 = scalar_select %p335, %s20, 1
        %p337 = scmp.lt.s32.totalorder %s334, 127
        %s338 = scalar_select %p337, %s334, 127
        %s339 = smul.addr %s336, 128
        %s340 = sadd.s32 %s338, %s339
        %s341 = smul.addr %s340, 8
        %s342 = scalar_lea.vmem %s4, %s341
        %s343 = smul.u32 32, %s21
        %p345 = scmp.eq.s32.totalorder %s22, 0
        // Predicated region
        $region78: #{upsampling_agg_block.2} parent=72 // pred_check
          %p346 = pneg %p345
        $region79: #{upsampling_agg_block.2} parent=72 // pred_check_branch
          %348 = sbr.rel (%p346) target = $region81
        $region80: #{upsampling_agg_block.2} parent=72 // pred_region
          %vm349 = vcmask 7168
          %350 = vst.msk [vmem:[#allocation2] sm:$0xff] %vm349, -inf
          %351 = vst.msk [vmem:[#allocation2 + $0x8] sm:$0xff] %vm349, -inf
          %352 = vst.msk [vmem:[#allocation2 + $0x10] sm:$0xff] %vm349, -inf
          %353 = vst.msk [vmem:[#allocation2 + $0x18] sm:$0xff] %vm349, -inf
          %354 = vst.msk [vmem:[#allocation2 + $0x20] sm:$0xff] %vm349, -inf
          %355 = vst.msk [vmem:[#allocation2 + $0x28] sm:$0xff] %vm349, -inf
          %356 = vst.msk [vmem:[#allocation2 + $0x30] sm:$0xff] %vm349, -inf
          %357 = vst.msk [vmem:[#allocation2 + $0x38] sm:$0xff] %vm349, -inf
          %358 = vst.msk [vmem:[#allocation2 + $0x40] sm:$0xff] %vm349, -inf
          %359 = vst.msk [vmem:[#allocation2 + $0x48] sm:$0xff] %vm349, -inf
          %360 = vst.msk [vmem:[#allocation2 + $0x50] sm:$0xff] %vm349, -inf
          %361 = vst.msk [vmem:[#allocation2 + $0x58] sm:$0xff] %vm349, -inf
          %362 = vst.msk [vmem:[#allocation2 + $0x60] sm:$0xff] %vm349, -inf
          %363 = vst.msk [vmem:[#allocation2 + $0x68] sm:$0xff] %vm349, -inf
          %364 = vst.msk [vmem:[#allocation2 + $0x70] sm:$0xff] %vm349, -inf
          %365 = vst.msk [vmem:[#allocation2 + $0x78] sm:$0xff] %vm349, -inf
          %366 = vst.msk [vmem:[#allocation2 + $0x80] sm:$0xff] %vm349, -inf
          %367 = vst.msk [vmem:[#allocation2 + $0x88] sm:$0xff] %vm349, -inf
          %368 = vst.msk [vmem:[#allocation2 + $0x90] sm:$0xff] %vm349, -inf
          %369 = vst.msk [vmem:[#allocation2 + $0x98] sm:$0xff] %vm349, -inf
          %370 = vst.msk [vmem:[#allocation2 + $0xa0] sm:$0xff] %vm349, -inf
          %371 = vst.msk [vmem:[#allocation2 + $0xa8] sm:$0xff] %vm349, -inf
          %372 = vst.msk [vmem:[#allocation2 + $0xb0] sm:$0xff] %vm349, -inf
          %373 = vst.msk [vmem:[#allocation2 + $0xb8] sm:$0xff] %vm349, -inf
          %374 = vst.msk [vmem:[#allocation2 + $0xc0] sm:$0xff] %vm349, -inf
          %375 = vst.msk [vmem:[#allocation2 + $0xc8] sm:$0xff] %vm349, -inf
          %376 = vst.msk [vmem:[#allocation2 + $0xd0] sm:$0xff] %vm349, -inf
          %377 = vst.msk [vmem:[#allocation2 + $0xd8] sm:$0xff] %vm349, -inf
          %378 = vst.msk [vmem:[#allocation2 + $0xe0] sm:$0xff] %vm349, -inf
          %379 = vst.msk [vmem:[#allocation2 + $0xe8] sm:$0xff] %vm349, -inf
          %380 = vst.msk [vmem:[#allocation2 + $0xf0] sm:$0xff] %vm349, -inf
          %381 = vst.msk [vmem:[#allocation2 + $0xf8] sm:$0xff] %vm349, -inf
          %382 = vst.msk [vmem:[#allocation3] sm:$0xff] %vm349, 0.0
          %383 = vst.msk [vmem:[#allocation3 + $0x8] sm:$0xff] %vm349, 0.0
          %384 = vst.msk [vmem:[#allocation3 + $0x10] sm:$0xff] %vm349, 0.0
          %385 = vst.msk [vmem:[#allocation3 + $0x18] sm:$0xff] %vm349, 0.0
          %386 = vst.msk [vmem:[#allocation3 + $0x20] sm:$0xff] %vm349, 0.0
          %387 = vst.msk [vmem:[#allocation3 + $0x28] sm:$0xff] %vm349, 0.0
          %388 = vst.msk [vmem:[#allocation3 + $0x30] sm:$0xff] %vm349, 0.0
          %389 = vst.msk [vmem:[#allocation3 + $0x38] sm:$0xff] %vm349, 0.0
          %390 = vst.msk [vmem:[#allocation3 + $0x40] sm:$0xff] %vm349, 0.0
          %391 = vst.msk [vmem:[#allocation3 + $0x48] sm:$0xff] %vm349, 0.0
          %392 = vst.msk [vmem:[#allocation3 + $0x50] sm:$0xff] %vm349, 0.0
          %393 = vst.msk [vmem:[#allocation3 + $0x58] sm:$0xff] %vm349, 0.0
          %394 = vst.msk [vmem:[#allocation3 + $0x60] sm:$0xff] %vm349, 0.0
          %395 = vst.msk [vmem:[#allocation3 + $0x68] sm:$0xff] %vm349, 0.0
          %396 = vst.msk [vmem:[#allocation3 + $0x70] sm:$0xff] %vm349, 0.0
          %397 = vst.msk [vmem:[#allocation3 + $0x78] sm:$0xff] %vm349, 0.0
          %398 = vst.msk [vmem:[#allocation3 + $0x80] sm:$0xff] %vm349, 0.0
          %399 = vst.msk [vmem:[#allocation3 + $0x88] sm:$0xff] %vm349, 0.0
          %400 = vst.msk [vmem:[#allocation3 + $0x90] sm:$0xff] %vm349, 0.0
          %401 = vst.msk [vmem:[#allocation3 + $0x98] sm:$0xff] %vm349, 0.0
          %402 = vst.msk [vmem:[#allocation3 + $0xa0] sm:$0xff] %vm349, 0.0
          %403 = vst.msk [vmem:[#allocation3 + $0xa8] sm:$0xff] %vm349, 0.0
          %404 = vst.msk [vmem:[#allocation3 + $0xb0] sm:$0xff] %vm349, 0.0
          %405 = vst.msk [vmem:[#allocation3 + $0xb8] sm:$0xff] %vm349, 0.0
          %406 = vst.msk [vmem:[#allocation3 + $0xc0] sm:$0xff] %vm349, 0.0
          %407 = vst.msk [vmem:[#allocation3 + $0xc8] sm:$0xff] %vm349, 0.0
          %408 = vst.msk [vmem:[#allocation3 + $0xd0] sm:$0xff] %vm349, 0.0
          %409 = vst.msk [vmem:[#allocation3 + $0xd8] sm:$0xff] %vm349, 0.0
          %410 = vst.msk [vmem:[#allocation3 + $0xe0] sm:$0xff] %vm349, 0.0
          %411 = vst.msk [vmem:[#allocation3 + $0xe8] sm:$0xff] %vm349, 0.0
          %412 = vst.msk [vmem:[#allocation3 + $0xf0] sm:$0xff] %vm349, 0.0
          %413 = vst.msk [vmem:[#allocation3 + $0xf8] sm:$0xff] %vm349, 0.0
          %vm414 = vcmask 64512
          %415 = vst.msk [vmem:[#allocation4] sm:$0xff] %vm414, 0.0
          %416 = vst.msk [vmem:[#allocation4 + $0x8] sm:$0xff] %vm414, 0.0
          %417 = vst.msk [vmem:[#allocation4 + $0x10] sm:$0xff] %vm414, 0.0
          %418 = vst.msk [vmem:[#allocation4 + $0x18] sm:$0xff] %vm414, 0.0
          %419 = vst.msk [vmem:[#allocation4 + $0x20] sm:$0xff] %vm414, 0.0
          %420 = vst.msk [vmem:[#allocation4 + $0x28] sm:$0xff] %vm414, 0.0
          %421 = vst.msk [vmem:[#allocation4 + $0x30] sm:$0xff] %vm414, 0.0
          %422 = vst.msk [vmem:[#allocation4 + $0x38] sm:$0xff] %vm414, 0.0
          %423 = vst.msk [vmem:[#allocation4 + $0x40] sm:$0xff] %vm414, 0.0
          %424 = vst.msk [vmem:[#allocation4 + $0x48] sm:$0xff] %vm414, 0.0
          %425 = vst.msk [vmem:[#allocation4 + $0x50] sm:$0xff] %vm414, 0.0
          %426 = vst.msk [vmem:[#allocation4 + $0x58] sm:$0xff] %vm414, 0.0
          %427 = vst.msk [vmem:[#allocation4 + $0x60] sm:$0xff] %vm414, 0.0
          %428 = vst.msk [vmem:[#allocation4 + $0x68] sm:$0xff] %vm414, 0.0
          %429 = vst.msk [vmem:[#allocation4 + $0x70] sm:$0xff] %vm414, 0.0
          %430 = vst.msk [vmem:[#allocation4 + $0x78] sm:$0xff] %vm414, 0.0
          %431 = vst.msk [vmem:[#allocation4 + $0x80] sm:$0xff] %vm414, 0.0
          %432 = vst.msk [vmem:[#allocation4 + $0x88] sm:$0xff] %vm414, 0.0
          %433 = vst.msk [vmem:[#allocation4 + $0x90] sm:$0xff] %vm414, 0.0
          %434 = vst.msk [vmem:[#allocation4 + $0x98] sm:$0xff] %vm414, 0.0
          %435 = vst.msk [vmem:[#allocation4 + $0xa0] sm:$0xff] %vm414, 0.0
          %436 = vst.msk [vmem:[#allocation4 + $0xa8] sm:$0xff] %vm414, 0.0
          %437 = vst.msk [vmem:[#allocation4 + $0xb0] sm:$0xff] %vm414, 0.0
          %438 = vst.msk [vmem:[#allocation4 + $0xb8] sm:$0xff] %vm414, 0.0
          %439 = vst.msk [vmem:[#allocation4 + $0xc0] sm:$0xff] %vm414, 0.0
          %440 = vst.msk [vmem:[#allocation4 + $0xc8] sm:$0xff] %vm414, 0.0
          %441 = vst.msk [vmem:[#allocation4 + $0xd0] sm:$0xff] %vm414, 0.0
          %442 = vst.msk [vmem:[#allocation4 + $0xd8] sm:$0xff] %vm414, 0.0
          %443 = vst.msk [vmem:[#allocation4 + $0xe0] sm:$0xff] %vm414, 0.0
          %444 = vst.msk [vmem:[#allocation4 + $0xe8] sm:$0xff] %vm414, 0.0
          %445 = vst.msk [vmem:[#allocation4 + $0xf0] sm:$0xff] %vm414, 0.0
          %446 = vst.msk [vmem:[#allocation4 + $0xf8] sm:$0xff] %vm414, 0.0
        $region81: #{upsampling_agg_block.2} parent=72 // pred_fallthru
          _
        %v447 = vld [vmem:[%s324] sm:$0xff]
        %v448 = vld [vmem:[%s333] sm:$0xf]
        %v449 = vld [vmem:[%s272] sm:$0xf]
        %v450 = vld [vmem:[%s272 + $0x4] sm:$0x1]
        %v452 = vunpack.c.l.b16 %v447
        %v453 = vunpack.c.h.b16 %v447
        %v454 = vpack.c.b16 %v452, %v452
        %v455 = vpack.c.b16 %v453, %v453
        %458 = vxpose.xlu0.c.b16.start [1/8] %v454, 128
        %459 = vxpose.xlu0.c.b16.cont [2/8] 0, 128
        %460 = vxpose.xlu0.c.b16.cont [3/8] 0, 128
        %461 = vxpose.xlu0.c.b16.cont [4/8] 0, 128
        %462 = vxpose.xlu0.c.b16.cont [5/8] 0, 128
        %463 = vxpose.xlu0.c.b16.cont [6/8] 0, 128
        %464 = vxpose.xlu0.c.b16.cont [7/8] 0, 128
        %465 = vxpose.xlu0.c.b16.end [8/8] 0, 128
        %v466 = vpop.trf.xlu0
        %v467 = vpop.trf.xlu0
        %v468 = vpop.trf.xlu0
        %v469 = vpop.trf.xlu0
        %v470 = vpop.trf.xlu0
        %v471 = vpop.trf.xlu0
        %v472 = vpop.trf.xlu0
        %v473 = vpop.trf.xlu0
        %474 = vxpose.xlu0.c.b16.start [1/8] %v455, 128
        %475 = vxpose.xlu0.c.b16.cont [2/8] 0, 128
        %476 = vxpose.xlu0.c.b16.cont [3/8] 0, 128
        %477 = vxpose.xlu0.c.b16.cont [4/8] 0, 128
        %478 = vxpose.xlu0.c.b16.cont [5/8] 0, 128
        %479 = vxpose.xlu0.c.b16.cont [6/8] 0, 128
        %480 = vxpose.xlu0.c.b16.cont [7/8] 0, 128
        %481 = vxpose.xlu0.c.b16.end [8/8] 0, 128
        %v482 = vpop.trf.xlu0
        %v483 = vpop.trf.xlu0
        %v484 = vpop.trf.xlu0
        %v485 = vpop.trf.xlu0
        %v486 = vpop.trf.xlu0
        %v487 = vpop.trf.xlu0
        %v488 = vpop.trf.xlu0
        %v489 = vpop.trf.xlu0
        %vm490 = vcmask 64512
        %v492 = vsel %vm490, %v466, 0
        %v495 = vsel %vm490, %v467, 0
        %v498 = vsel %vm490, %v468, 0
        %v501 = vsel %vm490, %v469, 0
        %v504 = vsel %vm490, %v470, 0
        %v507 = vsel %vm490, %v471, 0
        %v510 = vsel %vm490, %v472, 0
        %v513 = vsel %vm490, %v473, 0
        %v516 = vsel %vm490, %v482, 0
        %v519 = vsel %vm490, %v483, 0
        %v522 = vsel %vm490, %v484, 0
        %v525 = vsel %vm490, %v485, 0
        %v528 = vsel %vm490, %v486, 0
        %v531 = vsel %vm490, %v487, 0
        %v534 = vsel %vm490, %v488, 0
        %v537 = vsel %vm490, %v489, 0
        %vm539 = vcmask 1043456
        %v541 = vsel %vm539, %v448, 0
        %543 = vmatprep.subr.bf16.mxu0 0
        %544 = vmatpush1.bf16.msra.mxu0 %v541
        %545 = vmatprep.subr.bf16.mxu0 0
        %546 = vmatpush1.bf16.msra.mxu0 0
        %547 = vmatprep.subr.bf16.mxu0 0
        %548 = vmatpush1.bf16.msra.mxu0 0
        %549 = vmatprep.subr.bf16.mxu0 0
        %550 = vmatpush1.bf16.msra.mxu0 0
        %551 = vmatprep.subr.bf16.mxu0 0
        %552 = vmatpush1.bf16.msra.mxu0 0
        %553 = vmatprep.subr.bf16.mxu0 0
        %554 = vmatpush1.bf16.msra.mxu0 0
        %555 = vmatprep.subr.bf16.mxu0 0
        %556 = vmatpush1.bf16.msra.mxu0 0
        %557 = vmatprep.subr.bf16.mxu0 0
        %558 = vmatpush1.bf16.msra.mxu0 0
        %559 = vmatprep.subr.bf16.mxu0 0
        %560 = vmatpush1.bf16.msra.mxu0 0
        %561 = vmatprep.subr.bf16.mxu0 0
        %562 = vmatpush1.bf16.msra.mxu0 0
        %563 = vmatprep.subr.bf16.mxu0 0
        %564 = vmatpush1.bf16.msra.mxu0 0
        %565 = vmatprep.subr.bf16.mxu0 0
        %566 = vmatpush1.bf16.msra.mxu0 0
        %567 = vmatprep.subr.bf16.mxu0 0
        %568 = vmatpush1.bf16.msra.mxu0 0
        %569 = vmatprep.subr.bf16.mxu0 0
        %570 = vmatpush1.bf16.msra.mxu0 0
        %571 = vmatprep.subr.bf16.mxu0 0
        %572 = vmatpush1.bf16.msra.mxu0 0
        %573 = vmatprep.subr.bf16.mxu0 0
        %574 = vmatpush1.bf16.msra.mxu0 0
        %575 = vmatprep.mubr.bf16.mxu0 0
        %576 = vmatmul.mubr.bf16.gmra.mrb[0].mxu0 %v492
        %v577 = vpop.f32.mrb[0].mxu0
        %v578 = vadd.f32 0.0, %v577
        %v579 = vpop.f32.mrb[0].mxu0
        %v580 = vpop.f32.mrb[0].mxu0
        %v581 = vadd.f32 0.0, %v580
        %v582 = vpop.f32.mrb[0].mxu0
        %583 = vmatprep.mubr.bf16.mxu0 0
        %584 = vmatmul.mubr.bf16.gmra.mrb[0].mxu0 %v495
        %v585 = vpop.f32.mrb[0].mxu0
        %v586 = vadd.f32 0.0, %v585
        %v587 = vpop.f32.mrb[0].mxu0
        %v588 = vpop.f32.mrb[0].mxu0
        %v589 = vadd.f32 0.0, %v588
        %v590 = vpop.f32.mrb[0].mxu0
        %591 = vmatprep.mubr.bf16.mxu0 0
        %592 = vmatmul.mubr.bf16.gmra.mrb[0].mxu0 %v498
        %v593 = vpop.f32.mrb[0].mxu0
        %v594 = vadd.f32 0.0, %v593
        %v595 = vpop.f32.mrb[0].mxu0
        %v596 = vpop.f32.mrb[0].mxu0
        %v597 = vadd.f32 0.0, %v596
        %v598 = vpop.f32.mrb[0].mxu0
        %599 = vmatprep.mubr.bf16.mxu0 0
        %600 = vmatmul.mubr.bf16.gmra.mrb[0].mxu0 %v501
        %v601 = vpop.f32.mrb[0].mxu0
        %v602 = vadd.f32 0.0, %v601
        %v603 = vpop.f32.mrb[0].mxu0
        %v604 = vpop.f32.mrb[0].mxu0
        %v605 = vadd.f32 0.0, %v604
        %v606 = vpop.f32.mrb[0].mxu0
        %607 = vmatprep.mubr.bf16.mxu0 0
        %608 = vmatmul.mubr.bf16.gmra.mrb[0].mxu0 %v504
        %v609 = vpop.f32.mrb[0].mxu0
        %v610 = vadd.f32 0.0, %v609
        %v611 = vpop.f32.mrb[0].mxu0
        %v612 = vpop.f32.mrb[0].mxu0
        %v613 = vadd.f32 0.0, %v612
        %v614 = vpop.f32.mrb[0].mxu0
        %615 = vmatprep.mubr.bf16.mxu0 0
        %616 = vmatmul.mubr.bf16.gmra.mrb[0].mxu0 %v507
        %v617 = vpop.f32.mrb[0].mxu0
        %v618 = vadd.f32 0.0, %v617
        %v619 = vpop.f32.mrb[0].mxu0
        %v620 = vpop.f32.mrb[0].mxu0
        %v621 = vadd.f32 0.0, %v620
        %v622 = vpop.f32.mrb[0].mxu0
        %623 = vmatprep.mubr.bf16.mxu0 0
        %624 = vmatmul.mubr.bf16.gmra.mrb[0].mxu0 %v510
        %v625 = vpop.f32.mrb[0].mxu0
        %v626 = vadd.f32 0.0, %v625
        %v627 = vpop.f32.mrb[0].mxu0
        %v628 = vpop.f32.mrb[0].mxu0
        %v629 = vadd.f32 0.0, %v628
        %v630 = vpop.f32.mrb[0].mxu0
        %631 = vmatprep.mubr.bf16.mxu0 0
        %632 = vmatmul.mubr.bf16.gmra.mrb[0].mxu0 %v513
        %v633 = vpop.f32.mrb[0].mxu0
        %v634 = vadd.f32 0.0, %v633
        %v635 = vpop.f32.mrb[0].mxu0
        %v636 = vpop.f32.mrb[0].mxu0
        %v637 = vadd.f32 0.0, %v636
        %v638 = vpop.f32.mrb[0].mxu0
        %639 = vmatprep.mubr.bf16.mxu0 0
        %640 = vmatmul.mubr.bf16.gmra.mrb[0].mxu0 %v516
        %v641 = vpop.f32.mrb[0].mxu0
        %v642 = vadd.f32 0.0, %v641
        %v643 = vpop.f32.mrb[0].mxu0
        %v644 = vpop.f32.mrb[0].mxu0
        %v645 = vadd.f32 0.0, %v644
        %v646 = vpop.f32.mrb[0].mxu0
        %647 = vmatprep.mubr.bf16.mxu0 0
        %648 = vmatmul.mubr.bf16.gmra.mrb[0].mxu0 %v519
        %v649 = vpop.f32.mrb[0].mxu0
        %v650 = vadd.f32 0.0, %v649
        %v651 = vpop.f32.mrb[0].mxu0
        %v652 = vpop.f32.mrb[0].mxu0
        %v653 = vadd.f32 0.0, %v652
        %v654 = vpop.f32.mrb[0].mxu0
        %655 = vmatprep.mubr.bf16.mxu0 0
        %656 = vmatmul.mubr.bf16.gmra.mrb[0].mxu0 %v522
        %v657 = vpop.f32.mrb[0].mxu0
        %v658 = vadd.f32 0.0, %v657
        %v659 = vpop.f32.mrb[0].mxu0
        %v660 = vpop.f32.mrb[0].mxu0
        %v661 = vadd.f32 0.0, %v660
        %v662 = vpop.f32.mrb[0].mxu0
        %663 = vmatprep.mubr.bf16.mxu0 0
        %664 = vmatmul.mubr.bf16.gmra.mrb[0].mxu0 %v525
        %v665 = vpop.f32.mrb[0].mxu0
        %v666 = vadd.f32 0.0, %v665
        %v667 = vpop.f32.mrb[0].mxu0
        %v668 = vpop.f32.mrb[0].mxu0
        %v669 = vadd.f32 0.0, %v668
        %v670 = vpop.f32.mrb[0].mxu0
        %671 = vmatprep.mubr.bf16.mxu0 0
        %672 = vmatmul.mubr.bf16.gmra.mrb[0].mxu0 %v528
        %v673 = vpop.f32.mrb[0].mxu0
        %v674 = vadd.f32 0.0, %v673
        %v675 = vpop.f32.mrb[0].mxu0
        %v676 = vpop.f32.mrb[0].mxu0
        %v677 = vadd.f32 0.0, %v676
        %v678 = vpop.f32.mrb[0].mxu0
        %679 = vmatprep.mubr.bf16.mxu0 0
        %680 = vmatmul.mubr.bf16.gmra.mrb[0].mxu0 %v531
        %v681 = vpop.f32.mrb[0].mxu0
        %v682 = vadd.f32 0.0, %v681
        %v683 = vpop.f32.mrb[0].mxu0
        %v684 = vpop.f32.mrb[0].mxu0
        %v685 = vadd.f32 0.0, %v684
        %v686 = vpop.f32.mrb[0].mxu0
        %687 = vmatprep.mubr.bf16.mxu0 0
        %688 = vmatmul.mubr.bf16.gmra.mrb[0].mxu0 %v534
        %v689 = vpop.f32.mrb[0].mxu0
        %v690 = vadd.f32 0.0, %v689
        %v691 = vpop.f32.mrb[0].mxu0
        %v692 = vpop.f32.mrb[0].mxu0
        %v693 = vadd.f32 0.0, %v692
        %v694 = vpop.f32.mrb[0].mxu0
        %695 = vmatprep.mubr.bf16.mxu0 0
        %696 = vmatmul.mubr.bf16.gmra.mrb[0].mxu0 %v537
        %v697 = vpop.f32.mrb[0].mxu0
        %v698 = vadd.f32 0.0, %v697
        %v699 = vpop.f32.mrb[0].mxu0
        %v700 = vpop.f32.mrb[0].mxu0
        %v701 = vadd.f32 0.0, %v700
        %v702 = vpop.f32.mrb[0].mxu0
        %703 = vdwg.mxu0
        %v704 = vld [vmem:[#allocation2] sm:$0xff]
        %v705 = vld [vmem:[#allocation2 + $0x8] sm:$0xff]
        %v706 = vld [vmem:[#allocation2 + $0x10] sm:$0xff]
        %v707 = vld [vmem:[#allocation2 + $0x18] sm:$0xff]
        %v708 = vld [vmem:[#allocation2 + $0x20] sm:$0xff]
        %v709 = vld [vmem:[#allocation2 + $0x28] sm:$0xff]
        %v710 = vld [vmem:[#allocation2 + $0x30] sm:$0xff]
        %v711 = vld [vmem:[#allocation2 + $0x38] sm:$0xff]
        %v712 = vld [vmem:[#allocation2 + $0x40] sm:$0xff]
        %v713 = vld [vmem:[#allocation2 + $0x48] sm:$0xff]
        %v714 = vld [vmem:[#allocation2 + $0x50] sm:$0xff]
        %v715 = vld [vmem:[#allocation2 + $0x58] sm:$0xff]
        %v716 = vld [vmem:[#allocation2 + $0x60] sm:$0xff]
        %v717 = vld [vmem:[#allocation2 + $0x68] sm:$0xff]
        %v718 = vld [vmem:[#allocation2 + $0x70] sm:$0xff]
        %v719 = vld [vmem:[#allocation2 + $0x78] sm:$0xff]
        %v720 = vld [vmem:[#allocation2 + $0x80] sm:$0xff]
        %v721 = vld [vmem:[#allocation2 + $0x88] sm:$0xff]
        %v722 = vld [vmem:[#allocation2 + $0x90] sm:$0xff]
        %v723 = vld [vmem:[#allocation2 + $0x98] sm:$0xff]
        %v724 = vld [vmem:[#allocation2 + $0xa0] sm:$0xff]
        %v725 = vld [vmem:[#allocation2 + $0xa8] sm:$0xff]
        %v726 = vld [vmem:[#allocation2 + $0xb0] sm:$0xff]
        %v727 = vld [vmem:[#allocation2 + $0xb8] sm:$0xff]
        %v728 = vld [vmem:[#allocation2 + $0xc0] sm:$0xff]
        %v729 = vld [vmem:[#allocation2 + $0xc8] sm:$0xff]
        %v730 = vld [vmem:[#allocation2 + $0xd0] sm:$0xff]
        %v731 = vld [vmem:[#allocation2 + $0xd8] sm:$0xff]
        %v732 = vld [vmem:[#allocation2 + $0xe0] sm:$0xff]
        %v733 = vld [vmem:[#allocation2 + $0xe8] sm:$0xff]
        %v734 = vld [vmem:[#allocation2 + $0xf0] sm:$0xff]
        %v735 = vld [vmem:[#allocation2 + $0xf8] sm:$0xff]
        %736 = vmax.xlane.f32.xlu0 %v578
        %v737 = vpop.xlane.xlu0 %736
        %738 = vmax.xlane.f32.xlu0 %v581
        %v739 = vpop.xlane.xlu0 %738
        %740 = vmax.xlane.f32.xlu0 %v586
        %v741 = vpop.xlane.xlu0 %740
        %742 = vmax.xlane.f32.xlu0 %v589
        %v743 = vpop.xlane.xlu0 %742
        %744 = vmax.xlane.f32.xlu0 %v594
        %v745 = vpop.xlane.xlu0 %744
        %746 = vmax.xlane.f32.xlu0 %v597
        %v747 = vpop.xlane.xlu0 %746
        %748 = vmax.xlane.f32.xlu0 %v602
        %v749 = vpop.xlane.xlu0 %748
        %750 = vmax.xlane.f32.xlu0 %v605
        %v751 = vpop.xlane.xlu0 %750
        %752 = vmax.xlane.f32.xlu0 %v610
        %v753 = vpop.xlane.xlu0 %752
        %754 = vmax.xlane.f32.xlu0 %v613
        %v755 = vpop.xlane.xlu0 %754
        %756 = vmax.xlane.f32.xlu0 %v618
        %v757 = vpop.xlane.xlu0 %756
        %758 = vmax.xlane.f32.xlu0 %v621
        %v759 = vpop.xlane.xlu0 %758
        %760 = vmax.xlane.f32.xlu0 %v626
        %v761 = vpop.xlane.xlu0 %760
        %762 = vmax.xlane.f32.xlu0 %v629
        %v763 = vpop.xlane.xlu0 %762
        %764 = vmax.xlane.f32.xlu0 %v634
        %v765 = vpop.xlane.xlu0 %764
        %766 = vmax.xlane.f32.xlu0 %v637
        %v767 = vpop.xlane.xlu0 %766
        %768 = vmax.xlane.f32.xlu0 %v642
        %v769 = vpop.xlane.xlu0 %768
        %770 = vmax.xlane.f32.xlu0 %v645
        %v771 = vpop.xlane.xlu0 %770
        %772 = vmax.xlane.f32.xlu0 %v650
        %v773 = vpop.xlane.xlu0 %772
        %774 = vmax.xlane.f32.xlu0 %v653
        %v775 = vpop.xlane.xlu0 %774
        %776 = vmax.xlane.f32.xlu0 %v658
        %v777 = vpop.xlane.xlu0 %776
        %778 = vmax.xlane.f32.xlu0 %v661
        %v779 = vpop.xlane.xlu0 %778
        %780 = vmax.xlane.f32.xlu0 %v666
        %v781 = vpop.xlane.xlu0 %780
        %782 = vmax.xlane.f32.xlu0 %v669
        %v783 = vpop.xlane.xlu0 %782
        %784 = vmax.xlane.f32.xlu0 %v674
        %v785 = vpop.xlane.xlu0 %784
        %786 = vmax.xlane.f32.xlu0 %v677
        %v787 = vpop.xlane.xlu0 %786
        %788 = vmax.xlane.f32.xlu0 %v682
        %v789 = vpop.xlane.xlu0 %788
        %790 = vmax.xlane.f32.xlu0 %v685
        %v791 = vpop.xlane.xlu0 %790
        %792 = vmax.xlane.f32.xlu0 %v690
        %v793 = vpop.xlane.xlu0 %792
        %794 = vmax.xlane.f32.xlu0 %v693
        %v795 = vpop.xlane.xlu0 %794
        %796 = vmax.xlane.f32.xlu0 %v698
        %v797 = vpop.xlane.xlu0 %796
        %798 = vmax.xlane.f32.xlu0 %v701
        %v799 = vpop.xlane.xlu0 %798
        %v800 = vmax.f32 %v704, %v737
        %v801 = vmax.f32 %v705, %v739
        %v802 = vmax.f32 %v706, %v741
        %v803 = vmax.f32 %v707, %v743
        %v804 = vmax.f32 %v708, %v745
        %v805 = vmax.f32 %v709, %v747
        %v806 = vmax.f32 %v710, %v749
        %v807 = vmax.f32 %v711, %v751
        %v808 = vmax.f32 %v712, %v753
        %v809 = vmax.f32 %v713, %v755
        %v810 = vmax.f32 %v714, %v757
        %v811 = vmax.f32 %v715, %v759
        %v812 = vmax.f32 %v716, %v761
        %v813 = vmax.f32 %v717, %v763
        %v814 = vmax.f32 %v718, %v765
        %v815 = vmax.f32 %v719, %v767
        %v816 = vmax.f32 %v720, %v769
        %v817 = vmax.f32 %v721, %v771
        %v818 = vmax.f32 %v722, %v773
        %v819 = vmax.f32 %v723, %v775
        %v820 = vmax.f32 %v724, %v777
        %v821 = vmax.f32 %v725, %v779
        %v822 = vmax.f32 %v726, %v781
        %v823 = vmax.f32 %v727, %v783
        %v824 = vmax.f32 %v728, %v785
        %v825 = vmax.f32 %v729, %v787
        %v826 = vmax.f32 %v730, %v789
        %v827 = vmax.f32 %v731, %v791
        %v828 = vmax.f32 %v732, %v793
        %v829 = vmax.f32 %v733, %v795
        %v830 = vmax.f32 %v734, %v797
        %v831 = vmax.f32 %v735, %v799
        %v832 = vsub.f32 %v704, %v800
        %v833 = vsub.f32 %v705, %v801
        %v834 = vsub.f32 %v706, %v802
        %v835 = vsub.f32 %v707, %v803
        %v836 = vsub.f32 %v708, %v804
        %v837 = vsub.f32 %v709, %v805
        %v838 = vsub.f32 %v710, %v806
        %v839 = vsub.f32 %v711, %v807
        %v840 = vsub.f32 %v712, %v808
        %v841 = vsub.f32 %v713, %v809
        %v842 = vsub.f32 %v714, %v810
        %v843 = vsub.f32 %v715, %v811
        %v844 = vsub.f32 %v716, %v812
        %v845 = vsub.f32 %v717, %v813
        %v846 = vsub.f32 %v718, %v814
        %v847 = vsub.f32 %v719, %v815
        %v848 = vsub.f32 %v720, %v816
        %v849 = vsub.f32 %v721, %v817
        %v850 = vsub.f32 %v722, %v818
        %v851 = vsub.f32 %v723, %v819
        %v852 = vsub.f32 %v724, %v820
        %v853 = vsub.f32 %v725, %v821
        %v854 = vsub.f32 %v726, %v822
        %v855 = vsub.f32 %v727, %v823
        %v856 = vsub.f32 %v728, %v824
        %v857 = vsub.f32 %v729, %v825
        %v858 = vsub.f32 %v730, %v826
        %v859 = vsub.f32 %v731, %v827
        %v860 = vsub.f32 %v732, %v828
        %v861 = vsub.f32 %v733, %v829
        %v862 = vsub.f32 %v734, %v830
        %v863 = vsub.f32 %v735, %v831
        %v864 = vmul.f32 %v832, 1.442695
        %v865 = vpow.pop %v864
        %v866 = vmul.f32 %v833, 1.442695
        %v867 = vpow.pop %v866
        %v868 = vmul.f32 %v834, 1.442695
        %v869 = vpow.pop %v868
        %v870 = vmul.f32 %v835, 1.442695
        %v871 = vpow.pop %v870
        %v872 = vmul.f32 %v836, 1.442695
        %v873 = vpow.pop %v872
        %v874 = vmul.f32 %v837, 1.442695
        %v875 = vpow.pop %v874
        %v876 = vmul.f32 %v838, 1.442695
        %v877 = vpow.pop %v876
        %v878 = vmul.f32 %v839, 1.442695
        %v879 = vpow.pop %v878
        %v880 = vmul.f32 %v840, 1.442695
        %v881 = vpow.pop %v880
        %v882 = vmul.f32 %v841, 1.442695
        %v883 = vpow.pop %v882
        %v884 = vmul.f32 %v842, 1.442695
        %v885 = vpow.pop %v884
        %v886 = vmul.f32 %v843, 1.442695
        %v887 = vpow.pop %v886
        %v888 = vmul.f32 %v844, 1.442695
        %v889 = vpow.pop %v888
        %v890 = vmul.f32 %v845, 1.442695
        %v891 = vpow.pop %v890
        %v892 = vmul.f32 %v846, 1.442695
        %v893 = vpow.pop %v892
        %v894 = vmul.f32 %v847, 1.442695
        %v895 = vpow.pop %v894
        %v896 = vmul.f32 %v848, 1.442695
        %v897 = vpow.pop %v896
        %v898 = vmul.f32 %v849, 1.442695
        %v899 = vpow.pop %v898
        %v900 = vmul.f32 %v850, 1.442695
        %v901 = vpow.pop %v900
        %v902 = vmul.f32 %v851, 1.442695
        %v903 = vpow.pop %v902
        %v904 = vmul.f32 %v852, 1.442695
        %v905 = vpow.pop %v904
        %v906 = vmul.f32 %v853, 1.442695
        %v907 = vpow.pop %v906
        %v908 = vmul.f32 %v854, 1.442695
        %v909 = vpow.pop %v908
        %v910 = vmul.f32 %v855, 1.442695
        %v911 = vpow.pop %v910
        %v912 = vmul.f32 %v856, 1.442695
        %v913 = vpow.pop %v912
        %v914 = vmul.f32 %v857, 1.442695
        %v915 = vpow.pop %v914
        %v916 = vmul.f32 %v858, 1.442695
        %v917 = vpow.pop %v916
        %v918 = vmul.f32 %v859, 1.442695
        %v919 = vpow.pop %v918
        %v920 = vmul.f32 %v860, 1.442695
        %v921 = vpow.pop %v920
        %v922 = vmul.f32 %v861, 1.442695
        %v923 = vpow.pop %v922
        %v924 = vmul.f32 %v862, 1.442695
        %v925 = vpow.pop %v924
        %v926 = vmul.f32 %v863, 1.442695
        %v927 = vpow.pop %v926
        %929 = vset.pattern.permute.xlu0 0
        %930 = vperm.xlu0 %929, %v800
        %v931 = vpop.permute.xlu0 %930
        %934 = vset.pattern.permute.xlu0 0
        %935 = vperm.xlu0 %934, %v801
        %v936 = vpop.permute.xlu0 %935
        %939 = vset.pattern.permute.xlu0 0
        %940 = vperm.xlu0 %939, %v802
        %v941 = vpop.permute.xlu0 %940
        %944 = vset.pattern.permute.xlu0 0
        %945 = vperm.xlu0 %944, %v803
        %v946 = vpop.permute.xlu0 %945
        %949 = vset.pattern.permute.xlu0 0
        %950 = vperm.xlu0 %949, %v804
        %v951 = vpop.permute.xlu0 %950
        %954 = vset.pattern.permute.xlu0 0
        %955 = vperm.xlu0 %954, %v805
        %v956 = vpop.permute.xlu0 %955
        %959 = vset.pattern.permute.xlu0 0
        %960 = vperm.xlu0 %959, %v806
        %v961 = vpop.permute.xlu0 %960
        %964 = vset.pattern.permute.xlu0 0
        %965 = vperm.xlu0 %964, %v807
        %v966 = vpop.permute.xlu0 %965
        %969 = vset.pattern.permute.xlu0 0
        %970 = vperm.xlu0 %969, %v808
        %v971 = vpop.permute.xlu0 %970
        %974 = vset.pattern.permute.xlu0 0
        %975 = vperm.xlu0 %974, %v809
        %v976 = vpop.permute.xlu0 %975
        %979 = vset.pattern.permute.xlu0 0
        %980 = vperm.xlu0 %979, %v810
        %v981 = vpop.permute.xlu0 %980
        %984 = vset.pattern.permute.xlu0 0
        %985 = vperm.xlu0 %984, %v811
        %v986 = vpop.permute.xlu0 %985
        %989 = vset.pattern.permute.xlu0 0
        %990 = vperm.xlu0 %989, %v812
        %v991 = vpop.permute.xlu0 %990
        %994 = vset.pattern.permute.xlu0 0
        %995 = vperm.xlu0 %994, %v813
        %v996 = vpop.permute.xlu0 %995
        %999 = vset.pattern.permute.xlu0 0
        %1000 = vperm.xlu0 %999, %v814
        %v1001 = vpop.permute.xlu0 %1000
        %1004 = vset.pattern.permute.xlu0 0
        %1005 = vperm.xlu0 %1004, %v815
        %v1006 = vpop.permute.xlu0 %1005
        %1009 = vset.pattern.permute.xlu0 0
        %1010 = vperm.xlu0 %1009, %v816
        %v1011 = vpop.permute.xlu0 %1010
        %1014 = vset.pattern.permute.xlu0 0
        %1015 = vperm.xlu0 %1014, %v817
        %v1016 = vpop.permute.xlu0 %1015
        %1019 = vset.pattern.permute.xlu0 0
        %1020 = vperm.xlu0 %1019, %v818
        %v1021 = vpop.permute.xlu0 %1020
        %1024 = vset.pattern.permute.xlu0 0
        %1025 = vperm.xlu0 %1024, %v819
        %v1026 = vpop.permute.xlu0 %1025
        %1029 = vset.pattern.permute.xlu0 0
        %1030 = vperm.xlu0 %1029, %v820
        %v1031 = vpop.permute.xlu0 %1030
        %1034 = vset.pattern.permute.xlu0 0
        %1035 = vperm.xlu0 %1034, %v821
        %v1036 = vpop.permute.xlu0 %1035
        %1039 = vset.pattern.permute.xlu0 0
        %1040 = vperm.xlu0 %1039, %v822
        %v1041 = vpop.permute.xlu0 %1040
        %1044 = vset.pattern.permute.xlu0 0
        %1045 = vperm.xlu0 %1044, %v823
        %v1046 = vpop.permute.xlu0 %1045
        %1049 = vset.pattern.permute.xlu0 0
        %1050 = vperm.xlu0 %1049, %v824
        %v1051 = vpop.permute.xlu0 %1050
        %1054 = vset.pattern.permute.xlu0 0
        %1055 = vperm.xlu0 %1054, %v825
        %v1056 = vpop.permute.xlu0 %1055
        %1059 = vset.pattern.permute.xlu0 0
        %1060 = vperm.xlu0 %1059, %v826
        %v1061 = vpop.permute.xlu0 %1060
        %1064 = vset.pattern.permute.xlu0 0
        %1065 = vperm.xlu0 %1064, %v827
        %v1066 = vpop.permute.xlu0 %1065
        %1069 = vset.pattern.permute.xlu0 0
        %1070 = vperm.xlu0 %1069, %v828
        %v1071 = vpop.permute.xlu0 %1070
        %1074 = vset.pattern.permute.xlu0 0
        %1075 = vperm.xlu0 %1074, %v829
        %v1076 = vpop.permute.xlu0 %1075
        %1079 = vset.pattern.permute.xlu0 0
        %1080 = vperm.xlu0 %1079, %v830
        %v1081 = vpop.permute.xlu0 %1080
        %1084 = vset.pattern.permute.xlu0 0
        %1085 = vperm.xlu0 %1084, %v831
        %v1086 = vpop.permute.xlu0 %1085
        %v1088 = vsub.f32 %v578, %v931
        %v1089 = vsub.f32 %v581, %v936
        %v1090 = vsub.f32 %v586, %v941
        %v1091 = vsub.f32 %v589, %v946
        %v1092 = vsub.f32 %v594, %v951
        %v1093 = vsub.f32 %v597, %v956
        %v1094 = vsub.f32 %v602, %v961
        %v1095 = vsub.f32 %v605, %v966
        %v1096 = vsub.f32 %v610, %v971
        %v1097 = vsub.f32 %v613, %v976
        %v1098 = vsub.f32 %v618, %v981
        %v1099 = vsub.f32 %v621, %v986
        %v1100 = vsub.f32 %v626, %v991
        %v1101 = vsub.f32 %v629, %v996
        %v1102 = vsub.f32 %v634, %v1001
        %v1103 = vsub.f32 %v637, %v1006
        %v1104 = vsub.f32 %v642, %v1011
        %v1105 = vsub.f32 %v645, %v1016
        %v1106 = vsub.f32 %v650, %v1021
        %v1107 = vsub.f32 %v653, %v1026
        %v1108 = vsub.f32 %v658, %v1031
        %v1109 = vsub.f32 %v661, %v1036
        %v1110 = vsub.f32 %v666, %v1041
        %v1111 = vsub.f32 %v669, %v1046
        %v1112 = vsub.f32 %v674, %v1051
        %v1113 = vsub.f32 %v677, %v1056
        %v1114 = vsub.f32 %v682, %v1061
        %v1115 = vsub.f32 %v685, %v1066
        %v1116 = vsub.f32 %v690, %v1071
        %v1117 = vsub.f32 %v693, %v1076
        %v1118 = vsub.f32 %v698, %v1081
        %v1119 = vsub.f32 %v701, %v1086
        %v1120 = vpack.c.bf16 %v1089, %v1088
        %v1121 = vpack.c.bf16 %v1091, %v1090
        %v1122 = vpack.c.bf16 %v1093, %v1092
        %v1123 = vpack.c.bf16 %v1095, %v1094
        %v1124 = vpack.c.bf16 %v1097, %v1096
        %v1125 = vpack.c.bf16 %v1099, %v1098
        %v1126 = vpack.c.bf16 %v1101, %v1100
        %v1127 = vpack.c.bf16 %v1103, %v1102
        %v1128 = vpack.c.bf16 %v1105, %v1104
        %v1129 = vpack.c.bf16 %v1107, %v1106
        %v1130 = vpack.c.bf16 %v1109, %v1108
        %v1131 = vpack.c.bf16 %v1111, %v1110
        %v1132 = vpack.c.bf16 %v1113, %v1112
        %v1133 = vpack.c.bf16 %v1115, %v1114
        %v1134 = vpack.c.bf16 %v1117, %v1116
        %v1135 = vpack.c.bf16 %v1119, %v1118
        %v1137 = vmul.bf16 %v1120, 1069105081
        %v1138 = vpow.bf16.pop %v1137
        %v1140 = vmul.bf16 %v1121, 1069105081
        %v1141 = vpow.bf16.pop %v1140
        %v1143 = vmul.bf16 %v1122, 1069105081
        %v1144 = vpow.bf16.pop %v1143
        %v1146 = vmul.bf16 %v1123, 1069105081
        %v1147 = vpow.bf16.pop %v1146
        %v1149 = vmul.bf16 %v1124, 1069105081
        %v1150 = vpow.bf16.pop %v1149
        %v1152 = vmul.bf16 %v1125, 1069105081
        %v1153 = vpow.bf16.pop %v1152
        %v1155 = vmul.bf16 %v1126, 1069105081
        %v1156 = vpow.bf16.pop %v1155
        %v1158 = vmul.bf16 %v1127, 1069105081
        %v1159 = vpow.bf16.pop %v1158
        %v1161 = vmul.bf16 %v1128, 1069105081
        %v1162 = vpow.bf16.pop %v1161
        %v1164 = vmul.bf16 %v1129, 1069105081
        %v1165 = vpow.bf16.pop %v1164
        %v1167 = vmul.bf16 %v1130, 1069105081
        %v1168 = vpow.bf16.pop %v1167
        %v1170 = vmul.bf16 %v1131, 1069105081
        %v1171 = vpow.bf16.pop %v1170
        %v1173 = vmul.bf16 %v1132, 1069105081
        %v1174 = vpow.bf16.pop %v1173
        %v1176 = vmul.bf16 %v1133, 1069105081
        %v1177 = vpow.bf16.pop %v1176
        %v1179 = vmul.bf16 %v1134, 1069105081
        %v1180 = vpow.bf16.pop %v1179
        %v1182 = vmul.bf16 %v1135, 1069105081
        %v1183 = vpow.bf16.pop %v1182
        %v1186 = vunpack.c.l.b16 %v449
        %v1187 = vunpack.c.l.b16 %v450
        %v1188 = vpack.c.b16 %v1187, %v1186
        %1190 = vmatprep.subr.bf16.mxu0 0
        %1191 = vmatpush1.bf16.xpose.msra.mxu0 %v1188
        %1192 = vmatprep.subr.bf16.mxu0 0
        %1193 = vmatpush1.bf16.xpose.msra.mxu0 0
        %1194 = vmatprep.subr.bf16.mxu0 0
        %1195 = vmatpush1.bf16.xpose.msra.mxu0 0
        %1196 = vmatprep.subr.bf16.mxu0 0
        %1197 = vmatpush1.bf16.xpose.msra.mxu0 0
        %1198 = vmatprep.subr.bf16.mxu0 0
        %1199 = vmatpush1.bf16.xpose.msra.mxu0 0
        %1200 = vmatprep.subr.bf16.mxu0 0
        %1201 = vmatpush1.bf16.xpose.msra.mxu0 0
        %1202 = vmatprep.subr.bf16.mxu0 0
        %1203 = vmatpush1.bf16.xpose.msra.mxu0 0
        %1204 = vmatprep.subr.bf16.mxu0 0
        %1205 = vmatpush1.bf16.xpose.msra.mxu0 0
        %1206 = vmatprep.subr.bf16.mxu0 0
        %1207 = vmatpush1.bf16.xpose.msra.mxu0 0
        %1208 = vmatprep.subr.bf16.mxu0 0
        %1209 = vmatpush1.bf16.xpose.msra.mxu0 0
        %1210 = vmatprep.subr.bf16.mxu0 0
        %1211 = vmatpush1.bf16.xpose.msra.mxu0 0
        %1212 = vmatprep.subr.bf16.mxu0 0
        %1213 = vmatpush1.bf16.xpose.msra.mxu0 0
        %1214 = vmatprep.subr.bf16.mxu0 0
        %1215 = vmatpush1.bf16.xpose.msra.mxu0 0
        %1216 = vmatprep.subr.bf16.mxu0 0
        %1217 = vmatpush1.bf16.xpose.msra.mxu0 0
        %1218 = vmatprep.subr.bf16.mxu0 0
        %1219 = vmatpush1.bf16.xpose.msra.mxu0 0
        %1220 = vmatprep.subr.bf16.mxu0 0
        %1221 = vmatpush1.bf16.xpose.msra.mxu0 0
        %1222 = vmatprep.mubr.bf16.mxu0 0
        %1223 = vmatmul.mubr.bf16.gmra.mrb[0].mxu0 %v1138
        %v1224 = vpop.f32.mrb[0].mxu0
        %v1225 = vadd.f32 0.0, %v1224
        %v1226 = vpop.f32.mrb[0].mxu0
        %v1227 = vpop.f32.mrb[0].mxu0
        %v1228 = vadd.f32 0.0, %v1227
        %v1229 = vpop.f32.mrb[0].mxu0
        %1230 = vmatprep.mubr.bf16.mxu0 0
        %1231 = vmatmul.mubr.bf16.gmra.mrb[0].mxu0 %v1141
        %v1232 = vpop.f32.mrb[0].mxu0
        %v1233 = vadd.f32 0.0, %v1232
        %v1234 = vpop.f32.mrb[0].mxu0
        %v1235 = vpop.f32.mrb[0].mxu0
        %v1236 = vadd.f32 0.0, %v1235
        %v1237 = vpop.f32.mrb[0].mxu0
        %1238 = vmatprep.mubr.bf16.mxu0 0
        %1239 = vmatmul.mubr.bf16.gmra.mrb[0].mxu0 %v1144
        %v1240 = vpop.f32.mrb[0].mxu0
        %v1241 = vadd.f32 0.0, %v1240
        %v1242 = vpop.f32.mrb[0].mxu0
        %v1243 = vpop.f32.mrb[0].mxu0
        %v1244 = vadd.f32 0.0, %v1243
        %v1245 = vpop.f32.mrb[0].mxu0
        %1246 = vmatprep.mubr.bf16.mxu0 0
        %1247 = vmatmul.mubr.bf16.gmra.mrb[0].mxu0 %v1147
        %v1248 = vpop.f32.mrb[0].mxu0
        %v1249 = vadd.f32 0.0, %v1248
        %v1250 = vpop.f32.mrb[0].mxu0
        %v1251 = vpop.f32.mrb[0].mxu0
        %v1252 = vadd.f32 0.0, %v1251
        %v1253 = vpop.f32.mrb[0].mxu0
        %1254 = vmatprep.mubr.bf16.mxu0 0
        %1255 = vmatmul.mubr.bf16.gmra.mrb[0].mxu0 %v1150
        %v1256 = vpop.f32.mrb[0].mxu0
        %v1257 = vadd.f32 0.0, %v1256
        %v1258 = vpop.f32.mrb[0].mxu0
        %v1259 = vpop.f32.mrb[0].mxu0
        %v1260 = vadd.f32 0.0, %v1259
        %v1261 = vpop.f32.mrb[0].mxu0
        %1262 = vmatprep.mubr.bf16.mxu0 0
        %1263 = vmatmul.mubr.bf16.gmra.mrb[0].mxu0 %v1153
        %v1264 = vpop.f32.mrb[0].mxu0
        %v1265 = vadd.f32 0.0, %v1264
        %v1266 = vpop.f32.mrb[0].mxu0
        %v1267 = vpop.f32.mrb[0].mxu0
        %v1268 = vadd.f32 0.0, %v1267
        %v1269 = vpop.f32.mrb[0].mxu0
        %1270 = vmatprep.mubr.bf16.mxu0 0
        %1271 = vmatmul.mubr.bf16.gmra.mrb[0].mxu0 %v1156
        %v1272 = vpop.f32.mrb[0].mxu0
        %v1273 = vadd.f32 0.0, %v1272
        %v1274 = vpop.f32.mrb[0].mxu0
        %v1275 = vpop.f32.mrb[0].mxu0
        %v1276 = vadd.f32 0.0, %v1275
        %v1277 = vpop.f32.mrb[0].mxu0
        %1278 = vmatprep.mubr.bf16.mxu0 0
        %1279 = vmatmul.mubr.bf16.gmra.mrb[0].mxu0 %v1159
        %v1280 = vpop.f32.mrb[0].mxu0
        %v1281 = vadd.f32 0.0, %v1280
        %v1282 = vpop.f32.mrb[0].mxu0
        %v1283 = vpop.f32.mrb[0].mxu0
        %v1284 = vadd.f32 0.0, %v1283
        %v1285 = vpop.f32.mrb[0].mxu0
        %1286 = vmatprep.mubr.bf16.mxu0 0
        %1287 = vmatmul.mubr.bf16.gmra.mrb[0].mxu0 %v1162
        %v1288 = vpop.f32.mrb[0].mxu0
        %v1289 = vadd.f32 0.0, %v1288
        %v1290 = vpop.f32.mrb[0].mxu0
        %v1291 = vpop.f32.mrb[0].mxu0
        %v1292 = vadd.f32 0.0, %v1291
        %v1293 = vpop.f32.mrb[0].mxu0
        %1294 = vmatprep.mubr.bf16.mxu0 0
        %1295 = vmatmul.mubr.bf16.gmra.mrb[0].mxu0 %v1165
        %v1296 = vpop.f32.mrb[0].mxu0
        %v1297 = vadd.f32 0.0, %v1296
        %v1298 = vpop.f32.mrb[0].mxu0
        %v1299 = vpop.f32.mrb[0].mxu0
        %v1300 = vadd.f32 0.0, %v1299
        %v1301 = vpop.f32.mrb[0].mxu0
        %1302 = vmatprep.mubr.bf16.mxu0 0
        %1303 = vmatmul.mubr.bf16.gmra.mrb[0].mxu0 %v1168
        %v1304 = vpop.f32.mrb[0].mxu0
        %v1305 = vadd.f32 0.0, %v1304
        %v1306 = vpop.f32.mrb[0].mxu0
        %v1307 = vpop.f32.mrb[0].mxu0
        %v1308 = vadd.f32 0.0, %v1307
        %v1309 = vpop.f32.mrb[0].mxu0
        %1310 = vmatprep.mubr.bf16.mxu0 0
        %1311 = vmatmul.mubr.bf16.gmra.mrb[0].mxu0 %v1171
        %v1312 = vpop.f32.mrb[0].mxu0
        %v1313 = vadd.f32 0.0, %v1312
        %v1314 = vpop.f32.mrb[0].mxu0
        %v1315 = vpop.f32.mrb[0].mxu0
        %v1316 = vadd.f32 0.0, %v1315
        %v1317 = vpop.f32.mrb[0].mxu0
        %1318 = vmatprep.mubr.bf16.mxu0 0
        %1319 = vmatmul.mubr.bf16.gmra.mrb[0].mxu0 %v1174
        %v1320 = vpop.f32.mrb[0].mxu0
        %v1321 = vadd.f32 0.0, %v1320
        %v1322 = vpop.f32.mrb[0].mxu0
        %v1323 = vpop.f32.mrb[0].mxu0
        %v1324 = vadd.f32 0.0, %v1323
        %v1325 = vpop.f32.mrb[0].mxu0
        %1326 = vmatprep.mubr.bf16.mxu0 0
        %1327 = vmatmul.mubr.bf16.gmra.mrb[0].mxu0 %v1177
        %v1328 = vpop.f32.mrb[0].mxu0
        %v1329 = vadd.f32 0.0, %v1328
        %v1330 = vpop.f32.mrb[0].mxu0
        %v1331 = vpop.f32.mrb[0].mxu0
        %v1332 = vadd.f32 0.0, %v1331
        %v1333 = vpop.f32.mrb[0].mxu0
        %1334 = vmatprep.mubr.bf16.mxu0 0
        %1335 = vmatmul.mubr.bf16.gmra.mrb[0].mxu0 %v1180
        %v1336 = vpop.f32.mrb[0].mxu0
        %v1337 = vadd.f32 0.0, %v1336
        %v1338 = vpop.f32.mrb[0].mxu0
        %v1339 = vpop.f32.mrb[0].mxu0
        %v1340 = vadd.f32 0.0, %v1339
        %v1341 = vpop.f32.mrb[0].mxu0
        %1342 = vmatprep.mubr.bf16.mxu0 0
        %1343 = vmatmul.mubr.bf16.gmra.mrb[0].mxu0 %v1183
        %v1344 = vpop.f32.mrb[0].mxu0
        %v1345 = vadd.f32 0.0, %v1344
        %v1346 = vpop.f32.mrb[0].mxu0
        %v1347 = vpop.f32.mrb[0].mxu0
        %v1348 = vadd.f32 0.0, %v1347
        %v1349 = vpop.f32.mrb[0].mxu0
        %1350 = vdwg.mxu0
        %v1351 = vld [vmem:[#allocation3] sm:$0xff]
        %v1352 = vld [vmem:[#allocation3 + $0x8] sm:$0xff]
        %v1353 = vld [vmem:[#allocation3 + $0x10] sm:$0xff]
        %v1354 = vld [vmem:[#allocation3 + $0x18] sm:$0xff]
        %v1355 = vld [vmem:[#allocation3 + $0x20] sm:$0xff]
        %v1356 = vld [vmem:[#allocation3 + $0x28] sm:$0xff]
        %v1357 = vld [vmem:[#allocation3 + $0x30] sm:$0xff]
        %v1358 = vld [vmem:[#allocation3 + $0x38] sm:$0xff]
        %v1359 = vld [vmem:[#allocation3 + $0x40] sm:$0xff]
        %v1360 = vld [vmem:[#allocation3 + $0x48] sm:$0xff]
        %v1361 = vld [vmem:[#allocation3 + $0x50] sm:$0xff]
        %v1362 = vld [vmem:[#allocation3 + $0x58] sm:$0xff]
        %v1363 = vld [vmem:[#allocation3 + $0x60] sm:$0xff]
        %v1364 = vld [vmem:[#allocation3 + $0x68] sm:$0xff]
        %v1365 = vld [vmem:[#allocation3 + $0x70] sm:$0xff]
        %v1366 = vld [vmem:[#allocation3 + $0x78] sm:$0xff]
        %v1367 = vld [vmem:[#allocation3 + $0x80] sm:$0xff]
        %v1368 = vld [vmem:[#allocation3 + $0x88] sm:$0xff]
        %v1369 = vld [vmem:[#allocation3 + $0x90] sm:$0xff]
        %v1370 = vld [vmem:[#allocation3 + $0x98] sm:$0xff]
        %v1371 = vld [vmem:[#allocation3 + $0xa0] sm:$0xff]
        %v1372 = vld [vmem:[#allocation3 + $0xa8] sm:$0xff]
        %v1373 = vld [vmem:[#allocation3 + $0xb0] sm:$0xff]
        %v1374 = vld [vmem:[#allocation3 + $0xb8] sm:$0xff]
        %v1375 = vld [vmem:[#allocation3 + $0xc0] sm:$0xff]
        %v1376 = vld [vmem:[#allocation3 + $0xc8] sm:$0xff]
        %v1377 = vld [vmem:[#allocation3 + $0xd0] sm:$0xff]
        %v1378 = vld [vmem:[#allocation3 + $0xd8] sm:$0xff]
        %v1379 = vld [vmem:[#allocation3 + $0xe0] sm:$0xff]
        %v1380 = vld [vmem:[#allocation3 + $0xe8] sm:$0xff]
        %v1381 = vld [vmem:[#allocation3 + $0xf0] sm:$0xff]
        %v1382 = vld [vmem:[#allocation3 + $0xf8] sm:$0xff]
        %v1383 = vmul.f32 %v865, %v1351
        %v1384 = vmul.f32 %v867, %v1352
        %v1385 = vmul.f32 %v869, %v1353
        %v1386 = vmul.f32 %v871, %v1354
        %v1387 = vmul.f32 %v873, %v1355
        %v1388 = vmul.f32 %v875, %v1356
        %v1389 = vmul.f32 %v877, %v1357
        %v1390 = vmul.f32 %v879, %v1358
        %v1391 = vmul.f32 %v881, %v1359
        %v1392 = vmul.f32 %v883, %v1360
        %v1393 = vmul.f32 %v885, %v1361
        %v1394 = vmul.f32 %v887, %v1362
        %v1395 = vmul.f32 %v889, %v1363
        %v1396 = vmul.f32 %v891, %v1364
        %v1397 = vmul.f32 %v893, %v1365
        %v1398 = vmul.f32 %v895, %v1366
        %v1399 = vmul.f32 %v897, %v1367
        %v1400 = vmul.f32 %v899, %v1368
        %v1401 = vmul.f32 %v901, %v1369
        %v1402 = vmul.f32 %v903, %v1370
        %v1403 = vmul.f32 %v905, %v1371
        %v1404 = vmul.f32 %v907, %v1372
        %v1405 = vmul.f32 %v909, %v1373
        %v1406 = vmul.f32 %v911, %v1374
        %v1407 = vmul.f32 %v913, %v1375
        %v1408 = vmul.f32 %v915, %v1376
        %v1409 = vmul.f32 %v917, %v1377
        %v1410 = vmul.f32 %v919, %v1378
        %v1411 = vmul.f32 %v921, %v1379
        %v1412 = vmul.f32 %v923, %v1380
        %v1413 = vmul.f32 %v925, %v1381
        %v1414 = vmul.f32 %v927, %v1382
        %1447 = vrot.lane.b32.xlu0 %v1225, 120
        %v1448 = vpop.permute.xlu0 %1447
        %1449 = vrot.lane.b32.xlu0 %v1228, 120
        %v1450 = vpop.permute.xlu0 %1449
        %1451 = vrot.lane.b32.xlu0 %v1233, 120
        %v1452 = vpop.permute.xlu0 %1451
        %1453 = vrot.lane.b32.xlu0 %v1236, 120
        %v1454 = vpop.permute.xlu0 %1453
        %1455 = vrot.lane.b32.xlu0 %v1241, 120
        %v1456 = vpop.permute.xlu0 %1455
        %1457 = vrot.lane.b32.xlu0 %v1244, 120
        %v1458 = vpop.permute.xlu0 %1457
        %1459 = vrot.lane.b32.xlu0 %v1249, 120
        %v1460 = vpop.permute.xlu0 %1459
        %1461 = vrot.lane.b32.xlu0 %v1252, 120
        %v1462 = vpop.permute.xlu0 %1461
        %1463 = vrot.lane.b32.xlu0 %v1257, 120
        %v1464 = vpop.permute.xlu0 %1463
        %1465 = vrot.lane.b32.xlu0 %v1260, 120
        %v1466 = vpop.permute.xlu0 %1465
        %1467 = vrot.lane.b32.xlu0 %v1265, 120
        %v1468 = vpop.permute.xlu0 %1467
        %1469 = vrot.lane.b32.xlu0 %v1268, 120
        %v1470 = vpop.permute.xlu0 %1469
        %1471 = vrot.lane.b32.xlu0 %v1273, 120
        %v1472 = vpop.permute.xlu0 %1471
        %1473 = vrot.lane.b32.xlu0 %v1276, 120
        %v1474 = vpop.permute.xlu0 %1473
        %1475 = vrot.lane.b32.xlu0 %v1281, 120
        %v1476 = vpop.permute.xlu0 %1475
        %1477 = vrot.lane.b32.xlu0 %v1284, 120
        %v1478 = vpop.permute.xlu0 %1477
        %1479 = vrot.lane.b32.xlu0 %v1289, 120
        %v1480 = vpop.permute.xlu0 %1479
        %1481 = vrot.lane.b32.xlu0 %v1292, 120
        %v1482 = vpop.permute.xlu0 %1481
        %1483 = vrot.lane.b32.xlu0 %v1297, 120
        %v1484 = vpop.permute.xlu0 %1483
        %1485 = vrot.lane.b32.xlu0 %v1300, 120
        %v1486 = vpop.permute.xlu0 %1485
        %1487 = vrot.lane.b32.xlu0 %v1305, 120
        %v1488 = vpop.permute.xlu0 %1487
        %1489 = vrot.lane.b32.xlu0 %v1308, 120
        %v1490 = vpop.permute.xlu0 %1489
        %1491 = vrot.lane.b32.xlu0 %v1313, 120
        %v1492 = vpop.permute.xlu0 %1491
        %1493 = vrot.lane.b32.xlu0 %v1316, 120
        %v1494 = vpop.permute.xlu0 %1493
        %1495 = vrot.lane.b32.xlu0 %v1321, 120
        %v1496 = vpop.permute.xlu0 %1495
        %1497 = vrot.lane.b32.xlu0 %v1324, 120
        %v1498 = vpop.permute.xlu0 %1497
        %1499 = vrot.lane.b32.xlu0 %v1329, 120
        %v1500 = vpop.permute.xlu0 %1499
        %1501 = vrot.lane.b32.xlu0 %v1332, 120
        %v1502 = vpop.permute.xlu0 %1501
        %1503 = vrot.lane.b32.xlu0 %v1337, 120
        %v1504 = vpop.permute.xlu0 %1503
        %1505 = vrot.lane.b32.xlu0 %v1340, 120
        %v1506 = vpop.permute.xlu0 %1505
        %1507 = vrot.lane.b32.xlu0 %v1345, 120
        %v1508 = vpop.permute.xlu0 %1507
        %1509 = vrot.lane.b32.xlu0 %v1348, 120
        %v1510 = vpop.permute.xlu0 %1509
        %v1543 = vadd.f32 %v1383, %v1448
        %v1544 = vadd.f32 %v1384, %v1450
        %v1545 = vadd.f32 %v1385, %v1452
        %v1546 = vadd.f32 %v1386, %v1454
        %v1547 = vadd.f32 %v1387, %v1456
        %v1548 = vadd.f32 %v1388, %v1458
        %v1549 = vadd.f32 %v1389, %v1460
        %v1550 = vadd.f32 %v1390, %v1462
        %v1551 = vadd.f32 %v1391, %v1464
        %v1552 = vadd.f32 %v1392, %v1466
        %v1553 = vadd.f32 %v1393, %v1468
        %v1554 = vadd.f32 %v1394, %v1470
        %v1555 = vadd.f32 %v1395, %v1472
        %v1556 = vadd.f32 %v1396, %v1474
        %v1557 = vadd.f32 %v1397, %v1476
        %v1558 = vadd.f32 %v1398, %v1478
        %v1559 = vadd.f32 %v1399, %v1480
        %v1560 = vadd.f32 %v1400, %v1482
        %v1561 = vadd.f32 %v1401, %v1484
        %v1562 = vadd.f32 %v1402, %v1486
        %v1563 = vadd.f32 %v1403, %v1488
        %v1564 = vadd.f32 %v1404, %v1490
        %v1565 = vadd.f32 %v1405, %v1492
        %v1566 = vadd.f32 %v1406, %v1494
        %v1567 = vadd.f32 %v1407, %v1496
        %v1568 = vadd.f32 %v1408, %v1498
        %v1569 = vadd.f32 %v1409, %v1500
        %v1570 = vadd.f32 %v1410, %v1502
        %v1571 = vadd.f32 %v1411, %v1504
        %v1572 = vadd.f32 %v1412, %v1506
        %v1573 = vadd.f32 %v1413, %v1508
        %v1574 = vadd.f32 %v1414, %v1510
        %vm1575 = vcmask 7168
        %1576 = vst.msk [vmem:[#allocation3] sm:$0xff] %vm1575, %v1543
        %1577 = vst.msk [vmem:[#allocation3 + $0x8] sm:$0xff] %vm1575, %v1544
        %1578 = vst.msk [vmem:[#allocation3 + $0x10] sm:$0xff] %vm1575, %v1545
        %1579 = vst.msk [vmem:[#allocation3 + $0x18] sm:$0xff] %vm1575, %v1546
        %1580 = vst.msk [vmem:[#allocation3 + $0x20] sm:$0xff] %vm1575, %v1547
        %1581 = vst.msk [vmem:[#allocation3 + $0x28] sm:$0xff] %vm1575, %v1548
        %1582 = vst.msk [vmem:[#allocation3 + $0x30] sm:$0xff] %vm1575, %v1549
        %1583 = vst.msk [vmem:[#allocation3 + $0x38] sm:$0xff] %vm1575, %v1550
        %1584 = vst.msk [vmem:[#allocation3 + $0x40] sm:$0xff] %vm1575, %v1551
        %1585 = vst.msk [vmem:[#allocation3 + $0x48] sm:$0xff] %vm1575, %v1552
        %1586 = vst.msk [vmem:[#allocation3 + $0x50] sm:$0xff] %vm1575, %v1553
        %1587 = vst.msk [vmem:[#allocation3 + $0x58] sm:$0xff] %vm1575, %v1554
        %1588 = vst.msk [vmem:[#allocation3 + $0x60] sm:$0xff] %vm1575, %v1555
        %1589 = vst.msk [vmem:[#allocation3 + $0x68] sm:$0xff] %vm1575, %v1556
        %1590 = vst.msk [vmem:[#allocation3 + $0x70] sm:$0xff] %vm1575, %v1557
        %1591 = vst.msk [vmem:[#allocation3 + $0x78] sm:$0xff] %vm1575, %v1558
        %1592 = vst.msk [vmem:[#allocation3 + $0x80] sm:$0xff] %vm1575, %v1559
        %1593 = vst.msk [vmem:[#allocation3 + $0x88] sm:$0xff] %vm1575, %v1560
        %1594 = vst.msk [vmem:[#allocation3 + $0x90] sm:$0xff] %vm1575, %v1561
        %1595 = vst.msk [vmem:[#allocation3 + $0x98] sm:$0xff] %vm1575, %v1562
        %1596 = vst.msk [vmem:[#allocation3 + $0xa0] sm:$0xff] %vm1575, %v1563
        %1597 = vst.msk [vmem:[#allocation3 + $0xa8] sm:$0xff] %vm1575, %v1564
        %1598 = vst.msk [vmem:[#allocation3 + $0xb0] sm:$0xff] %vm1575, %v1565
        %1599 = vst.msk [vmem:[#allocation3 + $0xb8] sm:$0xff] %vm1575, %v1566
        %1600 = vst.msk [vmem:[#allocation3 + $0xc0] sm:$0xff] %vm1575, %v1567
        %1601 = vst.msk [vmem:[#allocation3 + $0xc8] sm:$0xff] %vm1575, %v1568
        %1602 = vst.msk [vmem:[#allocation3 + $0xd0] sm:$0xff] %vm1575, %v1569
        %1603 = vst.msk [vmem:[#allocation3 + $0xd8] sm:$0xff] %vm1575, %v1570
        %1604 = vst.msk [vmem:[#allocation3 + $0xe0] sm:$0xff] %vm1575, %v1571
        %1605 = vst.msk [vmem:[#allocation3 + $0xe8] sm:$0xff] %vm1575, %v1572
        %1606 = vst.msk [vmem:[#allocation3 + $0xf0] sm:$0xff] %vm1575, %v1573
        %1607 = vst.msk [vmem:[#allocation3 + $0xf8] sm:$0xff] %vm1575, %v1574
        %v1608 = vld [vmem:[#allocation4] sm:$0xff]
        %v1609 = vld [vmem:[#allocation4 + $0x8] sm:$0xff]
        %v1610 = vld [vmem:[#allocation4 + $0x10] sm:$0xff]
        %v1611 = vld [vmem:[#allocation4 + $0x18] sm:$0xff]
        %v1612 = vld [vmem:[#allocation4 + $0x20] sm:$0xff]
        %v1613 = vld [vmem:[#allocation4 + $0x28] sm:$0xff]
        %v1614 = vld [vmem:[#allocation4 + $0x30] sm:$0xff]
        %v1615 = vld [vmem:[#allocation4 + $0x38] sm:$0xff]
        %v1616 = vld [vmem:[#allocation4 + $0x40] sm:$0xff]
        %v1617 = vld [vmem:[#allocation4 + $0x48] sm:$0xff]
        %v1618 = vld [vmem:[#allocation4 + $0x50] sm:$0xff]
        %v1619 = vld [vmem:[#allocation4 + $0x58] sm:$0xff]
        %v1620 = vld [vmem:[#allocation4 + $0x60] sm:$0xff]
        %v1621 = vld [vmem:[#allocation4 + $0x68] sm:$0xff]
        %v1622 = vld [vmem:[#allocation4 + $0x70] sm:$0xff]
        %v1623 = vld [vmem:[#allocation4 + $0x78] sm:$0xff]
        %v1624 = vld [vmem:[#allocation4 + $0x80] sm:$0xff]
        %v1625 = vld [vmem:[#allocation4 + $0x88] sm:$0xff]
        %v1626 = vld [vmem:[#allocation4 + $0x90] sm:$0xff]
        %v1627 = vld [vmem:[#allocation4 + $0x98] sm:$0xff]
        %v1628 = vld [vmem:[#allocation4 + $0xa0] sm:$0xff]
        %v1629 = vld [vmem:[#allocation4 + $0xa8] sm:$0xff]
        %v1630 = vld [vmem:[#allocation4 + $0xb0] sm:$0xff]
        %v1631 = vld [vmem:[#allocation4 + $0xb8] sm:$0xff]
        %v1632 = vld [vmem:[#allocation4 + $0xc0] sm:$0xff]
        %v1633 = vld [vmem:[#allocation4 + $0xc8] sm:$0xff]
        %v1634 = vld [vmem:[#allocation4 + $0xd0] sm:$0xff]
        %v1635 = vld [vmem:[#allocation4 + $0xd8] sm:$0xff]
        %v1636 = vld [vmem:[#allocation4 + $0xe0] sm:$0xff]
        %v1637 = vld [vmem:[#allocation4 + $0xe8] sm:$0xff]
        %v1638 = vld [vmem:[#allocation4 + $0xf0] sm:$0xff]
        %v1639 = vld [vmem:[#allocation4 + $0xf8] sm:$0xff]
        %1641 = vset.pattern.permute.xlu0 0
        %1642 = vperm.xlu0 %1641, %v865
        %v1643 = vpop.permute.xlu0 %1642
        %1646 = vset.pattern.permute.xlu0 0
        %1647 = vperm.xlu0 %1646, %v867
        %v1648 = vpop.permute.xlu0 %1647
        %1651 = vset.pattern.permute.xlu0 0
        %1652 = vperm.xlu0 %1651, %v869
        %v1653 = vpop.permute.xlu0 %1652
        %1656 = vset.pattern.permute.xlu0 0
        %1657 = vperm.xlu0 %1656, %v871
        %v1658 = vpop.permute.xlu0 %1657
        %1661 = vset.pattern.permute.xlu0 0
        %1662 = vperm.xlu0 %1661, %v873
        %v1663 = vpop.permute.xlu0 %1662
        %1666 = vset.pattern.permute.xlu0 0
        %1667 = vperm.xlu0 %1666, %v875
        %v1668 = vpop.permute.xlu0 %1667
        %1671 = vset.pattern.permute.xlu0 0
        %1672 = vperm.xlu0 %1671, %v877
        %v1673 = vpop.permute.xlu0 %1672
        %1676 = vset.pattern.permute.xlu0 0
        %1677 = vperm.xlu0 %1676, %v879
        %v1678 = vpop.permute.xlu0 %1677
        %1681 = vset.pattern.permute.xlu0 0
        %1682 = vperm.xlu0 %1681, %v881
        %v1683 = vpop.permute.xlu0 %1682
        %1686 = vset.pattern.permute.xlu0 0
        %1687 = vperm.xlu0 %1686, %v883
        %v1688 = vpop.permute.xlu0 %1687
        %1691 = vset.pattern.permute.xlu0 0
        %1692 = vperm.xlu0 %1691, %v885
        %v1693 = vpop.permute.xlu0 %1692
        %1696 = vset.pattern.permute.xlu0 0
        %1697 = vperm.xlu0 %1696, %v887
        %v1698 = vpop.permute.xlu0 %1697
        %1701 = vset.pattern.permute.xlu0 0
        %1702 = vperm.xlu0 %1701, %v889
        %v1703 = vpop.permute.xlu0 %1702
        %1706 = vset.pattern.permute.xlu0 0
        %1707 = vperm.xlu0 %1706, %v891
        %v1708 = vpop.permute.xlu0 %1707
        %1711 = vset.pattern.permute.xlu0 0
        %1712 = vperm.xlu0 %1711, %v893
        %v1713 = vpop.permute.xlu0 %1712
        %1716 = vset.pattern.permute.xlu0 0
        %1717 = vperm.xlu0 %1716, %v895
        %v1718 = vpop.permute.xlu0 %1717
        %1721 = vset.pattern.permute.xlu0 0
        %1722 = vperm.xlu0 %1721, %v897
        %v1723 = vpop.permute.xlu0 %1722
        %1726 = vset.pattern.permute.xlu0 0
        %1727 = vperm.xlu0 %1726, %v899
        %v1728 = vpop.permute.xlu0 %1727
        %1731 = vset.pattern.permute.xlu0 0
        %1732 = vperm.xlu0 %1731, %v901
        %v1733 = vpop.permute.xlu0 %1732
        %1736 = vset.pattern.permute.xlu0 0
        %1737 = vperm.xlu0 %1736, %v903
        %v1738 = vpop.permute.xlu0 %1737
        %1741 = vset.pattern.permute.xlu0 0
        %1742 = vperm.xlu0 %1741, %v905
        %v1743 = vpop.permute.xlu0 %1742
        %1746 = vset.pattern.permute.xlu0 0
        %1747 = vperm.xlu0 %1746, %v907
        %v1748 = vpop.permute.xlu0 %1747
        %1751 = vset.pattern.permute.xlu0 0
        %1752 = vperm.xlu0 %1751, %v909
        %v1753 = vpop.permute.xlu0 %1752
        %1756 = vset.pattern.permute.xlu0 0
        %1757 = vperm.xlu0 %1756, %v911
        %v1758 = vpop.permute.xlu0 %1757
        %1761 = vset.pattern.permute.xlu0 0
        %1762 = vperm.xlu0 %1761, %v913
        %v1763 = vpop.permute.xlu0 %1762
        %1766 = vset.pattern.permute.xlu0 0
        %1767 = vperm.xlu0 %1766, %v915
        %v1768 = vpop.permute.xlu0 %1767
        %1771 = vset.pattern.permute.xlu0 0
        %1772 = vperm.xlu0 %1771, %v917
        %v1773 = vpop.permute.xlu0 %1772
        %1776 = vset.pattern.permute.xlu0 0
        %1777 = vperm.xlu0 %1776, %v919
        %v1778 = vpop.permute.xlu0 %1777
        %1781 = vset.pattern.permute.xlu0 0
        %1782 = vperm.xlu0 %1781, %v921
        %v1783 = vpop.permute.xlu0 %1782
        %1786 = vset.pattern.permute.xlu0 0
        %1787 = vperm.xlu0 %1786, %v923
        %v1788 = vpop.permute.xlu0 %1787
        %1791 = vset.pattern.permute.xlu0 0
        %1792 = vperm.xlu0 %1791, %v925
        %v1793 = vpop.permute.xlu0 %1792
        %1796 = vset.pattern.permute.xlu0 0
        %1797 = vperm.xlu0 %1796, %v927
        %v1798 = vpop.permute.xlu0 %1797
        %v1800 = vmul.f32 %v1643, %v1608
        %v1801 = vmul.f32 %v1648, %v1609
        %v1802 = vmul.f32 %v1653, %v1610
        %v1803 = vmul.f32 %v1658, %v1611
        %v1804 = vmul.f32 %v1663, %v1612
        %v1805 = vmul.f32 %v1668, %v1613
        %v1806 = vmul.f32 %v1673, %v1614
        %v1807 = vmul.f32 %v1678, %v1615
        %v1808 = vmul.f32 %v1683, %v1616
        %v1809 = vmul.f32 %v1688, %v1617
        %v1810 = vmul.f32 %v1693, %v1618
        %v1811 = vmul.f32 %v1698, %v1619
        %v1812 = vmul.f32 %v1703, %v1620
        %v1813 = vmul.f32 %v1708, %v1621
        %v1814 = vmul.f32 %v1713, %v1622
        %v1815 = vmul.f32 %v1718, %v1623
        %v1816 = vmul.f32 %v1723, %v1624
        %v1817 = vmul.f32 %v1728, %v1625
        %v1818 = vmul.f32 %v1733, %v1626
        %v1819 = vmul.f32 %v1738, %v1627
        %v1820 = vmul.f32 %v1743, %v1628
        %v1821 = vmul.f32 %v1748, %v1629
        %v1822 = vmul.f32 %v1753, %v1630
        %v1823 = vmul.f32 %v1758, %v1631
        %v1824 = vmul.f32 %v1763, %v1632
        %v1825 = vmul.f32 %v1768, %v1633
        %v1826 = vmul.f32 %v1773, %v1634
        %v1827 = vmul.f32 %v1778, %v1635
        %v1828 = vmul.f32 %v1783, %v1636
        %v1829 = vmul.f32 %v1788, %v1637
        %v1830 = vmul.f32 %v1793, %v1638
        %v1831 = vmul.f32 %v1798, %v1639
        %v1832 = vadd.f32 %v1800, %v1225
        %v1833 = vadd.f32 %v1801, %v1228
        %v1834 = vadd.f32 %v1802, %v1233
        %v1835 = vadd.f32 %v1803, %v1236
        %v1836 = vadd.f32 %v1804, %v1241
        %v1837 = vadd.f32 %v1805, %v1244
        %v1838 = vadd.f32 %v1806, %v1249
        %v1839 = vadd.f32 %v1807, %v1252
        %v1840 = vadd.f32 %v1808, %v1257
        %v1841 = vadd.f32 %v1809, %v1260
        %v1842 = vadd.f32 %v1810, %v1265
        %v1843 = vadd.f32 %v1811, %v1268
        %v1844 = vadd.f32 %v1812, %v1273
        %v1845 = vadd.f32 %v1813, %v1276
        %v1846 = vadd.f32 %v1814, %v1281
        %v1847 = vadd.f32 %v1815, %v1284
        %v1848 = vadd.f32 %v1816, %v1289
        %v1849 = vadd.f32 %v1817, %v1292
        %v1850 = vadd.f32 %v1818, %v1297
        %v1851 = vadd.f32 %v1819, %v1300
        %v1852 = vadd.f32 %v1820, %v1305
        %v1853 = vadd.f32 %v1821, %v1308
        %v1854 = vadd.f32 %v1822, %v1313
        %v1855 = vadd.f32 %v1823, %v1316
        %v1856 = vadd.f32 %v1824, %v1321
        %v1857 = vadd.f32 %v1825, %v1324
        %v1858 = vadd.f32 %v1826, %v1329
        %v1859 = vadd.f32 %v1827, %v1332
        %v1860 = vadd.f32 %v1828, %v1337
        %v1861 = vadd.f32 %v1829, %v1340
        %v1862 = vadd.f32 %v1830, %v1345
        %v1863 = vadd.f32 %v1831, %v1348
        %1864 = vst.msk [vmem:[#allocation4] sm:$0xff] %vm490, %v1832
        %1865 = vst.msk [vmem:[#allocation4 + $0x8] sm:$0xff] %vm490, %v1833
        %1866 = vst.msk [vmem:[#allocation4 + $0x10] sm:$0xff] %vm490, %v1834
        %1867 = vst.msk [vmem:[#allocation4 + $0x18] sm:$0xff] %vm490, %v1835
        %1868 = vst.msk [vmem:[#allocation4 + $0x20] sm:$0xff] %vm490, %v1836
        %1869 = vst.msk [vmem:[#allocation4 + $0x28] sm:$0xff] %vm490, %v1837
        %1870 = vst.msk [vmem:[#allocation4 + $0x30] sm:$0xff] %vm490, %v1838
        %1871 = vst.msk [vmem:[#allocation4 + $0x38] sm:$0xff] %vm490, %v1839
        %1872 = vst.msk [vmem:[#allocation4 + $0x40] sm:$0xff] %vm490, %v1840
        %1873 = vst.msk [vmem:[#allocation4 + $0x48] sm:$0xff] %vm490, %v1841
        %1874 = vst.msk [vmem:[#allocation4 + $0x50] sm:$0xff] %vm490, %v1842
        %1875 = vst.msk [vmem:[#allocation4 + $0x58] sm:$0xff] %vm490, %v1843
        %1876 = vst.msk [vmem:[#allocation4 + $0x60] sm:$0xff] %vm490, %v1844
        %1877 = vst.msk [vmem:[#allocation4 + $0x68] sm:$0xff] %vm490, %v1845
        %1878 = vst.msk [vmem:[#allocation4 + $0x70] sm:$0xff] %vm490, %v1846
        %1879 = vst.msk [vmem:[#allocation4 + $0x78] sm:$0xff] %vm490, %v1847
        %1880 = vst.msk [vmem:[#allocation4 + $0x80] sm:$0xff] %vm490, %v1848
        %1881 = vst.msk [vmem:[#allocation4 + $0x88] sm:$0xff] %vm490, %v1849
        %1882 = vst.msk [vmem:[#allocation4 + $0x90] sm:$0xff] %vm490, %v1850
        %1883 = vst.msk [vmem:[#allocation4 + $0x98] sm:$0xff] %vm490, %v1851
        %1884 = vst.msk [vmem:[#allocation4 + $0xa0] sm:$0xff] %vm490, %v1852
        %1885 = vst.msk [vmem:[#allocation4 + $0xa8] sm:$0xff] %vm490, %v1853
        %1886 = vst.msk [vmem:[#allocation4 + $0xb0] sm:$0xff] %vm490, %v1854
        %1887 = vst.msk [vmem:[#allocation4 + $0xb8] sm:$0xff] %vm490, %v1855
        %1888 = vst.msk [vmem:[#allocation4 + $0xc0] sm:$0xff] %vm490, %v1856
        %1889 = vst.msk [vmem:[#allocation4 + $0xc8] sm:$0xff] %vm490, %v1857
        %1890 = vst.msk [vmem:[#allocation4 + $0xd0] sm:$0xff] %vm490, %v1858
        %1891 = vst.msk [vmem:[#allocation4 + $0xd8] sm:$0xff] %vm490, %v1859
        %1892 = vst.msk [vmem:[#allocation4 + $0xe0] sm:$0xff] %vm490, %v1860
        %1893 = vst.msk [vmem:[#allocation4 + $0xe8] sm:$0xff] %vm490, %v1861
        %1894 = vst.msk [vmem:[#allocation4 + $0xf0] sm:$0xff] %vm490, %v1862
        %1895 = vst.msk [vmem:[#allocation4 + $0xf8] sm:$0xff] %vm490, %v1863
        %1896 = vst.msk [vmem:[#allocation2] sm:$0xff] %vm1575, %v800
        %1897 = vst.msk [vmem:[#allocation2 + $0x8] sm:$0xff] %vm1575, %v801
        %1898 = vst.msk [vmem:[#allocation2 + $0x10] sm:$0xff] %vm1575, %v802
        %1899 = vst.msk [vmem:[#allocation2 + $0x18] sm:$0xff] %vm1575, %v803
        %1900 = vst.msk [vmem:[#allocation2 + $0x20] sm:$0xff] %vm1575, %v804
        %1901 = vst.msk [vmem:[#allocation2 + $0x28] sm:$0xff] %vm1575, %v805
        %1902 = vst.msk [vmem:[#allocation2 + $0x30] sm:$0xff] %vm1575, %v806
        %1903 = vst.msk [vmem:[#allocation2 + $0x38] sm:$0xff] %vm1575, %v807
        %1904 = vst.msk [vmem:[#allocation2 + $0x40] sm:$0xff] %vm1575, %v808
        %1905 = vst.msk [vmem:[#allocation2 + $0x48] sm:$0xff] %vm1575, %v809
        %1906 = vst.msk [vmem:[#allocation2 + $0x50] sm:$0xff] %vm1575, %v810
        %1907 = vst.msk [vmem:[#allocation2 + $0x58] sm:$0xff] %vm1575, %v811
        %1908 = vst.msk [vmem:[#allocation2 + $0x60] sm:$0xff] %vm1575, %v812
        %1909 = vst.msk [vmem:[#allocation2 + $0x68] sm:$0xff] %vm1575, %v813
        %1910 = vst.msk [vmem:[#allocation2 + $0x70] sm:$0xff] %vm1575, %v814
        %1911 = vst.msk [vmem:[#allocation2 + $0x78] sm:$0xff] %vm1575, %v815
        %1912 = vst.msk [vmem:[#allocation2 + $0x80] sm:$0xff] %vm1575, %v816
        %1913 = vst.msk [vmem:[#allocation2 + $0x88] sm:$0xff] %vm1575, %v817
        %1914 = vst.msk [vmem:[#allocation2 + $0x90] sm:$0xff] %vm1575, %v818
        %1915 = vst.msk [vmem:[#allocation2 + $0x98] sm:$0xff] %vm1575, %v819
        %1916 = vst.msk [vmem:[#allocation2 + $0xa0] sm:$0xff] %vm1575, %v820
        %1917 = vst.msk [vmem:[#allocation2 + $0xa8] sm:$0xff] %vm1575, %v821
        %1918 = vst.msk [vmem:[#allocation2 + $0xb0] sm:$0xff] %vm1575, %v822
        %1919 = vst.msk [vmem:[#allocation2 + $0xb8] sm:$0xff] %vm1575, %v823
        %1920 = vst.msk [vmem:[#allocation2 + $0xc0] sm:$0xff] %vm1575, %v824
        %1921 = vst.msk [vmem:[#allocation2 + $0xc8] sm:$0xff] %vm1575, %v825
        %1922 = vst.msk [vmem:[#allocation2 + $0xd0] sm:$0xff] %vm1575, %v826
        %1923 = vst.msk [vmem:[#allocation2 + $0xd8] sm:$0xff] %vm1575, %v827
        %1924 = vst.msk [vmem:[#allocation2 + $0xe0] sm:$0xff] %vm1575, %v828
        %1925 = vst.msk [vmem:[#allocation2 + $0xe8] sm:$0xff] %vm1575, %v829
        %1926 = vst.msk [vmem:[#allocation2 + $0xf0] sm:$0xff] %vm1575, %v830
        %1927 = vst.msk [vmem:[#allocation2 + $0xf8] sm:$0xff] %vm1575, %v831
        %p1928 = scmp.eq.s32.totalorder %s22, 1
        // Predicated region
        $region82: #{upsampling_agg_block.2} parent=72 // pred_check
          %p1929 = pneg %p1928
        $region83: #{upsampling_agg_block.2} parent=72 // pred_check_branch
          %1931 = sbr.rel (%p1929) target = $region85
        $region84: #{upsampling_agg_block.2} parent=72 // pred_region
          %v1932 = vld [vmem:[#allocation3] sm:$0xff]
          %v1933 = vld [vmem:[#allocation3 + $0x8] sm:$0xff]
          %v1934 = vld [vmem:[#allocation3 + $0x10] sm:$0xff]
          %v1935 = vld [vmem:[#allocation3 + $0x18] sm:$0xff]
          %v1936 = vld [vmem:[#allocation3 + $0x20] sm:$0xff]
          %v1937 = vld [vmem:[#allocation3 + $0x28] sm:$0xff]
          %v1938 = vld [vmem:[#allocation3 + $0x30] sm:$0xff]
          %v1939 = vld [vmem:[#allocation3 + $0x38] sm:$0xff]
          %v1940 = vld [vmem:[#allocation3 + $0x40] sm:$0xff]
          %v1941 = vld [vmem:[#allocation3 + $0x48] sm:$0xff]
          %v1942 = vld [vmem:[#allocation3 + $0x50] sm:$0xff]
          %v1943 = vld [vmem:[#allocation3 + $0x58] sm:$0xff]
          %v1944 = vld [vmem:[#allocation3 + $0x60] sm:$0xff]
          %v1945 = vld [vmem:[#allocation3 + $0x68] sm:$0xff]
          %v1946 = vld [vmem:[#allocation3 + $0x70] sm:$0xff]
          %v1947 = vld [vmem:[#allocation3 + $0x78] sm:$0xff]
          %v1948 = vld [vmem:[#allocation3 + $0x80] sm:$0xff]
          %v1949 = vld [vmem:[#allocation3 + $0x88] sm:$0xff]
          %v1950 = vld [vmem:[#allocation3 + $0x90] sm:$0xff]
          %v1951 = vld [vmem:[#allocation3 + $0x98] sm:$0xff]
          %v1952 = vld [vmem:[#allocation3 + $0xa0] sm:$0xff]
          %v1953 = vld [vmem:[#allocation3 + $0xa8] sm:$0xff]
          %v1954 = vld [vmem:[#allocation3 + $0xb0] sm:$0xff]
          %v1955 = vld [vmem:[#allocation3 + $0xb8] sm:$0xff]
          %v1956 = vld [vmem:[#allocation3 + $0xc0] sm:$0xff]
          %v1957 = vld [vmem:[#allocation3 + $0xc8] sm:$0xff]
          %v1958 = vld [vmem:[#allocation3 + $0xd0] sm:$0xff]
          %v1959 = vld [vmem:[#allocation3 + $0xd8] sm:$0xff]
          %v1960 = vld [vmem:[#allocation3 + $0xe0] sm:$0xff]
          %v1961 = vld [vmem:[#allocation3 + $0xe8] sm:$0xff]
          %v1962 = vld [vmem:[#allocation3 + $0xf0] sm:$0xff]
          %v1963 = vld [vmem:[#allocation3 + $0xf8] sm:$0xff]
          %v1964 = vrcp.pop %v1932
          %v1965 = vrcp.pop %v1933
          %v1966 = vrcp.pop %v1934
          %v1967 = vrcp.pop %v1935
          %v1968 = vrcp.pop %v1936
          %v1969 = vrcp.pop %v1937
          %v1970 = vrcp.pop %v1938
          %v1971 = vrcp.pop %v1939
          %v1972 = vrcp.pop %v1940
          %v1973 = vrcp.pop %v1941
          %v1974 = vrcp.pop %v1942
          %v1975 = vrcp.pop %v1943
          %v1976 = vrcp.pop %v1944
          %v1977 = vrcp.pop %v1945
          %v1978 = vrcp.pop %v1946
          %v1979 = vrcp.pop %v1947
          %v1980 = vrcp.pop %v1948
          %v1981 = vrcp.pop %v1949
          %v1982 = vrcp.pop %v1950
          %v1983 = vrcp.pop %v1951
          %v1984 = vrcp.pop %v1952
          %v1985 = vrcp.pop %v1953
          %v1986 = vrcp.pop %v1954
          %v1987 = vrcp.pop %v1955
          %v1988 = vrcp.pop %v1956
          %v1989 = vrcp.pop %v1957
          %v1990 = vrcp.pop %v1958
          %v1991 = vrcp.pop %v1959
          %v1992 = vrcp.pop %v1960
          %v1993 = vrcp.pop %v1961
          %v1994 = vrcp.pop %v1962
          %v1995 = vrcp.pop %v1963
          %v1996 = vld [vmem:[#allocation4] sm:$0xff]
          %v1997 = vld [vmem:[#allocation4 + $0x8] sm:$0xff]
          %v1998 = vld [vmem:[#allocation4 + $0x10] sm:$0xff]
          %v1999 = vld [vmem:[#allocation4 + $0x18] sm:$0xff]
          %v2000 = vld [vmem:[#allocation4 + $0x20] sm:$0xff]
          %v2001 = vld [vmem:[#allocation4 + $0x28] sm:$0xff]
          %v2002 = vld [vmem:[#allocation4 + $0x30] sm:$0xff]
          %v2003 = vld [vmem:[#allocation4 + $0x38] sm:$0xff]
          %v2004 = vld [vmem:[#allocation4 + $0x40] sm:$0xff]
          %v2005 = vld [vmem:[#allocation4 + $0x48] sm:$0xff]
          %v2006 = vld [vmem:[#allocation4 + $0x50] sm:$0xff]
          %v2007 = vld [vmem:[#allocation4 + $0x58] sm:$0xff]
          %v2008 = vld [vmem:[#allocation4 + $0x60] sm:$0xff]
          %v2009 = vld [vmem:[#allocation4 + $0x68] sm:$0xff]
          %v2010 = vld [vmem:[#allocation4 + $0x70] sm:$0xff]
          %v2011 = vld [vmem:[#allocation4 + $0x78] sm:$0xff]
          %v2012 = vld [vmem:[#allocation4 + $0x80] sm:$0xff]
          %v2013 = vld [vmem:[#allocation4 + $0x88] sm:$0xff]
          %v2014 = vld [vmem:[#allocation4 + $0x90] sm:$0xff]
          %v2015 = vld [vmem:[#allocation4 + $0x98] sm:$0xff]
          %v2016 = vld [vmem:[#allocation4 + $0xa0] sm:$0xff]
          %v2017 = vld [vmem:[#allocation4 + $0xa8] sm:$0xff]
          %v2018 = vld [vmem:[#allocation4 + $0xb0] sm:$0xff]
          %v2019 = vld [vmem:[#allocation4 + $0xb8] sm:$0xff]
          %v2020 = vld [vmem:[#allocation4 + $0xc0] sm:$0xff]
          %v2021 = vld [vmem:[#allocation4 + $0xc8] sm:$0xff]
          %v2022 = vld [vmem:[#allocation4 + $0xd0] sm:$0xff]
          %v2023 = vld [vmem:[#allocation4 + $0xd8] sm:$0xff]
          %v2024 = vld [vmem:[#allocation4 + $0xe0] sm:$0xff]
          %v2025 = vld [vmem:[#allocation4 + $0xe8] sm:$0xff]
          %v2026 = vld [vmem:[#allocation4 + $0xf0] sm:$0xff]
          %v2027 = vld [vmem:[#allocation4 + $0xf8] sm:$0xff]
          %2029 = vset.pattern.permute.xlu0 0
          %2030 = vperm.xlu0 %2029, %v1964
          %v2031 = vpop.permute.xlu0 %2030
          %2034 = vset.pattern.permute.xlu0 0
          %2035 = vperm.xlu0 %2034, %v1965
          %v2036 = vpop.permute.xlu0 %2035
          %2039 = vset.pattern.permute.xlu0 0
          %2040 = vperm.xlu0 %2039, %v1966
          %v2041 = vpop.permute.xlu0 %2040
          %2044 = vset.pattern.permute.xlu0 0
          %2045 = vperm.xlu0 %2044, %v1967
          %v2046 = vpop.permute.xlu0 %2045
          %2049 = vset.pattern.permute.xlu0 0
          %2050 = vperm.xlu0 %2049, %v1968
          %v2051 = vpop.permute.xlu0 %2050
          %2054 = vset.pattern.permute.xlu0 0
          %2055 = vperm.xlu0 %2054, %v1969
          %v2056 = vpop.permute.xlu0 %2055
          %2059 = vset.pattern.permute.xlu0 0
          %2060 = vperm.xlu0 %2059, %v1970
          %v2061 = vpop.permute.xlu0 %2060
          %2064 = vset.pattern.permute.xlu0 0
          %2065 = vperm.xlu0 %2064, %v1971
          %v2066 = vpop.permute.xlu0 %2065
          %2069 = vset.pattern.permute.xlu0 0
          %2070 = vperm.xlu0 %2069, %v1972
          %v2071 = vpop.permute.xlu0 %2070
          %2074 = vset.pattern.permute.xlu0 0
          %2075 = vperm.xlu0 %2074, %v1973
          %v2076 = vpop.permute.xlu0 %2075
          %2079 = vset.pattern.permute.xlu0 0
          %2080 = vperm.xlu0 %2079, %v1974
          %v2081 = vpop.permute.xlu0 %2080
          %2084 = vset.pattern.permute.xlu0 0
          %2085 = vperm.xlu0 %2084, %v1975
          %v2086 = vpop.permute.xlu0 %2085
          %2089 = vset.pattern.permute.xlu0 0
          %2090 = vperm.xlu0 %2089, %v1976
          %v2091 = vpop.permute.xlu0 %2090
          %2094 = vset.pattern.permute.xlu0 0
          %2095 = vperm.xlu0 %2094, %v1977
          %v2096 = vpop.permute.xlu0 %2095
          %2099 = vset.pattern.permute.xlu0 0
          %2100 = vperm.xlu0 %2099, %v1978
          %v2101 = vpop.permute.xlu0 %2100
          %2104 = vset.pattern.permute.xlu0 0
          %2105 = vperm.xlu0 %2104, %v1979
          %v2106 = vpop.permute.xlu0 %2105
          %2109 = vset.pattern.permute.xlu0 0
          %2110 = vperm.xlu0 %2109, %v1980
          %v2111 = vpop.permute.xlu0 %2110
          %2114 = vset.pattern.permute.xlu0 0
          %2115 = vperm.xlu0 %2114, %v1981
          %v2116 = vpop.permute.xlu0 %2115
          %2119 = vset.pattern.permute.xlu0 0
          %2120 = vperm.xlu0 %2119, %v1982
          %v2121 = vpop.permute.xlu0 %2120
          %2124 = vset.pattern.permute.xlu0 0
          %2125 = vperm.xlu0 %2124, %v1983
          %v2126 = vpop.permute.xlu0 %2125
          %2129 = vset.pattern.permute.xlu0 0
          %2130 = vperm.xlu0 %2129, %v1984
          %v2131 = vpop.permute.xlu0 %2130
          %2134 = vset.pattern.permute.xlu0 0
          %2135 = vperm.xlu0 %2134, %v1985
          %v2136 = vpop.permute.xlu0 %2135
          %2139 = vset.pattern.permute.xlu0 0
          %2140 = vperm.xlu0 %2139, %v1986
          %v2141 = vpop.permute.xlu0 %2140
          %2144 = vset.pattern.permute.xlu0 0
          %2145 = vperm.xlu0 %2144, %v1987
          %v2146 = vpop.permute.xlu0 %2145
          %2149 = vset.pattern.permute.xlu0 0
          %2150 = vperm.xlu0 %2149, %v1988
          %v2151 = vpop.permute.xlu0 %2150
          %2154 = vset.pattern.permute.xlu0 0
          %2155 = vperm.xlu0 %2154, %v1989
          %v2156 = vpop.permute.xlu0 %2155
          %2159 = vset.pattern.permute.xlu0 0
          %2160 = vperm.xlu0 %2159, %v1990
          %v2161 = vpop.permute.xlu0 %2160
          %2164 = vset.pattern.permute.xlu0 0
          %2165 = vperm.xlu0 %2164, %v1991
          %v2166 = vpop.permute.xlu0 %2165
          %2169 = vset.pattern.permute.xlu0 0
          %2170 = vperm.xlu0 %2169, %v1992
          %v2171 = vpop.permute.xlu0 %2170
          %2174 = vset.pattern.permute.xlu0 0
          %2175 = vperm.xlu0 %2174, %v1993
          %v2176 = vpop.permute.xlu0 %2175
          %2179 = vset.pattern.permute.xlu0 0
          %2180 = vperm.xlu0 %2179, %v1994
          %v2181 = vpop.permute.xlu0 %2180
          %2184 = vset.pattern.permute.xlu0 0
          %2185 = vperm.xlu0 %2184, %v1995
          %v2186 = vpop.permute.xlu0 %2185
          %v2188 = vmul.f32 %v1996, %v2031
          %v2189 = vmul.f32 %v1997, %v2036
          %v2190 = vmul.f32 %v1998, %v2041
          %v2191 = vmul.f32 %v1999, %v2046
          %v2192 = vmul.f32 %v2000, %v2051
          %v2193 = vmul.f32 %v2001, %v2056
          %v2194 = vmul.f32 %v2002, %v2061
          %v2195 = vmul.f32 %v2003, %v2066
          %v2196 = vmul.f32 %v2004, %v2071
          %v2197 = vmul.f32 %v2005, %v2076
          %v2198 = vmul.f32 %v2006, %v2081
          %v2199 = vmul.f32 %v2007, %v2086
          %v2200 = vmul.f32 %v2008, %v2091
          %v2201 = vmul.f32 %v2009, %v2096
          %v2202 = vmul.f32 %v2010, %v2101
          %v2203 = vmul.f32 %v2011, %v2106
          %v2204 = vmul.f32 %v2012, %v2111
          %v2205 = vmul.f32 %v2013, %v2116
          %v2206 = vmul.f32 %v2014, %v2121
          %v2207 = vmul.f32 %v2015, %v2126
          %v2208 = vmul.f32 %v2016, %v2131
          %v2209 = vmul.f32 %v2017, %v2136
          %v2210 = vmul.f32 %v2018, %v2141
          %v2211 = vmul.f32 %v2019, %v2146
          %v2212 = vmul.f32 %v2020, %v2151
          %v2213 = vmul.f32 %v2021, %v2156
          %v2214 = vmul.f32 %v2022, %v2161
          %v2215 = vmul.f32 %v2023, %v2166
          %v2216 = vmul.f32 %v2024, %v2171
          %v2217 = vmul.f32 %v2025, %v2176
          %v2218 = vmul.f32 %v2026, %v2181
          %v2219 = vmul.f32 %v2027, %v2186
          %v2220 = vld [vmem:[%s3] sm:$0x1]
          %v2222 = vlaneseq
          %v2223 = vshrl.u32 %v2222, 7
          %v2224 = vsub.s32 0, %v2223
          %v2225 = vrot.slane %v2220, %v2224
          %v2227 = vadd.f32 %v2188, %v2225
          %v2228 = vadd.f32 %v2189, %v2225
          %v2229 = vadd.f32 %v2190, %v2225
          %v2230 = vadd.f32 %v2191, %v2225
          %v2231 = vadd.f32 %v2192, %v2225
          %v2232 = vadd.f32 %v2193, %v2225
          %v2233 = vadd.f32 %v2194, %v2225
          %v2234 = vadd.f32 %v2195, %v2225
          %v2235 = vadd.f32 %v2196, %v2225
          %v2236 = vadd.f32 %v2197, %v2225
          %v2237 = vadd.f32 %v2198, %v2225
          %v2238 = vadd.f32 %v2199, %v2225
          %v2239 = vadd.f32 %v2200, %v2225
          %v2240 = vadd.f32 %v2201, %v2225
          %v2241 = vadd.f32 %v2202, %v2225
          %v2242 = vadd.f32 %v2203, %v2225
          %v2243 = vadd.f32 %v2204, %v2225
          %v2244 = vadd.f32 %v2205, %v2225
          %v2245 = vadd.f32 %v2206, %v2225
          %v2246 = vadd.f32 %v2207, %v2225
          %v2247 = vadd.f32 %v2208, %v2225
          %v2248 = vadd.f32 %v2209, %v2225
          %v2249 = vadd.f32 %v2210, %v2225
          %v2250 = vadd.f32 %v2211, %v2225
          %v2251 = vadd.f32 %v2212, %v2225
          %v2252 = vadd.f32 %v2213, %v2225
          %v2253 = vadd.f32 %v2214, %v2225
          %v2254 = vadd.f32 %v2215, %v2225
          %v2255 = vadd.f32 %v2216, %v2225
          %v2256 = vadd.f32 %v2217, %v2225
          %v2257 = vadd.f32 %v2218, %v2225
          %v2258 = vadd.f32 %v2219, %v2225
          %2259 = vst.msk [vmem:[%s342] sm:$0xff] %vm490, %v2227
          %2260 = vst.msk [vmem:[%s342 + $0x8] sm:$0xff] %vm490, %v2228
          %2261 = vst.msk [vmem:[%s342 + $0x10] sm:$0xff] %vm490, %v2229
          %2262 = vst.msk [vmem:[%s342 + $0x18] sm:$0xff] %vm490, %v2230
          %2263 = vst.msk [vmem:[%s342 + $0x20] sm:$0xff] %vm490, %v2231
          %2264 = vst.msk [vmem:[%s342 + $0x28] sm:$0xff] %vm490, %v2232
          %2265 = vst.msk [vmem:[%s342 + $0x30] sm:$0xff] %vm490, %v2233
          %2266 = vst.msk [vmem:[%s342 + $0x38] sm:$0xff] %vm490, %v2234
          %2267 = vst.msk [vmem:[%s342 + $0x40] sm:$0xff] %vm490, %v2235
          %2268 = vst.msk [vmem:[%s342 + $0x48] sm:$0xff] %vm490, %v2236
          %2269 = vst.msk [vmem:[%s342 + $0x50] sm:$0xff] %vm490, %v2237
          %2270 = vst.msk [vmem:[%s342 + $0x58] sm:$0xff] %vm490, %v2238
          %2271 = vst.msk [vmem:[%s342 + $0x60] sm:$0xff] %vm490, %v2239
          %2272 = vst.msk [vmem:[%s342 + $0x68] sm:$0xff] %vm490, %v2240
          %2273 = vst.msk [vmem:[%s342 + $0x70] sm:$0xff] %vm490, %v2241
          %2274 = vst.msk [vmem:[%s342 + $0x78] sm:$0xff] %vm490, %v2242
          %2275 = vst.msk [vmem:[%s342 + $0x80] sm:$0xff] %vm490, %v2243
          %2276 = vst.msk [vmem:[%s342 + $0x88] sm:$0xff] %vm490, %v2244
          %2277 = vst.msk [vmem:[%s342 + $0x90] sm:$0xff] %vm490, %v2245
          %2278 = vst.msk [vmem:[%s342 + $0x98] sm:$0xff] %vm490, %v2246
          %2279 = vst.msk [vmem:[%s342 + $0xa0] sm:$0xff] %vm490, %v2247
          %2280 = vst.msk [vmem:[%s342 + $0xa8] sm:$0xff] %vm490, %v2248
          %2281 = vst.msk [vmem:[%s342 + $0xb0] sm:$0xff] %vm490, %v2249
          %2282 = vst.msk [vmem:[%s342 + $0xb8] sm:$0xff] %vm490, %v2250
          %2283 = vst.msk [vmem:[%s342 + $0xc0] sm:$0xff] %vm490, %v2251
          %2284 = vst.msk [vmem:[%s342 + $0xc8] sm:$0xff] %vm490, %v2252
          %2285 = vst.msk [vmem:[%s342 + $0xd0] sm:$0xff] %vm490, %v2253
          %2286 = vst.msk [vmem:[%s342 + $0xd8] sm:$0xff] %vm490, %v2254
          %2287 = vst.msk [vmem:[%s342 + $0xe0] sm:$0xff] %vm490, %v2255
          %2288 = vst.msk [vmem:[%s342 + $0xe8] sm:$0xff] %vm490, %v2256
          %2289 = vst.msk [vmem:[%s342 + $0xf0] sm:$0xff] %vm490, %v2257
          %2290 = vst.msk [vmem:[%s342 + $0xf8] sm:$0xff] %vm490, %v2258
        $region85: #{upsampling_agg_block.2} parent=72 // pred_fallthru
          _
        %s2291 = smul.u32 32, %s21
        %p2292 = scmp.lt.s32.totalorder %s20, 1
        %s2293 = scalar_select %p2292, %s20, 1
        %p2294 = scmp.lt.s32.totalorder %s2291, 127
        %s2295 = scalar_select %p2294, %s2291, 127
        %s2296 = smul.addr %s2293, 128
        %s2297 = sadd.s32 %s2295, %s2296
        %s2298 = smul.addr %s2297, 8
        %s2299 = scalar_lea.vmem %s4, %s2298
        // Predicated region
        $region86: #{upsampling_agg_block.2} parent=72 // pred_check
          %p2300 = pneg %p159
        $region87: #{upsampling_agg_block.2} parent=72 // pred_check_branch
          %2302 = sbr.rel (%p2300) target = $region89
        $region88: #{upsampling_agg_block.2} parent=72 // pred_region
          %s2303 = smul.u32 32, %s21
        $region89: #{upsampling_agg_block.2} parent=72 // pred_fallthru
          _
      $region73: #{upsampling_agg_block.2} parent=5 // pred_fallthru
        _
      %p2304 = scmp.le.s32.totalorder 2, %s10
      // Predicated region
      $region90: #{upsampling_agg_block.2} parent=5 // pred_check
        %p2305 = pneg %p2304
      $region91: #{upsampling_agg_block.2} parent=5 // pred_check_branch
        %2307 = sbr.rel (%p2305) target = $region93
      $region92: #{upsampling_agg_block.2} parent=5 // pred_region
        %s2308 = ssub.s32 %s10, 2
        // Predicated region
        $region94: #{upsampling_agg_block.2} parent=92 // pred_check
          %p2309 = pneg %p165
        $region95: #{upsampling_agg_block.2} parent=92 // pred_check_branch
          %2311 = sbr.rel (%p2309) target = $region97
        $region96: #{upsampling_agg_block.2} parent=92 // pred_region
          %s2312 = smul.u32 32, %s24
          %p2313 = scmp.lt.s32.totalorder %s23, 1
          %s2314 = scalar_select %p2313, %s23, 1
          %p2315 = scmp.lt.s32.totalorder %s2312, 127
          %s2316 = scalar_select %p2315, %s2312, 127
          %s2317 = smul.addr %s2314, 128
          %s2318 = sadd.s32 %s2316, %s2317
          %s2319 = smul.addr %s2318, 8
          %s2320 = scalar_lea.vmem %s4, %s2319
        $region97: #{upsampling_agg_block.2} parent=92 // pred_fallthru
          _
      $region93: #{upsampling_agg_block.2} parent=5 // pred_fallthru
        _
    $region6: #{upsampling_agg_block.2} parent=1 // loop_footer
      %s14 = sadd.s32 1, %s10
    $region7: #{upsampling_agg_block.2} parent=1 // loop_footer_branch
      %9 = sbr.rel target = $region3
    $region8: #{upsampling_agg_block.2} parent=1 // loop_exit
      _

// kernel: upsampling_agg_block.3
$region0: #{upsampling_agg_block.3}
  #allocation0 [shape = 'u32[]', space=smem, size = 0x4, offset = 0x4, fixed_abs, tag = 'smem constant byte address 0x4 - core index']
  #allocation1 [shape = 'u32[144,128]{1,0:T(1,128)}', space=vmem, size = 0x12000, scoped, tag = 'internal scratch']
  %s0 = inlined_call_operand.vmem [shape: f32[2,8,1024], index: 0, kind: input, shape index: {}]
  %s1 = inlined_call_operand.vmem [shape: f32[2,4,1024], index: 1, kind: input, shape index: {}]
  %s2 = inlined_call_operand.vmem [shape: f32[4,8], index: 2, kind: input, shape index: {}]
  %s3 = inlined_call_operand.vmem [shape: f32[2,4,1024], index: 3, kind: output, shape index: {}]
  %s4 = sld [smem:[#allocation0]]
  $region45: #{upsampling_agg_block.3} parent=0
    _
  %s6 = ssub.s32 1, %s4
  %s7 = scalar_select 0, %s6, %s4
  loop: start=0, step=1, limit=4
  $region2: #{upsampling_agg_block.3} parent=0 // loop_pre_header
    _
  $region3: #{upsampling_agg_block.3} parent=0 // loop_header
    %s9 = sphi 0, %s13
    %p10 = scmp.ge.s32.totalorder %s9, 4
    %s16 = sphi 0, %s28
    %s17 = sphi 0, %s24
    %s18 = sphi 0, %s16
    %s19 = sphi 0, %s17
    %s20 = sphi 0, %s18
    %s21 = sphi 0, %s19
    %s33 = sphi 0, %s35
    %s36 = sphi 0, %s33
    %s37 = sphi 0, %s36
    %s53 = sphi 0, %s37
    %s61 = sphi 0, %s63
    %s64 = sphi 0, %s61
    %s65 = sphi 0, %s64
    %s81 = sphi 0, %s65
    %s85 = sphi 0, %s85
    %s87 = sphi 0, %s85
    %s88 = sphi 0, %s87
    %s102 = sphi 0, %s88
    %s110 = sphi 0, %s112
    %s113 = sphi 0, %s110
    %s114 = sphi 0, %s113
    %s130 = sphi 0, %s114
  $region4: #{upsampling_agg_block.3} parent=0 // loop_header_branch
    %12 = sbr.rel (%p10) target = $region8
  $region5: #{upsampling_agg_block.3} parent=0 // loop_body
    %s14 = ssub.s32 %s9, 1
    %s15 = ssub.s32 %s9, 2
    %s22 = sadd.s32 1, %s17
    %p23 = scmp.ge.s32.totalorder %s22, 1
    %s24 = scalar_select %p23, 0, %s22
    %s25 = sadd.s32 1, %s16
    %s26 = scalar_select %p23, %s25, %s16
    %p27 = scmp.ge.s32.totalorder %s26, 2
    %s28 = scalar_select %p27, 0, %s26
    %s29 = ssub.s32 %s16, %s28
    %s30 = ssub.s32 %s17, %s24
    %s31 = sor.u32 %s29, %s30
    %p32 = scmp.eq.s32.totalorder %s31, 0
    %s34 = sadd.s32 %s33, 1
    %s35 = scalar_select %p32, %s33, %s34
    %p38 = pneg %p32
    %p39 = scmp.eq.s32.totalorder %s9, 1
    %p40 = por %p38, %p39
    %p41 = scmp.ne.s32.totalorder %s33, %s36
    %p42 = scmp.eq.s32.totalorder %s9, 0
    %p43 = por %p41, %p42
    %p44 = scmp.ne.s32.totalorder %s33, %s36
    %p45 = scmp.eq.s32.totalorder %s14, 1
    %p46 = por %p44, %p45
    %p47 = scmp.ne.s32.totalorder %s36, %s37
    %p48 = scmp.eq.s32.totalorder %s14, 0
    %p49 = por %p47, %p48
    %p50 = scmp.ne.s32.totalorder %s36, %s37
    %p51 = scmp.eq.s32.totalorder %s15, 1
    %p52 = por %p50, %p51
    %p54 = scmp.ne.s32.totalorder %s37, %s53
    %p55 = scmp.eq.s32.totalorder %s15, 0
    %p56 = por %p54, %p55
    %s57 = ssub.s32 %s16, %s28
    %s58 = ssub.s32 %s17, %s24
    %s59 = sor.u32 %s57, %s58
    %p60 = scmp.eq.s32.totalorder %s59, 0
    %s62 = sadd.s32 %s61, 1
    %s63 = scalar_select %p60, %s61, %s62
    %p66 = pneg %p60
    %p67 = scmp.eq.s32.totalorder %s9, 1
    %p68 = por %p66, %p67
    %p69 = scmp.ne.s32.totalorder %s61, %s64
    %p70 = scmp.eq.s32.totalorder %s9, 0
    %p71 = por %p69, %p70
    %p72 = scmp.ne.s32.totalorder %s61, %s64
    %p73 = scmp.eq.s32.totalorder %s14, 1
    %p74 = por %p72, %p73
    %p75 = scmp.ne.s32.totalorder %s64, %s65
    %p76 = scmp.eq.s32.totalorder %s14, 0
    %p77 = por %p75, %p76
    %p78 = scmp.ne.s32.totalorder %s64, %s65
    %p79 = scmp.eq.s32.totalorder %s15, 1
    %p80 = por %p78, %p79
    %p82 = scmp.ne.s32.totalorder %s65, %s81
    %p83 = scmp.eq.s32.totalorder %s15, 0
    %p84 = por %p82, %p83
    %s86 = sadd.s32 %s85, 1
    %p89 = scmp.eq.s32.totalorder %s9, 1
    %p90 = scmp.ne.s32.totalorder %s85, %s87
    %p91 = scmp.eq.s32.totalorder %s9, 0
    %p92 = por %p90, %p91
    %p93 = scmp.ne.s32.totalorder %s85, %s87
    %p94 = scmp.eq.s32.totalorder %s14, 1
    %p95 = por %p93, %p94
    %p96 = scmp.ne.s32.totalorder %s87, %s88
    %p97 = scmp.eq.s32.totalorder %s14, 0
    %p98 = por %p96, %p97
    %p99 = scmp.ne.s32.totalorder %s87, %s88
    %p100 = scmp.eq.s32.totalorder %s15, 1
    %p101 = por %p99, %p100
    %p103 = scmp.ne.s32.totalorder %s88, %s102
    %p104 = scmp.eq.s32.totalorder %s15, 0
    %p105 = por %p103, %p104
    %s106 = ssub.s32 %s16, %s28
    %s107 = ssub.s32 %s17, %s24
    %s108 = sor.u32 %s106, %s107
    %p109 = scmp.eq.s32.totalorder %s108, 0
    %s111 = sadd.s32 %s110, 1
    %s112 = scalar_select %p109, %s110, %s111
    %p115 = pneg %p109
    %p116 = scmp.eq.s32.totalorder %s9, 1
    %p117 = por %p115, %p116
    %p118 = scmp.ne.s32.totalorder %s110, %s113
    %p119 = scmp.eq.s32.totalorder %s9, 0
    %p120 = por %p118, %p119
    %p121 = scmp.ne.s32.totalorder %s110, %s113
    %p122 = scmp.eq.s32.totalorder %s14, 1
    %p123 = por %p121, %p122
    %p124 = scmp.ne.s32.totalorder %s113, %s114
    %p125 = scmp.eq.s32.totalorder %s14, 0
    %p126 = por %p124, %p125
    %p127 = scmp.ne.s32.totalorder %s113, %s114
    %p128 = scmp.eq.s32.totalorder %s15, 1
    %p129 = por %p127, %p128
    %p131 = scmp.ne.s32.totalorder %s114, %s130
    %p132 = scmp.eq.s32.totalorder %s15, 0
    %p133 = por %p131, %p132
    %p134 = scmp.le.s32.totalorder 1, %s9
    %p135 = scmp.lt.s32.totalorder %s9, 3
    %p136 = pnand %p134, %p135
    %p137 = pneg %p136
    // Predicated region
    $region9: #{upsampling_agg_block.3} parent=5 // pred_check
      _
    $region10: #{upsampling_agg_block.3} parent=5 // pred_check_branch
      %139 = sbr.rel (%p136) target = $region12
    $region11: #{upsampling_agg_block.3} parent=5 // pred_region
      %s140 = ssub.s32 %s9, 1
      // Predicated region
      $region13: #{upsampling_agg_block.3} parent=11 // pred_check
        %p141 = pneg %p98
      $region14: #{upsampling_agg_block.3} parent=11 // pred_check_branch
        %143 = sbr.rel (%p141) target = $region16
      $region15: #{upsampling_agg_block.3} parent=11 // pred_region
        _
      $region16: #{upsampling_agg_block.3} parent=11 // pred_fallthru
        _
    $region12: #{upsampling_agg_block.3} parent=5 // pred_fallthru
      _
    %p144 = scmp.lt.s32.totalorder %s9, 2
    // Predicated region
    $region17: #{upsampling_agg_block.3} parent=5 // pred_check
      %p145 = pneg %p144
    $region18: #{upsampling_agg_block.3} parent=5 // pred_check_branch
      %147 = sbr.rel (%p145) target = $region20
    $region19: #{upsampling_agg_block.3} parent=5 // pred_region
      // Predicated region
      $region21: #{upsampling_agg_block.3} parent=19 // pred_check
        %p148 = pneg %p43
      $region22: #{upsampling_agg_block.3} parent=19 // pred_check_branch
        %150 = sbr.rel (%p148) target = $region24
      $region23: #{upsampling_agg_block.3} parent=19 // pred_region
        %s151 = smul.u32 8, %s17
        %p152 = scmp.lt.s32.totalorder %s16, 1
        %s153 = scalar_select %p152, %s16, 1
        %p154 = scmp.lt.s32.totalorder %s151, 7
        %s155 = scalar_select %p154, %s151, 7
        %s156 = smul.addr %s153, 8
        %s157 = sadd.s32 %s155, %s156
        %s158 = smul.addr %s157, 8
        %s159 = scalar_lea.vmem %s0, %s158
        %s160 = smul.u32 8, %s17
      $region24: #{upsampling_agg_block.3} parent=19 // pred_fallthru
        _
      // Predicated region
      $region25: #{upsampling_agg_block.3} parent=19 // pred_check
        %p161 = pneg %p71
      $region26: #{upsampling_agg_block.3} parent=19 // pred_check_branch
        %163 = sbr.rel (%p161) target = $region28
      $region27: #{upsampling_agg_block.3} parent=19 // pred_region
        %s164 = smul.u32 8, %s17
        %p165 = scmp.lt.s32.totalorder %s16, 1
        %s166 = scalar_select %p165, %s16, 1
        %p167 = scmp.lt.s32.totalorder %s164, 7
        %s168 = scalar_select %p167, %s164, 7
        %s169 = smul.addr %s166, 8
        %s170 = sadd.s32 %s168, %s169
        %s171 = smul.addr %s170, 4
        %s172 = scalar_lea.vmem %s1, %s171
        %s173 = smul.u32 8, %s17
      $region28: #{upsampling_agg_block.3} parent=19 // pred_fallthru
        _
    $region20: #{upsampling_agg_block.3} parent=5 // pred_fallthru
      _
    %p174 = scmp.le.s32.totalorder 1, %s9
    %p175 = scmp.lt.s32.totalorder %s9, 3
    %p176 = pnand %p174, %p175
    %p177 = pneg %p176
    // Predicated region
    $region29: #{upsampling_agg_block.3} parent=5 // pred_check
      _
    $region30: #{upsampling_agg_block.3} parent=5 // pred_check_branch
      %179 = sbr.rel (%p176) target = $region32
    $region31: #{upsampling_agg_block.3} parent=5 // pred_region
      %s180 = ssub.s32 %s9, 1
      %s181 = smul.u32 8, %s19
      %p182 = scmp.lt.s32.totalorder %s18, 1
      %s183 = scalar_select %p182, %s18, 1
      %p184 = scmp.lt.s32.totalorder %s181, 7
      %s185 = scalar_select %p184, %s181, 7
      %s186 = smul.addr %s183, 8
      %s187 = sadd.s32 %s185, %s186
      %s188 = smul.addr %s187, 8
      %s189 = scalar_lea.vmem %s0, %s188
      %p190 = pneg %p49
      %p191 = pneg %p46
      %s192 = smul.u32 8, %s19
      %p193 = scmp.lt.s32.totalorder %s18, 1
      %s194 = scalar_select %p193, %s18, 1
      %p195 = scmp.lt.s32.totalorder %s192, 7
      %s196 = scalar_select %p195, %s192, 7
      %s197 = smul.addr %s194, 8
      %s198 = sadd.s32 %s196, %s197
      %s199 = smul.addr %s198, 4
      %s200 = scalar_lea.vmem %s1, %s199
      %p201 = pneg %p77
      %p202 = pneg %p74
      %p203 = pneg %p98
      %p204 = pneg %p95
      %p205 = pneg %p126
      %p206 = pneg %p123
      %s207 = smul.u32 8, %s19
      %p208 = scmp.lt.s32.totalorder %s18, 1
      %s209 = scalar_select %p208, %s18, 1
      %p210 = scmp.lt.s32.totalorder %s207, 7
      %s211 = scalar_select %p210, %s207, 7
      %s212 = smul.addr %s209, 8
      %s213 = sadd.s32 %s211, %s212
      %s214 = smul.addr %s213, 4
      %s215 = scalar_lea.vmem %s3, %s214
      %s216 = smul.u32 8, %s19
      %p217 = scmp.lt.s32.totalorder %s18, 1
      %s218 = scalar_select %p217, %s18, 1
      %p219 = scmp.lt.s32.totalorder %s216, 7
      %s220 = scalar_select %p219, %s216, 7
      %s221 = smul.addr %s218, 8
      %s222 = sadd.s32 %s220, %s221
      %s223 = smul.addr %s222, 8
      %s224 = scalar_lea.vmem %s0, %s223
      %s225 = smul.u32 8, %s19
      %s226 = smul.u32 8, %s19
      %p227 = scmp.lt.s32.totalorder %s18, 1
      %s228 = scalar_select %p227, %s18, 1
      %p229 = scmp.lt.s32.totalorder %s226, 7
      %s230 = scalar_select %p229, %s226, 7
      %s231 = smul.addr %s228, 8
      %s232 = sadd.s32 %s230, %s231
      %s233 = smul.addr %s232, 4
      %s234 = scalar_lea.vmem %s1, %s233
      %s235 = smul.u32 8, %s19
      %s236 = smul.u32 8, %s19
      %p237 = scmp.lt.s32.totalorder %s18, 1
      %s238 = scalar_select %p237, %s18, 1
      %p239 = scmp.lt.s32.totalorder %s236, 7
      %s240 = scalar_select %p239, %s236, 7
      %s241 = smul.addr %s238, 8
      %s242 = sadd.s32 %s240, %s241
      %s243 = smul.addr %s242, 4
      %s244 = scalar_lea.vmem %s3, %s243
      %s245 = smul.u32 8, %s19
      %v246 = vld [vmem:[%s2] sm:$0xf]
      %v247 = vld [vmem:[%s224] sm:$0xff]
      %v248 = vld [vmem:[%s224 + $0x8] sm:$0xff]
      %v249 = vld [vmem:[%s224 + $0x10] sm:$0xff]
      %v250 = vld [vmem:[%s224 + $0x18] sm:$0xff]
      %v251 = vld [vmem:[%s224 + $0x20] sm:$0xff]
      %v252 = vld [vmem:[%s224 + $0x28] sm:$0xff]
      %v253 = vld [vmem:[%s224 + $0x30] sm:$0xff]
      %v254 = vld [vmem:[%s224 + $0x38] sm:$0xff]
      %v255 = vld [vmem:[%s234] sm:$0xff]
      %v256 = vld [vmem:[%s234 + $0x8] sm:$0xff]
      %v257 = vld [vmem:[%s234 + $0x10] sm:$0xff]
      %v258 = vld [vmem:[%s234 + $0x18] sm:$0xff]
      %v263 = vcombine.high %v255, %v255
      %v264 = vcombine.high %v256, %v256
      %v265 = vcombine.high %v257, %v257
      %v266 = vcombine.high %v258, %v258
      %vm271 = vcmask 64512
      %v273 = vsel %vm271, %v246, 0
      %275 = vmatprep.subr.mxu0 %v248
      %276 = vmatpush1.msra.mxu0 %v247
      %277 = vmatprep.subr.mxu0 0.0
      %278 = vmatpush1.msra.mxu0 0.0
      %279 = vmatprep.subr.mxu0 0.0
      %280 = vmatpush1.msra.mxu0 0.0
      %281 = vmatprep.subr.mxu0 0.0
      %282 = vmatpush1.msra.mxu0 0.0
      %283 = vmatprep.subr.mxu0 0.0
      %284 = vmatpush1.msra.mxu0 0.0
      %285 = vmatprep.subr.mxu0 0.0
      %286 = vmatpush1.msra.mxu0 0.0
      %287 = vmatprep.subr.mxu0 0.0
      %288 = vmatpush1.msra.mxu0 0.0
      %289 = vmatprep.subr.mxu0 0.0
      %290 = vmatpush1.msra.mxu0 0.0
      %291 = vmatprep.subr.mxu0 0.0
      %292 = vmatpush1.msra.mxu0 0.0
      %293 = vmatprep.subr.mxu0 0.0
      %294 = vmatpush1.msra.mxu0 0.0
      %295 = vmatprep.subr.mxu0 0.0
      %296 = vmatpush1.msra.mxu0 0.0
      %297 = vmatprep.subr.mxu0 0.0
      %298 = vmatpush1.msra.mxu0 0.0
      %299 = vmatprep.subr.mxu0 0.0
      %300 = vmatpush1.msra.mxu0 0.0
      %301 = vmatprep.subr.mxu0 0.0
      %302 = vmatpush1.msra.mxu0 0.0
      %303 = vmatprep.subr.mxu0 0.0
      %304 = vmatpush1.msra.mxu0 0.0
      %305 = vmatprep.subr.mxu0 0.0
      %306 = vmatpush1.msra.mxu0 0.0
      %307 = vmatprep.subr.mxu0 0.0
      %308 = vmatpush1.msra.mxu0 0.0
      %309 = vmatprep.subr.mxu0 0.0
      %310 = vmatpush1.msra.mxu0 0.0
      %311 = vmatprep.subr.mxu0 0.0
      %312 = vmatpush1.msra.mxu0 0.0
      %313 = vmatprep.subr.mxu0 0.0
      %314 = vmatpush1.msra.mxu0 0.0
      %315 = vmatprep.subr.mxu0 0.0
      %316 = vmatpush1.msra.mxu0 0.0
      %317 = vmatprep.subr.mxu0 0.0
      %318 = vmatpush1.msra.mxu0 0.0
      %319 = vmatprep.subr.mxu0 0.0
      %320 = vmatpush1.msra.mxu0 0.0
      %321 = vmatprep.subr.mxu0 0.0
      %322 = vmatpush1.msra.mxu0 0.0
      %323 = vmatprep.subr.mxu0 0.0
      %324 = vmatpush1.msra.mxu0 0.0
      %325 = vmatprep.subr.mxu0 0.0
      %326 = vmatpush1.msra.mxu0 0.0
      %327 = vmatprep.subr.mxu0 0.0
      %328 = vmatpush1.msra.mxu0 0.0
      %329 = vmatprep.subr.mxu0 0.0
      %330 = vmatpush1.msra.mxu0 0.0
      %331 = vmatprep.subr.mxu0 0.0
      %332 = vmatpush1.msra.mxu0 0.0
      %333 = vmatprep.subr.mxu0 0.0
      %334 = vmatpush1.msra.mxu0 0.0
      %335 = vmatprep.subr.mxu0 0.0
      %336 = vmatpush1.msra.mxu0 0.0
      %337 = vmatprep.subr.mxu0 0.0
      %338 = vmatpush1.msra.mxu0 0.0
      %339 = vmatprep.mubr.f32.mxu0 0.0
      %340 = vmatmul.mubr.f32.gmra.mrb[0].mxu0 %v273
      %v341 = vpop.f32.mrb[0].mxu0
      %v342 = vadd.f32 %v255, %v341
      %v343 = vpop.f32.mrb[0].mxu0
      %v344 = vadd.f32 %v263, %v343
      %345 = vdwg.mxu0
      %346 = vmatprep.subr.mxu0 %v250
      %347 = vmatpush1.msra.mxu0 %v249
      %348 = vmatprep.subr.mxu0 0.0
      %349 = vmatpush1.msra.mxu0 0.0
      %350 = vmatprep.subr.mxu0 0.0
      %351 = vmatpush1.msra.mxu0 0.0
      %352 = vmatprep.subr.mxu0 0.0
      %353 = vmatpush1.msra.mxu0 0.0
      %354 = vmatprep.subr.mxu0 0.0
      %355 = vmatpush1.msra.mxu0 0.0
      %356 = vmatprep.subr.mxu0 0.0
      %357 = vmatpush1.msra.mxu0 0.0
      %358 = vmatprep.subr.mxu0 0.0
      %359 = vmatpush1.msra.mxu0 0.0
      %360 = vmatprep.subr.mxu0 0.0
      %361 = vmatpush1.msra.mxu0 0.0
      %362 = vmatprep.subr.mxu0 0.0
      %363 = vmatpush1.msra.mxu0 0.0
      %364 = vmatprep.subr.mxu0 0.0
      %365 = vmatpush1.msra.mxu0 0.0
      %366 = vmatprep.subr.mxu0 0.0
      %367 = vmatpush1.msra.mxu0 0.0
      %368 = vmatprep.subr.mxu0 0.0
      %369 = vmatpush1.msra.mxu0 0.0
      %370 = vmatprep.subr.mxu0 0.0
      %371 = vmatpush1.msra.mxu0 0.0
      %372 = vmatprep.subr.mxu0 0.0
      %373 = vmatpush1.msra.mxu0 0.0
      %374 = vmatprep.subr.mxu0 0.0
      %375 = vmatpush1.msra.mxu0 0.0
      %376 = vmatprep.subr.mxu0 0.0
      %377 = vmatpush1.msra.mxu0 0.0
      %378 = vmatprep.subr.mxu0 0.0
      %379 = vmatpush1.msra.mxu0 0.0
      %380 = vmatprep.subr.mxu0 0.0
      %381 = vmatpush1.msra.mxu0 0.0
      %382 = vmatprep.subr.mxu0 0.0
      %383 = vmatpush1.msra.mxu0 0.0
      %384 = vmatprep.subr.mxu0 0.0
      %385 = vmatpush1.msra.mxu0 0.0
      %386 = vmatprep.subr.mxu0 0.0
      %387 = vmatpush1.msra.mxu0 0.0
      %388 = vmatprep.subr.mxu0 0.0
      %389 = vmatpush1.msra.mxu0 0.0
      %390 = vmatprep.subr.mxu0 0.0
      %391 = vmatpush1.msra.mxu0 0.0
      %392 = vmatprep.subr.mxu0 0.0
      %393 = vmatpush1.msra.mxu0 0.0
      %394 = vmatprep.subr.mxu0 0.0
      %395 = vmatpush1.msra.mxu0 0.0
      %396 = vmatprep.subr.mxu0 0.0
      %397 = vmatpush1.msra.mxu0 0.0
      %398 = vmatprep.subr.mxu0 0.0
      %399 = vmatpush1.msra.mxu0 0.0
      %400 = vmatprep.subr.mxu0 0.0
      %401 = vmatpush1.msra.mxu0 0.0
      %402 = vmatprep.subr.mxu0 0.0
      %403 = vmatpush1.msra.mxu0 0.0
      %404 = vmatprep.subr.mxu0 0.0
      %405 = vmatpush1.msra.mxu0 0.0
      %406 = vmatprep.subr.mxu0 0.0
      %407 = vmatpush1.msra.mxu0 0.0
      %408 = vmatprep.subr.mxu0 0.0
      %409 = vmatpush1.msra.mxu0 0.0
      %410 = vmatprep.mubr.f32.mxu0 0.0
      %411 = vmatmul.mubr.f32.gmra.mrb[0].mxu0 %v273
      %v412 = vpop.f32.mrb[0].mxu0
      %v413 = vadd.f32 %v256, %v412
      %v414 = vpop.f32.mrb[0].mxu0
      %v415 = vadd.f32 %v264, %v414
      %416 = vdwg.mxu0
      %417 = vmatprep.subr.mxu0 %v252
      %418 = vmatpush1.msra.mxu0 %v251
      %419 = vmatprep.subr.mxu0 0.0
      %420 = vmatpush1.msra.mxu0 0.0
      %421 = vmatprep.subr.mxu0 0.0
      %422 = vmatpush1.msra.mxu0 0.0
      %423 = vmatprep.subr.mxu0 0.0
      %424 = vmatpush1.msra.mxu0 0.0
      %425 = vmatprep.subr.mxu0 0.0
      %426 = vmatpush1.msra.mxu0 0.0
      %427 = vmatprep.subr.mxu0 0.0
      %428 = vmatpush1.msra.mxu0 0.0
      %429 = vmatprep.subr.mxu0 0.0
      %430 = vmatpush1.msra.mxu0 0.0
      %431 = vmatprep.subr.mxu0 0.0
      %432 = vmatpush1.msra.mxu0 0.0
      %433 = vmatprep.subr.mxu0 0.0
      %434 = vmatpush1.msra.mxu0 0.0
      %435 = vmatprep.subr.mxu0 0.0
      %436 = vmatpush1.msra.mxu0 0.0
      %437 = vmatprep.subr.mxu0 0.0
      %438 = vmatpush1.msra.mxu0 0.0
      %439 = vmatprep.subr.mxu0 0.0
      %440 = vmatpush1.msra.mxu0 0.0
      %441 = vmatprep.subr.mxu0 0.0
      %442 = vmatpush1.msra.mxu0 0.0
      %443 = vmatprep.subr.mxu0 0.0
      %444 = vmatpush1.msra.mxu0 0.0
      %445 = vmatprep.subr.mxu0 0.0
      %446 = vmatpush1.msra.mxu0 0.0
      %447 = vmatprep.subr.mxu0 0.0
      %448 = vmatpush1.msra.mxu0 0.0
      %449 = vmatprep.subr.mxu0 0.0
      %450 = vmatpush1.msra.mxu0 0.0
      %451 = vmatprep.subr.mxu0 0.0
      %452 = vmatpush1.msra.mxu0 0.0
      %453 = vmatprep.subr.mxu0 0.0
      %454 = vmatpush1.msra.mxu0 0.0
      %455 = vmatprep.subr.mxu0 0.0
      %456 = vmatpush1.msra.mxu0 0.0
      %457 = vmatprep.subr.mxu0 0.0
      %458 = vmatpush1.msra.mxu0 0.0
      %459 = vmatprep.subr.mxu0 0.0
      %460 = vmatpush1.msra.mxu0 0.0
      %461 = vmatprep.subr.mxu0 0.0
      %462 = vmatpush1.msra.mxu0 0.0
      %463 = vmatprep.subr.mxu0 0.0
      %464 = vmatpush1.msra.mxu0 0.0
      %465 = vmatprep.subr.mxu0 0.0
      %466 = vmatpush1.msra.mxu0 0.0
      %467 = vmatprep.subr.mxu0 0.0
      %468 = vmatpush1.msra.mxu0 0.0
      %469 = vmatprep.subr.mxu0 0.0
      %470 = vmatpush1.msra.mxu0 0.0
      %471 = vmatprep.subr.mxu0 0.0
      %472 = vmatpush1.msra.mxu0 0.0
      %473 = vmatprep.subr.mxu0 0.0
      %474 = vmatpush1.msra.mxu0 0.0
      %475 = vmatprep.subr.mxu0 0.0
      %476 = vmatpush1.msra.mxu0 0.0
      %477 = vmatprep.subr.mxu0 0.0
      %478 = vmatpush1.msra.mxu0 0.0
      %479 = vmatprep.subr.mxu0 0.0
      %480 = vmatpush1.msra.mxu0 0.0
      %481 = vmatprep.mubr.f32.mxu0 0.0
      %482 = vmatmul.mubr.f32.gmra.mrb[0].mxu0 %v273
      %v483 = vpop.f32.mrb[0].mxu0
      %v484 = vadd.f32 %v257, %v483
      %v485 = vpop.f32.mrb[0].mxu0
      %v486 = vadd.f32 %v265, %v485
      %487 = vdwg.mxu0
      %488 = vmatprep.subr.mxu0 %v254
      %489 = vmatpush1.msra.mxu0 %v253
      %490 = vmatprep.subr.mxu0 0.0
      %491 = vmatpush1.msra.mxu0 0.0
      %492 = vmatprep.subr.mxu0 0.0
      %493 = vmatpush1.msra.mxu0 0.0
      %494 = vmatprep.subr.mxu0 0.0
      %495 = vmatpush1.msra.mxu0 0.0
      %496 = vmatprep.subr.mxu0 0.0
      %497 = vmatpush1.msra.mxu0 0.0
      %498 = vmatprep.subr.mxu0 0.0
      %499 = vmatpush1.msra.mxu0 0.0
      %500 = vmatprep.subr.mxu0 0.0
      %501 = vmatpush1.msra.mxu0 0.0
      %502 = vmatprep.subr.mxu0 0.0
      %503 = vmatpush1.msra.mxu0 0.0
      %504 = vmatprep.subr.mxu0 0.0
      %505 = vmatpush1.msra.mxu0 0.0
      %506 = vmatprep.subr.mxu0 0.0
      %507 = vmatpush1.msra.mxu0 0.0
      %508 = vmatprep.subr.mxu0 0.0
      %509 = vmatpush1.msra.mxu0 0.0
      %510 = vmatprep.subr.mxu0 0.0
      %511 = vmatpush1.msra.mxu0 0.0
      %512 = vmatprep.subr.mxu0 0.0
      %513 = vmatpush1.msra.mxu0 0.0
      %514 = vmatprep.subr.mxu0 0.0
      %515 = vmatpush1.msra.mxu0 0.0
      %516 = vmatprep.subr.mxu0 0.0
      %517 = vmatpush1.msra.mxu0 0.0
      %518 = vmatprep.subr.mxu0 0.0
      %519 = vmatpush1.msra.mxu0 0.0
      %520 = vmatprep.subr.mxu0 0.0
      %521 = vmatpush1.msra.mxu0 0.0
      %522 = vmatprep.subr.mxu0 0.0
      %523 = vmatpush1.msra.mxu0 0.0
      %524 = vmatprep.subr.mxu0 0.0
      %525 = vmatpush1.msra.mxu0 0.0
      %526 = vmatprep.subr.mxu0 0.0
      %527 = vmatpush1.msra.mxu0 0.0
      %528 = vmatprep.subr.mxu0 0.0
      %529 = vmatpush1.msra.mxu0 0.0
      %530 = vmatprep.subr.mxu0 0.0
      %531 = vmatpush1.msra.mxu0 0.0
      %532 = vmatprep.subr.mxu0 0.0
      %533 = vmatpush1.msra.mxu0 0.0
      %534 = vmatprep.subr.mxu0 0.0
      %535 = vmatpush1.msra.mxu0 0.0
      %536 = vmatprep.subr.mxu0 0.0
      %537 = vmatpush1.msra.mxu0 0.0
      %538 = vmatprep.subr.mxu0 0.0
      %539 = vmatpush1.msra.mxu0 0.0
      %540 = vmatprep.subr.mxu0 0.0
      %541 = vmatpush1.msra.mxu0 0.0
      %542 = vmatprep.subr.mxu0 0.0
      %543 = vmatpush1.msra.mxu0 0.0
      %544 = vmatprep.subr.mxu0 0.0
      %545 = vmatpush1.msra.mxu0 0.0
      %546 = vmatprep.subr.mxu0 0.0
      %547 = vmatpush1.msra.mxu0 0.0
      %548 = vmatprep.subr.mxu0 0.0
      %549 = vmatpush1.msra.mxu0 0.0
      %550 = vmatprep.subr.mxu0 0.0
      %551 = vmatpush1.msra.mxu0 0.0
      %552 = vmatprep.mubr.f32.mxu0 0.0
      %553 = vmatmul.mubr.f32.gmra.mrb[0].mxu0 %v273
      %v554 = vpop.f32.mrb[0].mxu0
      %v555 = vadd.f32 %v258, %v554
      %v556 = vpop.f32.mrb[0].mxu0
      %v557 = vadd.f32 %v266, %v556
      %558 = vdwg.mxu0
      %v567 = vcombine.low %v342, %v344
      %v568 = vcombine.low %v413, %v415
      %v569 = vcombine.low %v484, %v486
      %v570 = vcombine.low %v555, %v557
      %575 = vst [vmem:[%s244] sm:$0xff] %v567
      %576 = vst [vmem:[%s244 + $0x8] sm:$0xff] %v568
      %577 = vst [vmem:[%s244 + $0x10] sm:$0xff] %v569
      %578 = vst [vmem:[%s244 + $0x18] sm:$0xff] %v570
      %s579 = smul.u32 8, %s19
      %p580 = scmp.lt.s32.totalorder %s18, 1
      %s581 = scalar_select %p580, %s18, 1
      %p582 = scmp.lt.s32.totalorder %s579, 7
      %s583 = scalar_select %p582, %s579, 7
      %s584 = smul.addr %s581, 8
      %s585 = sadd.s32 %s583, %s584
      %s586 = smul.addr %s585, 4
      %s587 = scalar_lea.vmem %s3, %s586
      // Predicated region
      $region33: #{upsampling_agg_block.3} parent=31 // pred_check
        %p588 = pneg %p123
      $region34: #{upsampling_agg_block.3} parent=31 // pred_check_branch
        %590 = sbr.rel (%p588) target = $region36
      $region35: #{upsampling_agg_block.3} parent=31 // pred_region
        %s591 = smul.u32 8, %s19
      $region36: #{upsampling_agg_block.3} parent=31 // pred_fallthru
        _
    $region32: #{upsampling_agg_block.3} parent=5 // pred_fallthru
      _
    %p592 = scmp.le.s32.totalorder 2, %s9
    // Predicated region
    $region37: #{upsampling_agg_block.3} parent=5 // pred_check
      %p593 = pneg %p592
    $region38: #{upsampling_agg_block.3} parent=5 // pred_check_branch
      %595 = sbr.rel (%p593) target = $region40
    $region39: #{upsampling_agg_block.3} parent=5 // pred_region
      %s596 = ssub.s32 %s9, 2
      // Predicated region
      $region41: #{upsampling_agg_block.3} parent=39 // pred_check
        %p597 = pneg %p129
      $region42: #{upsampling_agg_block.3} parent=39 // pred_check_branch
        %599 = sbr.rel (%p597) target = $region44
      $region43: #{upsampling_agg_block.3} parent=39 // pred_region
        %s600 = smul.u32 8, %s21
        %p601 = scmp.lt.s32.totalorder %s20, 1
        %s602 = scalar_select %p601, %s20, 1
        %p603 = scmp.lt.s32.totalorder %s600, 7
        %s604 = scalar_select %p603, %s600, 7
        %s605 = smul.addr %s602, 8
        %s606 = sadd.s32 %s604, %s605
        %s607 = smul.addr %s606, 4
        %s608 = scalar_lea.vmem %s3, %s607
      $region44: #{upsampling_agg_block.3} parent=39 // pred_fallthru
        _
    $region40: #{upsampling_agg_block.3} parent=5 // pred_fallthru
      _
  $region6: #{upsampling_agg_block.3} parent=0 // loop_footer
    %s13 = sadd.s32 1, %s9
  $region7: #{upsampling_agg_block.3} parent=0 // loop_footer_branch
    %8 = sbr.rel target = $region3
  $region8: #{upsampling_agg_block.3} parent=0 // loop_exit
    _

</llo_original>
